<compile_context>
chip_gen: v7x
topology: tpu7x:2x2x1
jax: 0.10.0
libtpu: 0.0.40
codegen_flags: <defaults>
</compile_context>

<pallas_src>
import functools
import math

import jax
import jax.numpy as jnp
import numpy as np
from jax import lax
from jax.experimental import pallas as pl
from jax.experimental.pallas import tpu as pltpu

JITTER = 1e-6


def _round_up(n, m):
    return ((n + m - 1) // m) * m


def _softplus(z):
    # numerically-stable softplus (matches torch.nn.Softplus to < f32 eps)
    return jnp.maximum(z, 0.0) + jnp.log1p(jnp.exp(-jnp.abs(z)))


# ---------------------------------------------------------------------------
# Kernel: embedding MLP + fused heads + in-kernel scale_tril assembly
# ---------------------------------------------------------------------------
def dmvn_kernel(x_ref,
                w_e1, b_e1, w_e2, b_e2,    # embedding MLP
                w_h1, b_h1,                # fused head layer 1   [H, 3H]
                w_m2, b_m2,                # mean head layer 2    [3H, L]
                w_t2, b_t2,                # tril head layer 2    [3H, L*L]
                mean_ref, tril_ref, *, label_size):
    f32 = jnp.float32
    # embedding = ReLU(x W1 + b1) ; ReLU(h W2 + b2)   (dropout = identity)
    x = x_ref[...].astype(w_e1.dtype)
    h = jnp.maximum(
        jnp.dot(x, w_e1[...], preferred_element_type=f32) + b_e1[...], 0.0)
    h = jnp.maximum(
        jnp.dot(h.astype(w_e2.dtype), w_e2[...], preferred_element_type=f32)
        + b_e2[...], 0.0)

    # fused head layer 1: [bt, 3H] = ReLU(h @ [w_m1 | w_v1 | w_c1] + b)
    g = jnp.maximum(
        jnp.dot(h.astype(w_h1.dtype), w_h1[...], preferred_element_type=f32)
        + b_h1[...], 0.0)
    g = g.astype(w_m2.dtype)

    # mean head layer 2 (only rows [0, H) of w_m2 carry real weights)
    mean_ref[...] = jnp.dot(g, w_m2[...], preferred_element_type=f32) + b_m2[...]

    # tril head layer 2: columns of w_t2 are the row-major flattened L x L
    # lower-triangular factor.  Softplus + jitter only on the diagonal lanes
    # (iota mask, pure VPU work); strict upper triangle is exact zeros because
    # the corresponding weight columns / bias lanes are zero.
    z = jnp.dot(g, w_t2[...], preferred_element_type=f32) + b_t2[...]
    col = lax.broadcasted_iota(jnp.int32, z.shape, 1)
    is_diag = (col % (label_size + 1)) == 0
    tril_ref[...] = jnp.where(is_diag, _softplus(z) + JITTER, z)


# ---------------------------------------------------------------------------
# Parameter packing (head fusion + in-kernel scale_tril placement)
# ---------------------------------------------------------------------------
def _pack_params(params, label_size, matmul_dtype):
    H = params["w_e2"].shape[0]
    L = label_size

    tril_r, tril_c = np.tril_indices(L, k=-1)        # row-major, matches torch
    diag_cols = np.arange(L) * (L + 1)               # diag of flattened [L, L]
    tril_cols = tril_r * L + tril_c

    zeros = lambda r, c: jnp.zeros((r, c), jnp.float32)

    # head layer 1: concat along the output dimension -> [H, 3H]
    w_h1 = jnp.concatenate([params["w_m1"], params["w_v1"], params["w_c1"]], axis=1)
    b_h1 = jnp.concatenate([params["b_m1"], params["b_v1"], params["b_c1"]], axis=1)

    # mean head layer 2 -> [3H, L]
    w_m2 = jnp.concatenate([params["w_m2"], zeros(2 * H, L)], axis=0)
    b_m2 = params["b_m2"]

    # tril head layer 2 -> [3H, L*L]: scatter var columns onto the diagonal and
    # corr columns onto the strict lower triangle of the flattened factor, so
    # scale_tril assembly happens inside the kernel's last matmul.
    w_v2 = zeros(H, L * L).at[:, diag_cols].set(params["w_v2"])
    w_c2 = zeros(H, L * L).at[:, tril_cols].set(params["w_c2"])
    w_t2 = jnp.concatenate([zeros(H, L * L), w_v2, w_c2], axis=0)
    b_t2 = (zeros(1, L * L).at[:, diag_cols].set(params["b_v2"])
            .at[:, tril_cols].set(params["b_c2"]))

    weights = [params["w_e1"], params["w_e2"], w_h1, w_m2, w_t2]
    biases = [params["b_e1"], params["b_e2"], b_h1, b_m2, b_t2]

    # Matmul operands may be bf16; bias-add / ReLU / softplus stay in f32.
    weights = [w.astype(matmul_dtype) for w in weights]
    biases = [b.astype(jnp.float32) for b in biases]

    return [weights[0], biases[0], weights[1], biases[1], weights[2], biases[2],
            weights[3], biases[3], weights[4], biases[4]]


# ---------------------------------------------------------------------------
# Capability probe: single-buffered grid-invariant inputs (pl.Buffered(1))
# ---------------------------------------------------------------------------
@functools.lru_cache(maxsize=None)
def _single_buffer_supported():
    """One-time probe compiling a tiny throwaway kernel, so the real kernel is
    never re-compiled and its genuine errors are never swallowed."""
    if not hasattr(pl, "Buffered"):
        return False

    def _probe(w_ref, o_ref):
        o_ref[...] = w_ref[...] + 1.0

    try:
        call = pl.pallas_call(
            _probe,
            out_shape=jax.ShapeDtypeStruct((8, 128), jnp.float32),
            grid_spec=pltpu.PrefetchScalarGridSpec(
                num_scalar_prefetch=0,
                grid=(1,),
                in_specs=[pl.BlockSpec((8, 128), lambda i: (0, 0),
                                       pipeline_mode=pl.Buffered(1))],
                out_specs=pl.BlockSpec((8, 128), lambda i: (0, 0))),
        )
        jax.jit(call).lower(jnp.zeros((8, 128), jnp.float32)).compile()
        return True
    except Exception:
        return False


# ---------------------------------------------------------------------------
# Forward wrapper
# ---------------------------------------------------------------------------
def deep_mvn_forward(x, params, label_size, *, batch_tile=512,
                     matmul_dtype=jnp.bfloat16):
    """Returns (loc, scale_tril) exactly as the torch module parameterizes the MVN."""
    B, in_dim = x.shape
    L = label_size
    H = params["w_e2"].shape[0]

    param_list = _pack_params(params, label_size, matmul_dtype)

    # --- batch tiling: big tiles amortize the ~0.35us/step overhead; shrink so
    #     small batches still give >=2 grid steps (megacore) and large batches
    #     keep >=8 steps of pipeline overlap.  No jnp.pad copy of x: the grid
    #     is ceil(B/bt) and the trailing partial block is masked by Pallas.
    bt = _round_up(max(16, min(batch_tile, _round_up(B, 16))), 16)
    while bt > 256 and -(-B // bt) < 8:
        bt //= 2
    bt = _round_up(bt, 16)
    grid = (-(-B // bt),)

    x_p = x.astype(matmul_dtype)      # bf16 halves the input DMA bytes

    single_buffer = _single_buffer_supported()

    # --- VMEM budget: actual need + headroom (not a blanket 48 MiB clamp) ---
    nbytes = lambda a: int(np.prod(a.shape)) * jnp.dtype(a.dtype).itemsize
    weight_bytes = sum(nbytes(p) for p in param_list)
    tile_bytes = bt * (in_dim * jnp.dtype(x_p.dtype).itemsize + (L + L * L) * 4)
    inter_bytes = 4 * bt * (4 * H + in_dim + 2 * (L + L * L))   # h, g, z, casts
    resident = ((1 if single_buffer else 2) * weight_bytes
                + 2 * tile_bytes + inter_bytes)
    # TODO(synk): before scaling hidden_size to >= ~1024, add a second grid
    # axis over the fused 3H dimension (VMEM f32 accumulator + pl.when
    # init/finalize) so weights are streamed instead of fully resident
    # (v7x VMEM = 64 MiB); the guard below trips before that regime.
    if resident > 40 * 2 ** 20:
        raise NotImplementedError(
            "hidden_size too large for the all-weights-resident kernel; "
            "tile the fused 3H dimension first.")
    vmem_limit = int(min(max(2 * resident + (4 << 20), 16 << 20), 48 << 20))

    def wspec(arr):
        nd = arr.ndim
        if single_buffer:   # grid-invariant weights: no need to double-buffer
            return pl.BlockSpec(arr.shape, lambda i: (0,) * nd,
                                pipeline_mode=pl.Buffered(1))
        return pl.BlockSpec(arr.shape, lambda i: (0,) * nd)

    in_specs = [pl.BlockSpec((bt, in_dim), lambda i: (i, 0))]
    in_specs += [wspec(p) for p in param_list]
    out_specs = [pl.BlockSpec((bt, L), lambda i: (i, 0)),
                 pl.BlockSpec((bt, L * L), lambda i: (i, 0))]
    out_shape = (jax.ShapeDtypeStruct((B, L), jnp.float32),
                 jax.ShapeDtypeStruct((B, L * L), jnp.float32))

    mean, tril_flat = pl.pallas_call(
        functools.partial(dmvn_kernel, label_size=label_size),
        out_shape=out_shape,
        grid_spec=pltpu.PrefetchScalarGridSpec(
            num_scalar_prefetch=0,
            grid=grid,
            in_specs=in_specs,
            out_specs=out_specs,
        ),
        compiler_params=pltpu.CompilerParams(
            dimension_semantics=("parallel",),
            vmem_limit_bytes=vmem_limit),
    )(x_p, *param_list)

    # TODO(synk): td.MultivariateNormal itself has no Pallas/JAX equivalent;
    # we return (loc, scale_tril) which fully parameterize it.
    return mean, tril_flat.reshape(B, L, L)


# ---------------------------------------------------------------------------
# Init + pure-JAX reference
# ---------------------------------------------------------------------------
def init_params(key, input_size, hidden_size, label_size):
    """PyTorch-style init: U(-1/sqrt(fan_in), 1/sqrt(fan_in)).
    Weights stored [in, out]; biases stored [1, out]."""
    corr_size = label_size * (label_size - 1) // 2
    layer_dims = {
        "e1": (input_size, hidden_size), "e2": (hidden_size, hidden_size),
        "m1": (hidden_size, hidden_size), "m2": (hidden_size, label_size),
        "v1": (hidden_size, hidden_size), "v2": (hidden_size, label_size),
        "c1": (hidden_size, hidden_size), "c2": (hidden_size, corr_size),
    }
    params = {}
    keys = jax.random.split(key, 2 * len(layer_dims))
    for idx, (name, (fan_in, fan_out)) in enumerate(layer_dims.items()):
        bound = 1.0 / math.sqrt(fan_in)
        params[f"w_{name}"] = jax.random.uniform(
            keys[2 * idx], (fan_in, fan_out), jnp.float32, -bound, bound)
        params[f"b_{name}"] = jax.random.uniform(
            keys[2 * idx + 1], (1, fan_out), jnp.float32, -bound, bound)
    return params


def _reference(x, p, label_size):
    relu = lambda t: jnp.maximum(t, 0.0)
    h = relu(x @ p["w_e1"] + p["b_e1"])
    h = relu(h @ p["w_e2"] + p["b_e2"])
    mean = relu(h @ p["w_m1"] + p["b_m1"]) @ p["w_m2"] + p["b_m2"]
    var = jax.nn.softplus(
        relu(h @ p["w_v1"] + p["b_v1"]) @ p["w_v2"] + p["b_v2"]) + JITTER
    corr = relu(h @ p["w_c1"] + p["b_c1"]) @ p["w_c2"] + p["b_c2"]
    tril_r, tril_c = jnp.tril_indices(label_size, k=-1)
    cov = var[:, :, None] * jnp.eye(label_size, dtype=var.dtype)
    cov = cov.at[:, tril_r, tril_c].set(corr)
    return mean, cov


if __name__ == "__main__":
    batch, input_size, hidden_size, label_size = 512, 32, 128, 4

    key = jax.random.PRNGKey(0)
    k_x, k_p = jax.random.split(key)
    x = jax.random.normal(k_x, (batch, input_size), dtype=jnp.float32)
    params = init_params(k_p, input_size, hidden_size, label_size)

    ref_loc, ref_tril = _reference(x, params, label_size)

    # bit-faithful f32 matmul path — tight tolerance vs the pure-JAX reference.
    loc, scale_tril = deep_mvn_forward(x, params, label_size,
                                       matmul_dtype=jnp.float32)
    loc, scale_tril = jax.block_until_ready((loc, scale_tril))
    np.testing.assert_allclose(np.asarray(loc), np.asarray(ref_loc),
                               rtol=2e-4, atol=2e-4)
    np.testing.assert_allclose(np.asarray(scale_tril), np.asarray(ref_tril),
                               rtol=2e-4, atol=2e-4)

    # default path: bf16 matmul operands (MXU-native on v6e/v7x, byte savings
    # on v5e) — loose tolerance.
    loc16, tril16 = deep_mvn_forward(x, params, label_size)
    loc16, tril16 = jax.block_until_ready((loc16, tril16))
    np.testing.assert_allclose(np.asarray(loc16), np.asarray(ref_loc),
                               rtol=0.15, atol=0.25)
    np.testing.assert_allclose(np.asarray(tril16), np.asarray(ref_tril),
                               rtol=0.15, atol=0.25)

    # ragged batch: exercises the masked trailing block (no jnp.pad copy of x).
    xr = x[:70]
    ref_loc_r, ref_tril_r = _reference(xr, params, label_size)
    loc_r, tril_r = deep_mvn_forward(xr, params, label_size,
                                     matmul_dtype=jnp.float32)
    loc_r, tril_r = jax.block_until_ready((loc_r, tril_r))
    np.testing.assert_allclose(np.asarray(loc_r), np.asarray(ref_loc_r),
                               rtol=2e-4, atol=2e-4)
    np.testing.assert_allclose(np.asarray(tril_r), np.asarray(ref_tril_r),
                               rtol=2e-4, atol=2e-4)

    print("KERNEL_OK")
</pallas_src>

<mosaic_0001>
module attributes {stable_mosaic.version = 11 : i64} {
  func.func @dmvn_kernel(%arg0: i32, %arg1: memref<256x32xf32, #tpu.memory_space<vmem>>, %arg2: memref<32x128xf32, #tpu.memory_space<vmem>>, %arg3: memref<1x128xf32, #tpu.memory_space<vmem>>, %arg4: memref<128x128xf32, #tpu.memory_space<vmem>>, %arg5: memref<1x128xf32, #tpu.memory_space<vmem>>, %arg6: memref<128x384xf32, #tpu.memory_space<vmem>>, %arg7: memref<1x384xf32, #tpu.memory_space<vmem>>, %arg8: memref<384x4xf32, #tpu.memory_space<vmem>>, %arg9: memref<1x4xf32, #tpu.memory_space<vmem>>, %arg10: memref<384x16xf32, #tpu.memory_space<vmem>>, %arg11: memref<1x16xf32, #tpu.memory_space<vmem>>, %arg12: memref<256x4xf32, #tpu.memory_space<vmem>>, %arg13: memref<256x16xf32, #tpu.memory_space<vmem>>) attributes {dimension_semantics = [#tpu.dimension_semantics<parallel>], iteration_bounds = array<i64: 2>, scalar_prefetch = 0 : i64, scratch_operands = 0 : i64, tpu.core_type = #tpu.core_type<tc>, window_params = [{transform_indices = @transform_0, window_bounds = array<i64: 256, 32>}, {pipeline_mode = #tpu.pipeline_mode<synchronous>, transform_indices = @transform_1, window_bounds = array<i64: 32, 128>}, {pipeline_mode = #tpu.pipeline_mode<synchronous>, transform_indices = @transform_2, window_bounds = array<i64: 1, 128>}, {pipeline_mode = #tpu.pipeline_mode<synchronous>, transform_indices = @transform_3, window_bounds = array<i64: 128, 128>}, {pipeline_mode = #tpu.pipeline_mode<synchronous>, transform_indices = @transform_4, window_bounds = array<i64: 1, 128>}, {pipeline_mode = #tpu.pipeline_mode<synchronous>, transform_indices = @transform_5, window_bounds = array<i64: 128, 384>}, {pipeline_mode = #tpu.pipeline_mode<synchronous>, transform_indices = @transform_6, window_bounds = array<i64: 1, 384>}, {pipeline_mode = #tpu.pipeline_mode<synchronous>, transform_indices = @transform_7, window_bounds = array<i64: 384, 4>}, {pipeline_mode = #tpu.pipeline_mode<synchronous>, transform_indices = @transform_8, window_bounds = array<i64: 1, 4>}, {pipeline_mode = #tpu.pipeline_mode<synchronous>, transform_indices = @transform_9, window_bounds = array<i64: 384, 16>}, {pipeline_mode = #tpu.pipeline_mode<synchronous>, transform_indices = @transform_10, window_bounds = array<i64: 1, 16>}, {transform_indices = @transform_11, window_bounds = array<i64: 256, 4>}, {transform_indices = @transform_12, window_bounds = array<i64: 256, 16>}]} {
    %c0 = arith.constant 0 : index
    %c0_0 = arith.constant 0 : index
    %0 = vector.load %arg1[%c0, %c0_0] : memref<256x32xf32, #tpu.memory_space<vmem>>, vector<256x32xf32>
    %c0_1 = arith.constant 0 : index
    %c0_2 = arith.constant 0 : index
    %1 = vector.load %arg2[%c0_1, %c0_2] : memref<32x128xf32, #tpu.memory_space<vmem>>, vector<32x128xf32>
    %cst = arith.constant dense<0.000000e+00> : vector<256x128xf32>
    %2 = tpu.matmul %0, %1, %cst {dimension_numbers = #tpu.dot_dimension_numbers<[1], [0], [0], [1], [0, 0, 1, 1], [], []>} : vector<256x32xf32>, vector<32x128xf32>, vector<256x128xf32> -> vector<256x128xf32>
    %c0_3 = arith.constant 0 : index
    %c0_4 = arith.constant 0 : index
    %3 = vector.load %arg3[%c0_3, %c0_4] : memref<1x128xf32, #tpu.memory_space<vmem>>, vector<1x128xf32>
    %4 = vector.broadcast %3 : vector<1x128xf32> to vector<256x128xf32>
    %5 = arith.addf %2, %4 : vector<256x128xf32>
    %cst_5 = arith.constant 0.000000e+00 : f32
    %6 = vector.broadcast %cst_5 : f32 to vector<256x128xf32>
    %7 = arith.maximumf %5, %6 : vector<256x128xf32>
    %c0_6 = arith.constant 0 : index
    %c0_7 = arith.constant 0 : index
    %8 = vector.load %arg4[%c0_6, %c0_7] : memref<128x128xf32, #tpu.memory_space<vmem>>, vector<128x128xf32>
    %cst_8 = arith.constant dense<0.000000e+00> : vector<256x128xf32>
    %9 = tpu.matmul %7, %8, %cst_8 {dimension_numbers = #tpu.dot_dimension_numbers<[1], [0], [0], [1], [0, 0, 1, 1], [], []>} : vector<256x128xf32>, vector<128x128xf32>, vector<256x128xf32> -> vector<256x128xf32>
    %c0_9 = arith.constant 0 : index
    %c0_10 = arith.constant 0 : index
    %10 = vector.load %arg5[%c0_9, %c0_10] : memref<1x128xf32, #tpu.memory_space<vmem>>, vector<1x128xf32>
    %11 = vector.broadcast %10 : vector<1x128xf32> to vector<256x128xf32>
    %12 = arith.addf %9, %11 : vector<256x128xf32>
    %cst_11 = arith.constant 0.000000e+00 : f32
    %13 = vector.broadcast %cst_11 : f32 to vector<256x128xf32>
    %14 = arith.maximumf %12, %13 : vector<256x128xf32>
    %c0_12 = arith.constant 0 : index
    %c0_13 = arith.constant 0 : index
    %15 = vector.load %arg6[%c0_12, %c0_13] : memref<128x384xf32, #tpu.memory_space<vmem>>, vector<128x384xf32>
    %cst_14 = arith.constant dense<0.000000e+00> : vector<256x384xf32>
    %16 = tpu.matmul %14, %15, %cst_14 {dimension_numbers = #tpu.dot_dimension_numbers<[1], [0], [0], [1], [0, 0, 1, 1], [], []>} : vector<256x128xf32>, vector<128x384xf32>, vector<256x384xf32> -> vector<256x384xf32>
    %c0_15 = arith.constant 0 : index
    %c0_16 = arith.constant 0 : index
    %17 = vector.load %arg7[%c0_15, %c0_16] : memref<1x384xf32, #tpu.memory_space<vmem>>, vector<1x384xf32>
    %18 = vector.broadcast %17 : vector<1x384xf32> to vector<256x384xf32>
    %19 = arith.addf %16, %18 : vector<256x384xf32>
    %cst_17 = arith.constant 0.000000e+00 : f32
    %20 = vector.broadcast %cst_17 : f32 to vector<256x384xf32>
    %21 = arith.maximumf %19, %20 : vector<256x384xf32>
    %c0_18 = arith.constant 0 : index
    %c0_19 = arith.constant 0 : index
    %22 = vector.load %arg8[%c0_18, %c0_19] : memref<384x4xf32, #tpu.memory_space<vmem>>, vector<384x4xf32>
    %cst_20 = arith.constant dense<0.000000e+00> : vector<256x4xf32>
    %23 = tpu.matmul %21, %22, %cst_20 {dimension_numbers = #tpu.dot_dimension_numbers<[1], [0], [0], [1], [0, 0, 1, 1], [], []>} : vector<256x384xf32>, vector<384x4xf32>, vector<256x4xf32> -> vector<256x4xf32>
    %c0_21 = arith.constant 0 : index
    %c0_22 = arith.constant 0 : index
    %24 = vector.load %arg9[%c0_21, %c0_22] : memref<1x4xf32, #tpu.memory_space<vmem>>, vector<1x4xf32>
    %25 = vector.broadcast %24 : vector<1x4xf32> to vector<256x4xf32>
    %26 = arith.addf %23, %25 : vector<256x4xf32>
    %c0_23 = arith.constant 0 : index
    %c0_24 = arith.constant 0 : index
    %27 = vector.load %arg12[%c0_23, %c0_24] : memref<256x4xf32, #tpu.memory_space<vmem>>, vector<256x4xf32>
    tpu.vector_store %arg12[%c0_23, %c0_24], %26 {strides = array<i32>} : memref<256x4xf32, #tpu.memory_space<vmem>>, vector<256x4xf32>,
    %c0_25 = arith.constant 0 : index
    %c0_26 = arith.constant 0 : index
    %28 = vector.load %arg10[%c0_25, %c0_26] : memref<384x16xf32, #tpu.memory_space<vmem>>, vector<384x16xf32>
    %cst_27 = arith.constant dense<0.000000e+00> : vector<256x16xf32>
    %29 = tpu.matmul %21, %28, %cst_27 {dimension_numbers = #tpu.dot_dimension_numbers<[1], [0], [0], [1], [0, 0, 1, 1], [], []>} : vector<256x384xf32>, vector<384x16xf32>, vector<256x16xf32> -> vector<256x16xf32>
    %c0_28 = arith.constant 0 : index
    %c0_29 = arith.constant 0 : index
    %30 = vector.load %arg11[%c0_28, %c0_29] : memref<1x16xf32, #tpu.memory_space<vmem>>, vector<1x16xf32>
    %31 = vector.broadcast %30 : vector<1x16xf32> to vector<256x16xf32>
    %32 = arith.addf %29, %31 : vector<256x16xf32>
    %33 = tpu.iota {dimensions = array<i32: 1>} : vector<256x16xi32>
    %c5_i32 = arith.constant 5 : i32
    %c0_i32 = arith.constant 0 : i32
    %34 = arith.cmpi eq, %c5_i32, %c0_i32 : i32
    %c1_i32 = arith.constant 1 : i32
    %35 = arith.select %34, %c1_i32, %c5_i32 : i32
    %36 = vector.broadcast %35 : i32 to vector<256x16xi32>
    %37 = arith.remsi %33, %36 : vector<256x16xi32>
    %c0_i32_30 = arith.constant 0 : i32
    %38 = vector.broadcast %c0_i32_30 : i32 to vector<256x16xi32>
    %39 = arith.cmpi ne, %37, %38 : vector<256x16xi32>
    %c0_i32_31 = arith.constant 0 : i32
    %40 = vector.broadcast %c0_i32_31 : i32 to vector<256x16xi32>
    %41 = arith.cmpi slt, %37, %40 : vector<256x16xi32>
    %c0_i32_32 = arith.constant 0 : i32
    %42 = arith.cmpi slt, %35, %c0_i32_32 : i32
    %43 = vector.broadcast %42 : i1 to vector<256x16xi1>
    %44 = vector.broadcast %43 : vector<256x16xi1> to vector<256x16xi1>
    %45 = arith.xori %41, %44 : vector<256x16xi1>
    %46 = arith.andi %45, %39 : vector<256x16xi1>
    %47 = vector.broadcast %35 : i32 to vector<256x16xi32>
    %48 = arith.addi %37, %47 : vector<256x16xi32>
    %49 = arith.select %46, %48, %37 : vector<256x16xi1>, vector<256x16xi32>
    %c0_i32_33 = arith.constant 0 : i32
    %50 = vector.broadcast %c0_i32_33 : i32 to vector<256x16xi32>
    %51 = arith.cmpi eq, %49, %50 : vector<256x16xi32>
    %cst_34 = arith.constant 0.000000e+00 : f32
    %52 = vector.broadcast %cst_34 : f32 to vector<256x16xf32>
    %53 = arith.maximumf %32, %52 : vector<256x16xf32>
    %54 = math.absf %32 : vector<256x16xf32>
    %cst_35 = arith.constant 0.000000e+00 : f32
    %55 = vector.broadcast %cst_35 : f32 to vector<256x16xf32>
    %56 = arith.subf %55, %54 : vector<256x16xf32>
    %57 = math.exp %56 : vector<256x16xf32>
    %58 = math.log1p %57 : vector<256x16xf32>
    %59 = arith.addf %53, %58 : vector<256x16xf32>
    %cst_36 = arith.constant 9.99999997E-7 : f32
    %60 = vector.broadcast %cst_36 : f32 to vector<256x16xf32>
    %61 = arith.addf %59, %60 : vector<256x16xf32>
    %62 = arith.select %51, %61, %32 : vector<256x16xi1>, vector<256x16xf32>
    %c0_37 = arith.constant 0 : index
    %c0_38 = arith.constant 0 : index
    %63 = vector.load %arg13[%c0_37, %c0_38] : memref<256x16xf32, #tpu.memory_space<vmem>>, vector<256x16xf32>
    tpu.vector_store %arg13[%c0_37, %c0_38], %62 {strides = array<i32>} : memref<256x16xf32, #tpu.memory_space<vmem>>, vector<256x16xf32>,
    return
  }
  func.func @transform_0(%arg0: i32) -> (i32, i32) {
    %c0_i32 = arith.constant 0 : i32
    %c0_i32_0 = arith.constant 0 : i32
    return %arg0, %c0_i32 : i32, i32
  }
  func.func @transform_1(%arg0: i32) -> (i32, i32) {
    %c0_i32 = arith.constant 0 : i32
    %c0_i32_0 = arith.constant 0 : i32
    %c0_i32_1 = arith.constant 0 : i32
    return %c0_i32, %c0_i32_0 : i32, i32
  }
  func.func @transform_2(%arg0: i32) -> (i32, i32) {
    %c0_i32 = arith.constant 0 : i32
    %c0_i32_0 = arith.constant 0 : i32
    %c0_i32_1 = arith.constant 0 : i32
    return %c0_i32, %c0_i32_0 : i32, i32
  }
  func.func @transform_3(%arg0: i32) -> (i32, i32) {
    %c0_i32 = arith.constant 0 : i32
    %c0_i32_0 = arith.constant 0 : i32
    %c0_i32_1 = arith.constant 0 : i32
    return %c0_i32, %c0_i32_0 : i32, i32
  }
  func.func @transform_4(%arg0: i32) -> (i32, i32) {
    %c0_i32 = arith.constant 0 : i32
    %c0_i32_0 = arith.constant 0 : i32
    %c0_i32_1 = arith.constant 0 : i32
    return %c0_i32, %c0_i32_0 : i32, i32
  }
  func.func @transform_5(%arg0: i32) -> (i32, i32) {
    %c0_i32 = arith.constant 0 : i32
    %c0_i32_0 = arith.constant 0 : i32
    %c0_i32_1 = arith.constant 0 : i32
    return %c0_i32, %c0_i32_0 : i32, i32
  }
  func.func @transform_6(%arg0: i32) -> (i32, i32) {
    %c0_i32 = arith.constant 0 : i32
    %c0_i32_0 = arith.constant 0 : i32
    %c0_i32_1 = arith.constant 0 : i32
    return %c0_i32, %c0_i32_0 : i32, i32
  }
  func.func @transform_7(%arg0: i32) -> (i32, i32) {
    %c0_i32 = arith.constant 0 : i32
    %c0_i32_0 = arith.constant 0 : i32
    %c0_i32_1 = arith.constant 0 : i32
    return %c0_i32, %c0_i32_0 : i32, i32
  }
  func.func @transform_8(%arg0: i32) -> (i32, i32) {
    %c0_i32 = arith.constant 0 : i32
    %c0_i32_0 = arith.constant 0 : i32
    %c0_i32_1 = arith.constant 0 : i32
    return %c0_i32, %c0_i32_0 : i32, i32
  }
  func.func @transform_9(%arg0: i32) -> (i32, i32) {
    %c0_i32 = arith.constant 0 : i32
    %c0_i32_0 = arith.constant 0 : i32
    %c0_i32_1 = arith.constant 0 : i32
    return %c0_i32, %c0_i32_0 : i32, i32
  }
  func.func @transform_10(%arg0: i32) -> (i32, i32) {
    %c0_i32 = arith.constant 0 : i32
    %c0_i32_0 = arith.constant 0 : i32
    %c0_i32_1 = arith.constant 0 : i32
    return %c0_i32, %c0_i32_0 : i32, i32
  }
  func.func @transform_11(%arg0: i32) -> (i32, i32) {
    %c0_i32 = arith.constant 0 : i32
    %c0_i32_0 = arith.constant 0 : i32
    return %arg0, %c0_i32 : i32, i32
  }
  func.func @transform_12(%arg0: i32) -> (i32, i32) {
    %c0_i32 = arith.constant 0 : i32
    %c0_i32_0 = arith.constant 0 : i32
    return %arg0, %c0_i32 : i32, i32
  }
}

</mosaic_0001>

<llo_original>
// kernel: tpu_custom_call.1
$region0: #{tpu_custom_call.1}
  #allocation0 [shape = 'u32[]', space=smem, size = 0x4, offset = 0x4, fixed_abs, tag = 'smem constant byte address 0x4 - core index']
  #allocation1 [shape = 'u32[144,128]{1,0:T(1,128)}', space=vmem, size = 0x12000, scoped, tag = 'internal scratch']
  %s0 = inlined_call_operand.vmem [shape: f32[512,32], index: 0, kind: input, shape index: {}]
  %s1 = inlined_call_operand.vmem [shape: f32[32,128], index: 1, kind: input, shape index: {}]
  %s2 = inlined_call_operand.vmem [shape: f32[1,128], index: 2, kind: input, shape index: {}]
  %s3 = inlined_call_operand.vmem [shape: f32[128,128], index: 3, kind: input, shape index: {}]
  %s4 = inlined_call_operand.vmem [shape: f32[1,128], index: 4, kind: input, shape index: {}]
  %s5 = inlined_call_operand.vmem [shape: f32[128,384], index: 5, kind: input, shape index: {}]
  %s6 = inlined_call_operand.vmem [shape: f32[1,384], index: 6, kind: input, shape index: {}]
  %s7 = inlined_call_operand.vmem [shape: f32[384,4], index: 7, kind: input, shape index: {}]
  %s8 = inlined_call_operand.vmem [shape: f32[1,4], index: 8, kind: input, shape index: {}]
  %s9 = inlined_call_operand.vmem [shape: f32[384,16], index: 9, kind: input, shape index: {}]
  %s10 = inlined_call_operand.vmem [shape: f32[1,16], index: 10, kind: input, shape index: {}]
  %s11 = inlined_call_operand.vmem [shape: f32[512,4], index: 11, kind: output, shape index: {0}]
  %s12 = inlined_call_operand.vmem [shape: f32[512,16], index: 12, kind: output, shape index: {1}]
  %13 = xla_tuple %s11, %s12
  %s14 = sld [smem:[#allocation0]]
  $region85: #{tpu_custom_call.1} parent=0
    _
  %s16 = ssub.s32 1, %s14
  %s17 = scalar_select 0, %s16, %s14
  loop: start=0, step=1, limit=4
  $region2: #{tpu_custom_call.1} parent=0 // loop_pre_header
    _
  $region3: #{tpu_custom_call.1} parent=0 // loop_header
    %s19 = sphi 0, %s23
    %p20 = scmp.ge.s32.totalorder %s19, 4
    %s29 = sphi 0, %s31
    %s32 = sphi 0, %s29
    %s33 = sphi 0, %s32
    %s49 = sphi 0, %s33
    %s53 = sphi 0, %s53
    %s55 = sphi 0, %s53
    %s56 = sphi 0, %s55
    %s70 = sphi 0, %s56
    %s74 = sphi 0, %s74
    %s76 = sphi 0, %s74
    %s77 = sphi 0, %s76
    %s91 = sphi 0, %s77
    %s95 = sphi 0, %s95
    %s97 = sphi 0, %s95
    %s98 = sphi 0, %s97
    %s112 = sphi 0, %s98
    %s116 = sphi 0, %s116
    %s118 = sphi 0, %s116
    %s119 = sphi 0, %s118
    %s133 = sphi 0, %s119
    %s137 = sphi 0, %s137
    %s139 = sphi 0, %s137
    %s140 = sphi 0, %s139
    %s154 = sphi 0, %s140
    %s158 = sphi 0, %s158
    %s160 = sphi 0, %s158
    %s161 = sphi 0, %s160
    %s175 = sphi 0, %s161
    %s179 = sphi 0, %s179
    %s181 = sphi 0, %s179
    %s182 = sphi 0, %s181
    %s196 = sphi 0, %s182
    %s200 = sphi 0, %s200
    %s202 = sphi 0, %s200
    %s203 = sphi 0, %s202
    %s217 = sphi 0, %s203
    %s221 = sphi 0, %s221
    %s223 = sphi 0, %s221
    %s224 = sphi 0, %s223
    %s238 = sphi 0, %s224
    %s242 = sphi 0, %s242
    %s244 = sphi 0, %s242
    %s245 = sphi 0, %s244
    %s259 = sphi 0, %s245
    %s265 = sphi 0, %s267
    %s268 = sphi 0, %s265
    %s269 = sphi 0, %s268
    %s285 = sphi 0, %s269
    %s291 = sphi 0, %s293
    %s294 = sphi 0, %s291
    %s295 = sphi 0, %s294
    %s311 = sphi 0, %s295
  $region4: #{tpu_custom_call.1} parent=0 // loop_header_branch
    %22 = sbr.rel (%p20) target = $region8
  $region5: #{tpu_custom_call.1} parent=0 // loop_body
    %s24 = ssub.s32 %s19, 1
    %s25 = ssub.s32 %s19, 2
    %s26 = sadd.s32 %s19, 1
    %s27 = ssub.s32 %s19, %s26
    %p28 = scmp.eq.s32.totalorder %s27, 0
    %s30 = sadd.s32 %s29, 1
    %s31 = scalar_select %p28, %s29, %s30
    %p34 = pneg %p28
    %p35 = scmp.eq.s32.totalorder %s19, 1
    %p36 = por %p34, %p35
    %p37 = scmp.ne.s32.totalorder %s29, %s32
    %p38 = scmp.eq.s32.totalorder %s19, 0
    %p39 = por %p37, %p38
    %p40 = scmp.ne.s32.totalorder %s29, %s32
    %p41 = scmp.eq.s32.totalorder %s24, 1
    %p42 = por %p40, %p41
    %p43 = scmp.ne.s32.totalorder %s32, %s33
    %p44 = scmp.eq.s32.totalorder %s24, 0
    %p45 = por %p43, %p44
    %p46 = scmp.ne.s32.totalorder %s32, %s33
    %p47 = scmp.eq.s32.totalorder %s25, 1
    %p48 = por %p46, %p47
    %p50 = scmp.ne.s32.totalorder %s33, %s49
    %p51 = scmp.eq.s32.totalorder %s25, 0
    %p52 = por %p50, %p51
    %s54 = sadd.s32 %s53, 1
    %p57 = scmp.eq.s32.totalorder %s19, 1
    %p58 = scmp.ne.s32.totalorder %s53, %s55
    %p59 = scmp.eq.s32.totalorder %s19, 0
    %p60 = por %p58, %p59
    %p61 = scmp.ne.s32.totalorder %s53, %s55
    %p62 = scmp.eq.s32.totalorder %s24, 1
    %p63 = por %p61, %p62
    %p64 = scmp.ne.s32.totalorder %s55, %s56
    %p65 = scmp.eq.s32.totalorder %s24, 0
    %p66 = por %p64, %p65
    %p67 = scmp.ne.s32.totalorder %s55, %s56
    %p68 = scmp.eq.s32.totalorder %s25, 1
    %p69 = por %p67, %p68
    %p71 = scmp.ne.s32.totalorder %s56, %s70
    %p72 = scmp.eq.s32.totalorder %s25, 0
    %p73 = por %p71, %p72
    %s75 = sadd.s32 %s74, 1
    %p78 = scmp.eq.s32.totalorder %s19, 1
    %p79 = scmp.ne.s32.totalorder %s74, %s76
    %p80 = scmp.eq.s32.totalorder %s19, 0
    %p81 = por %p79, %p80
    %p82 = scmp.ne.s32.totalorder %s74, %s76
    %p83 = scmp.eq.s32.totalorder %s24, 1
    %p84 = por %p82, %p83
    %p85 = scmp.ne.s32.totalorder %s76, %s77
    %p86 = scmp.eq.s32.totalorder %s24, 0
    %p87 = por %p85, %p86
    %p88 = scmp.ne.s32.totalorder %s76, %s77
    %p89 = scmp.eq.s32.totalorder %s25, 1
    %p90 = por %p88, %p89
    %p92 = scmp.ne.s32.totalorder %s77, %s91
    %p93 = scmp.eq.s32.totalorder %s25, 0
    %p94 = por %p92, %p93
    %s96 = sadd.s32 %s95, 1
    %p99 = scmp.eq.s32.totalorder %s19, 1
    %p100 = scmp.ne.s32.totalorder %s95, %s97
    %p101 = scmp.eq.s32.totalorder %s19, 0
    %p102 = por %p100, %p101
    %p103 = scmp.ne.s32.totalorder %s95, %s97
    %p104 = scmp.eq.s32.totalorder %s24, 1
    %p105 = por %p103, %p104
    %p106 = scmp.ne.s32.totalorder %s97, %s98
    %p107 = scmp.eq.s32.totalorder %s24, 0
    %p108 = por %p106, %p107
    %p109 = scmp.ne.s32.totalorder %s97, %s98
    %p110 = scmp.eq.s32.totalorder %s25, 1
    %p111 = por %p109, %p110
    %p113 = scmp.ne.s32.totalorder %s98, %s112
    %p114 = scmp.eq.s32.totalorder %s25, 0
    %p115 = por %p113, %p114
    %s117 = sadd.s32 %s116, 1
    %p120 = scmp.eq.s32.totalorder %s19, 1
    %p121 = scmp.ne.s32.totalorder %s116, %s118
    %p122 = scmp.eq.s32.totalorder %s19, 0
    %p123 = por %p121, %p122
    %p124 = scmp.ne.s32.totalorder %s116, %s118
    %p125 = scmp.eq.s32.totalorder %s24, 1
    %p126 = por %p124, %p125
    %p127 = scmp.ne.s32.totalorder %s118, %s119
    %p128 = scmp.eq.s32.totalorder %s24, 0
    %p129 = por %p127, %p128
    %p130 = scmp.ne.s32.totalorder %s118, %s119
    %p131 = scmp.eq.s32.totalorder %s25, 1
    %p132 = por %p130, %p131
    %p134 = scmp.ne.s32.totalorder %s119, %s133
    %p135 = scmp.eq.s32.totalorder %s25, 0
    %p136 = por %p134, %p135
    %s138 = sadd.s32 %s137, 1
    %p141 = scmp.eq.s32.totalorder %s19, 1
    %p142 = scmp.ne.s32.totalorder %s137, %s139
    %p143 = scmp.eq.s32.totalorder %s19, 0
    %p144 = por %p142, %p143
    %p145 = scmp.ne.s32.totalorder %s137, %s139
    %p146 = scmp.eq.s32.totalorder %s24, 1
    %p147 = por %p145, %p146
    %p148 = scmp.ne.s32.totalorder %s139, %s140
    %p149 = scmp.eq.s32.totalorder %s24, 0
    %p150 = por %p148, %p149
    %p151 = scmp.ne.s32.totalorder %s139, %s140
    %p152 = scmp.eq.s32.totalorder %s25, 1
    %p153 = por %p151, %p152
    %p155 = scmp.ne.s32.totalorder %s140, %s154
    %p156 = scmp.eq.s32.totalorder %s25, 0
    %p157 = por %p155, %p156
    %s159 = sadd.s32 %s158, 1
    %p162 = scmp.eq.s32.totalorder %s19, 1
    %p163 = scmp.ne.s32.totalorder %s158, %s160
    %p164 = scmp.eq.s32.totalorder %s19, 0
    %p165 = por %p163, %p164
    %p166 = scmp.ne.s32.totalorder %s158, %s160
    %p167 = scmp.eq.s32.totalorder %s24, 1
    %p168 = por %p166, %p167
    %p169 = scmp.ne.s32.totalorder %s160, %s161
    %p170 = scmp.eq.s32.totalorder %s24, 0
    %p171 = por %p169, %p170
    %p172 = scmp.ne.s32.totalorder %s160, %s161
    %p173 = scmp.eq.s32.totalorder %s25, 1
    %p174 = por %p172, %p173
    %p176 = scmp.ne.s32.totalorder %s161, %s175
    %p177 = scmp.eq.s32.totalorder %s25, 0
    %p178 = por %p176, %p177
    %s180 = sadd.s32 %s179, 1
    %p183 = scmp.eq.s32.totalorder %s19, 1
    %p184 = scmp.ne.s32.totalorder %s179, %s181
    %p185 = scmp.eq.s32.totalorder %s19, 0
    %p186 = por %p184, %p185
    %p187 = scmp.ne.s32.totalorder %s179, %s181
    %p188 = scmp.eq.s32.totalorder %s24, 1
    %p189 = por %p187, %p188
    %p190 = scmp.ne.s32.totalorder %s181, %s182
    %p191 = scmp.eq.s32.totalorder %s24, 0
    %p192 = por %p190, %p191
    %p193 = scmp.ne.s32.totalorder %s181, %s182
    %p194 = scmp.eq.s32.totalorder %s25, 1
    %p195 = por %p193, %p194
    %p197 = scmp.ne.s32.totalorder %s182, %s196
    %p198 = scmp.eq.s32.totalorder %s25, 0
    %p199 = por %p197, %p198
    %s201 = sadd.s32 %s200, 1
    %p204 = scmp.eq.s32.totalorder %s19, 1
    %p205 = scmp.ne.s32.totalorder %s200, %s202
    %p206 = scmp.eq.s32.totalorder %s19, 0
    %p207 = por %p205, %p206
    %p208 = scmp.ne.s32.totalorder %s200, %s202
    %p209 = scmp.eq.s32.totalorder %s24, 1
    %p210 = por %p208, %p209
    %p211 = scmp.ne.s32.totalorder %s202, %s203
    %p212 = scmp.eq.s32.totalorder %s24, 0
    %p213 = por %p211, %p212
    %p214 = scmp.ne.s32.totalorder %s202, %s203
    %p215 = scmp.eq.s32.totalorder %s25, 1
    %p216 = por %p214, %p215
    %p218 = scmp.ne.s32.totalorder %s203, %s217
    %p219 = scmp.eq.s32.totalorder %s25, 0
    %p220 = por %p218, %p219
    %s222 = sadd.s32 %s221, 1
    %p225 = scmp.eq.s32.totalorder %s19, 1
    %p226 = scmp.ne.s32.totalorder %s221, %s223
    %p227 = scmp.eq.s32.totalorder %s19, 0
    %p228 = por %p226, %p227
    %p229 = scmp.ne.s32.totalorder %s221, %s223
    %p230 = scmp.eq.s32.totalorder %s24, 1
    %p231 = por %p229, %p230
    %p232 = scmp.ne.s32.totalorder %s223, %s224
    %p233 = scmp.eq.s32.totalorder %s24, 0
    %p234 = por %p232, %p233
    %p235 = scmp.ne.s32.totalorder %s223, %s224
    %p236 = scmp.eq.s32.totalorder %s25, 1
    %p237 = por %p235, %p236
    %p239 = scmp.ne.s32.totalorder %s224, %s238
    %p240 = scmp.eq.s32.totalorder %s25, 0
    %p241 = por %p239, %p240
    %s243 = sadd.s32 %s242, 1
    %p246 = scmp.eq.s32.totalorder %s19, 1
    %p247 = scmp.ne.s32.totalorder %s242, %s244
    %p248 = scmp.eq.s32.totalorder %s19, 0
    %p249 = por %p247, %p248
    %p250 = scmp.ne.s32.totalorder %s242, %s244
    %p251 = scmp.eq.s32.totalorder %s24, 1
    %p252 = por %p250, %p251
    %p253 = scmp.ne.s32.totalorder %s244, %s245
    %p254 = scmp.eq.s32.totalorder %s24, 0
    %p255 = por %p253, %p254
    %p256 = scmp.ne.s32.totalorder %s244, %s245
    %p257 = scmp.eq.s32.totalorder %s25, 1
    %p258 = por %p256, %p257
    %p260 = scmp.ne.s32.totalorder %s245, %s259
    %p261 = scmp.eq.s32.totalorder %s25, 0
    %p262 = por %p260, %p261
    %s263 = ssub.s32 %s19, %s26
    %p264 = scmp.eq.s32.totalorder %s263, 0
    %s266 = sadd.s32 %s265, 1
    %s267 = scalar_select %p264, %s265, %s266
    %p270 = pneg %p264
    %p271 = scmp.eq.s32.totalorder %s19, 1
    %p272 = por %p270, %p271
    %p273 = scmp.ne.s32.totalorder %s265, %s268
    %p274 = scmp.eq.s32.totalorder %s19, 0
    %p275 = por %p273, %p274
    %p276 = scmp.ne.s32.totalorder %s265, %s268
    %p277 = scmp.eq.s32.totalorder %s24, 1
    %p278 = por %p276, %p277
    %p279 = scmp.ne.s32.totalorder %s268, %s269
    %p280 = scmp.eq.s32.totalorder %s24, 0
    %p281 = por %p279, %p280
    %p282 = scmp.ne.s32.totalorder %s268, %s269
    %p283 = scmp.eq.s32.totalorder %s25, 1
    %p284 = por %p282, %p283
    %p286 = scmp.ne.s32.totalorder %s269, %s285
    %p287 = scmp.eq.s32.totalorder %s25, 0
    %p288 = por %p286, %p287
    %s289 = ssub.s32 %s19, %s26
    %p290 = scmp.eq.s32.totalorder %s289, 0
    %s292 = sadd.s32 %s291, 1
    %s293 = scalar_select %p290, %s291, %s292
    %p296 = pneg %p290
    %p297 = scmp.eq.s32.totalorder %s19, 1
    %p298 = por %p296, %p297
    %p299 = scmp.ne.s32.totalorder %s291, %s294
    %p300 = scmp.eq.s32.totalorder %s19, 0
    %p301 = por %p299, %p300
    %p302 = scmp.ne.s32.totalorder %s291, %s294
    %p303 = scmp.eq.s32.totalorder %s24, 1
    %p304 = por %p302, %p303
    %p305 = scmp.ne.s32.totalorder %s294, %s295
    %p306 = scmp.eq.s32.totalorder %s24, 0
    %p307 = por %p305, %p306
    %p308 = scmp.ne.s32.totalorder %s294, %s295
    %p309 = scmp.eq.s32.totalorder %s25, 1
    %p310 = por %p308, %p309
    %p312 = scmp.ne.s32.totalorder %s295, %s311
    %p313 = scmp.eq.s32.totalorder %s25, 0
    %p314 = por %p312, %p313
    %p315 = scmp.le.s32.totalorder 1, %s19
    %p316 = scmp.lt.s32.totalorder %s19, 3
    %p317 = pnand %p315, %p316
    %p318 = pneg %p317
    // Predicated region
    $region9: #{tpu_custom_call.1} parent=5 // pred_check
      _
    $region10: #{tpu_custom_call.1} parent=5 // pred_check_branch
      %320 = sbr.rel (%p317) target = $region12
    $region11: #{tpu_custom_call.1} parent=5 // pred_region
      %s321 = ssub.s32 %s19, 1
      // Predicated region
      $region13: #{tpu_custom_call.1} parent=11 // pred_check
        %p322 = pneg %p66
      $region14: #{tpu_custom_call.1} parent=11 // pred_check_branch
        %324 = sbr.rel (%p322) target = $region16
      $region15: #{tpu_custom_call.1} parent=11 // pred_region
        _
      $region16: #{tpu_custom_call.1} parent=11 // pred_fallthru
        _
      // Predicated region
      $region17: #{tpu_custom_call.1} parent=11 // pred_check
        %p325 = pneg %p87
      $region18: #{tpu_custom_call.1} parent=11 // pred_check_branch
        %327 = sbr.rel (%p325) target = $region20
      $region19: #{tpu_custom_call.1} parent=11 // pred_region
        _
      $region20: #{tpu_custom_call.1} parent=11 // pred_fallthru
        _
      // Predicated region
      $region21: #{tpu_custom_call.1} parent=11 // pred_check
        %p328 = pneg %p108
      $region22: #{tpu_custom_call.1} parent=11 // pred_check_branch
        %330 = sbr.rel (%p328) target = $region24
      $region23: #{tpu_custom_call.1} parent=11 // pred_region
        _
      $region24: #{tpu_custom_call.1} parent=11 // pred_fallthru
        _
      // Predicated region
      $region25: #{tpu_custom_call.1} parent=11 // pred_check
        %p331 = pneg %p129
      $region26: #{tpu_custom_call.1} parent=11 // pred_check_branch
        %333 = sbr.rel (%p331) target = $region28
      $region27: #{tpu_custom_call.1} parent=11 // pred_region
        _
      $region28: #{tpu_custom_call.1} parent=11 // pred_fallthru
        _
      // Predicated region
      $region29: #{tpu_custom_call.1} parent=11 // pred_check
        %p334 = pneg %p150
      $region30: #{tpu_custom_call.1} parent=11 // pred_check_branch
        %336 = sbr.rel (%p334) target = $region32
      $region31: #{tpu_custom_call.1} parent=11 // pred_region
        _
      $region32: #{tpu_custom_call.1} parent=11 // pred_fallthru
        _
      // Predicated region
      $region33: #{tpu_custom_call.1} parent=11 // pred_check
        %p337 = pneg %p171
      $region34: #{tpu_custom_call.1} parent=11 // pred_check_branch
        %339 = sbr.rel (%p337) target = $region36
      $region35: #{tpu_custom_call.1} parent=11 // pred_region
        _
      $region36: #{tpu_custom_call.1} parent=11 // pred_fallthru
        _
      // Predicated region
      $region37: #{tpu_custom_call.1} parent=11 // pred_check
        %p340 = pneg %p192
      $region38: #{tpu_custom_call.1} parent=11 // pred_check_branch
        %342 = sbr.rel (%p340) target = $region40
      $region39: #{tpu_custom_call.1} parent=11 // pred_region
        _
      $region40: #{tpu_custom_call.1} parent=11 // pred_fallthru
        _
      // Predicated region
      $region41: #{tpu_custom_call.1} parent=11 // pred_check
        %p343 = pneg %p213
      $region42: #{tpu_custom_call.1} parent=11 // pred_check_branch
        %345 = sbr.rel (%p343) target = $region44
      $region43: #{tpu_custom_call.1} parent=11 // pred_region
        _
      $region44: #{tpu_custom_call.1} parent=11 // pred_fallthru
        _
      // Predicated region
      $region45: #{tpu_custom_call.1} parent=11 // pred_check
        %p346 = pneg %p234
      $region46: #{tpu_custom_call.1} parent=11 // pred_check_branch
        %348 = sbr.rel (%p346) target = $region48
      $region47: #{tpu_custom_call.1} parent=11 // pred_region
        _
      $region48: #{tpu_custom_call.1} parent=11 // pred_fallthru
        _
      // Predicated region
      $region49: #{tpu_custom_call.1} parent=11 // pred_check
        %p349 = pneg %p255
      $region50: #{tpu_custom_call.1} parent=11 // pred_check_branch
        %351 = sbr.rel (%p349) target = $region52
      $region51: #{tpu_custom_call.1} parent=11 // pred_region
        _
      $region52: #{tpu_custom_call.1} parent=11 // pred_fallthru
        _
    $region12: #{tpu_custom_call.1} parent=5 // pred_fallthru
      _
    %p352 = scmp.lt.s32.totalorder %s19, 2
    // Predicated region
    $region53: #{tpu_custom_call.1} parent=5 // pred_check
      %p353 = pneg %p352
    $region54: #{tpu_custom_call.1} parent=5 // pred_check_branch
      %355 = sbr.rel (%p353) target = $region56
    $region55: #{tpu_custom_call.1} parent=5 // pred_region
      // Predicated region
      $region57: #{tpu_custom_call.1} parent=55 // pred_check
        %p356 = pneg %p39
      $region58: #{tpu_custom_call.1} parent=55 // pred_check_branch
        %358 = sbr.rel (%p356) target = $region60
      $region59: #{tpu_custom_call.1} parent=55 // pred_region
        %s359 = smul.u32 32, %s19
        %p360 = scmp.lt.s32.totalorder %s359, 63
        %s361 = scalar_select %p360, %s359, 63
        %s362 = smul.addr %s361, 8
        %s363 = scalar_lea.vmem %s0, %s362
        %s364 = smul.u32 32, %s19
      $region60: #{tpu_custom_call.1} parent=55 // pred_fallthru
        _
    $region56: #{tpu_custom_call.1} parent=5 // pred_fallthru
      _
    %p365 = scmp.le.s32.totalorder 1, %s19
    %p366 = scmp.lt.s32.totalorder %s19, 3
    %p367 = pnand %p365, %p366
    %p368 = pneg %p367
    // Predicated region
    $region61: #{tpu_custom_call.1} parent=5 // pred_check
      _
    $region62: #{tpu_custom_call.1} parent=5 // pred_check_branch
      %370 = sbr.rel (%p367) target = $region64
    $region63: #{tpu_custom_call.1} parent=5 // pred_region
      %s371 = ssub.s32 %s19, 1
      %s372 = smul.u32 32, %s24
      %p373 = scmp.lt.s32.totalorder %s372, 63
      %s374 = scalar_select %p373, %s372, 63
      %s375 = smul.addr %s374, 8
      %s376 = scalar_lea.vmem %s0, %s375
      %p377 = pneg %p45
      %p378 = pneg %p42
      %p379 = pneg %p66
      %p380 = pneg %p63
      %p381 = pneg %p87
      %p382 = pneg %p84
      %p383 = pneg %p108
      %p384 = pneg %p105
      %p385 = pneg %p129
      %p386 = pneg %p126
      %p387 = pneg %p150
      %p388 = pneg %p147
      %p389 = pneg %p171
      %p390 = pneg %p168
      %p391 = pneg %p192
      %p392 = pneg %p189
      %p393 = pneg %p213
      %p394 = pneg %p210
      %p395 = pneg %p234
      %p396 = pneg %p231
      %p397 = pneg %p255
      %p398 = pneg %p252
      %p399 = pneg %p281
      %p400 = pneg %p278
      %s401 = smul.u32 32, %s24
      %p402 = scmp.lt.s32.totalorder %s401, 63
      %s403 = scalar_select %p402, %s401, 63
      %s404 = smul.addr %s403, 8
      %s405 = scalar_lea.vmem %s11, %s404
      %p406 = pneg %p307
      %p407 = pneg %p304
      %s408 = smul.u32 32, %s24
      %p409 = scmp.lt.s32.totalorder %s408, 63
      %s410 = scalar_select %p409, %s408, 63
      %s411 = smul.addr %s410, 8
      %s412 = scalar_lea.vmem %s12, %s411
      %s413 = smul.u32 32, %s24
      %p414 = scmp.lt.s32.totalorder %s413, 63
      %s415 = scalar_select %p414, %s413, 63
      %s416 = smul.addr %s415, 8
      %s417 = scalar_lea.vmem %s0, %s416
      %s418 = smul.u32 32, %s24
      %s419 = smul.u32 32, %s24
      %p420 = scmp.lt.s32.totalorder %s419, 63
      %s421 = scalar_select %p420, %s419, 63
      %s422 = smul.addr %s421, 8
      %s423 = scalar_lea.vmem %s11, %s422
      %s424 = smul.u32 32, %s24
      %s425 = smul.u32 32, %s24
      %p426 = scmp.lt.s32.totalorder %s425, 63
      %s427 = scalar_select %p426, %s425, 63
      %s428 = smul.addr %s427, 8
      %s429 = scalar_lea.vmem %s12, %s428
      %s430 = smul.u32 32, %s24
      %v431 = vld [vmem:[%s417] sm:$0xff]
      %v432 = vld [vmem:[%s417 + $0x8] sm:$0xff]
      %v433 = vld [vmem:[%s417 + $0x10] sm:$0xff]
      %v434 = vld [vmem:[%s417 + $0x18] sm:$0xff]
      %v435 = vld [vmem:[%s417 + $0x20] sm:$0xff]
      %v436 = vld [vmem:[%s417 + $0x28] sm:$0xff]
      %v437 = vld [vmem:[%s417 + $0x30] sm:$0xff]
      %v438 = vld [vmem:[%s417 + $0x38] sm:$0xff]
      %v439 = vld [vmem:[%s417 + $0x40] sm:$0xff]
      %v440 = vld [vmem:[%s417 + $0x48] sm:$0xff]
      %v441 = vld [vmem:[%s417 + $0x50] sm:$0xff]
      %v442 = vld [vmem:[%s417 + $0x58] sm:$0xff]
      %v443 = vld [vmem:[%s417 + $0x60] sm:$0xff]
      %v444 = vld [vmem:[%s417 + $0x68] sm:$0xff]
      %v445 = vld [vmem:[%s417 + $0x70] sm:$0xff]
      %v446 = vld [vmem:[%s417 + $0x78] sm:$0xff]
      %v447 = vld [vmem:[%s417 + $0x80] sm:$0xff]
      %v448 = vld [vmem:[%s417 + $0x88] sm:$0xff]
      %v449 = vld [vmem:[%s417 + $0x90] sm:$0xff]
      %v450 = vld [vmem:[%s417 + $0x98] sm:$0xff]
      %v451 = vld [vmem:[%s417 + $0xa0] sm:$0xff]
      %v452 = vld [vmem:[%s417 + $0xa8] sm:$0xff]
      %v453 = vld [vmem:[%s417 + $0xb0] sm:$0xff]
      %v454 = vld [vmem:[%s417 + $0xb8] sm:$0xff]
      %v455 = vld [vmem:[%s417 + $0xc0] sm:$0xff]
      %v456 = vld [vmem:[%s417 + $0xc8] sm:$0xff]
      %v457 = vld [vmem:[%s417 + $0xd0] sm:$0xff]
      %v458 = vld [vmem:[%s417 + $0xd8] sm:$0xff]
      %v459 = vld [vmem:[%s417 + $0xe0] sm:$0xff]
      %v460 = vld [vmem:[%s417 + $0xe8] sm:$0xff]
      %v461 = vld [vmem:[%s417 + $0xf0] sm:$0xff]
      %v462 = vld [vmem:[%s417 + $0xf8] sm:$0xff]
      %v463 = vld [vmem:[%s1] sm:$0xff]
      %v464 = vld [vmem:[%s1 + $0x8] sm:$0xff]
      %v465 = vld [vmem:[%s1 + $0x10] sm:$0xff]
      %v466 = vld [vmem:[%s1 + $0x18] sm:$0xff]
      %v467 = vld [vmem:[%s2] sm:$0x1]
      %v469 = vlaneseq
      %v470 = vshrl.u32 %v469, 7
      %v471 = vsub.s32 0, %v470
      %v472 = vrot.slane %v467, %v471
      %vm474 = vcmask 261120
      %v476 = vsel %vm474, %v431, 0
      %v479 = vsel %vm474, %v432, 0
      %v482 = vsel %vm474, %v433, 0
      %v485 = vsel %vm474, %v434, 0
      %v488 = vsel %vm474, %v435, 0
      %v491 = vsel %vm474, %v436, 0
      %v494 = vsel %vm474, %v437, 0
      %v497 = vsel %vm474, %v438, 0
      %v500 = vsel %vm474, %v439, 0
      %v503 = vsel %vm474, %v440, 0
      %v506 = vsel %vm474, %v441, 0
      %v509 = vsel %vm474, %v442, 0
      %v512 = vsel %vm474, %v443, 0
      %v515 = vsel %vm474, %v444, 0
      %v518 = vsel %vm474, %v445, 0
      %v521 = vsel %vm474, %v446, 0
      %v524 = vsel %vm474, %v447, 0
      %v527 = vsel %vm474, %v448, 0
      %v530 = vsel %vm474, %v449, 0
      %v533 = vsel %vm474, %v450, 0
      %v536 = vsel %vm474, %v451, 0
      %v539 = vsel %vm474, %v452, 0
      %v542 = vsel %vm474, %v453, 0
      %v545 = vsel %vm474, %v454, 0
      %v548 = vsel %vm474, %v455, 0
      %v551 = vsel %vm474, %v456, 0
      %v554 = vsel %vm474, %v457, 0
      %v557 = vsel %vm474, %v458, 0
      %v560 = vsel %vm474, %v459, 0
      %v563 = vsel %vm474, %v460, 0
      %v566 = vsel %vm474, %v461, 0
      %v569 = vsel %vm474, %v462, 0
      %571 = vmatprep.subr.mxu0 0.0
      %572 = vmatpush1.msra.mxu0 %v463
      %573 = vmatprep.subr.mxu0 0.0
      %574 = vmatpush1.msra.mxu0 %v464
      %575 = vmatprep.subr.mxu0 0.0
      %576 = vmatpush1.msra.mxu0 %v465
      %577 = vmatprep.subr.mxu0 0.0
      %578 = vmatpush1.msra.mxu0 %v466
      %579 = vmatprep.subr.mxu0 0.0
      %580 = vmatpush1.msra.mxu0 0.0
      %581 = vmatprep.subr.mxu0 0.0
      %582 = vmatpush1.msra.mxu0 0.0
      %583 = vmatprep.subr.mxu0 0.0
      %584 = vmatpush1.msra.mxu0 0.0
      %585 = vmatprep.subr.mxu0 0.0
      %586 = vmatpush1.msra.mxu0 0.0
      %587 = vmatprep.subr.mxu0 0.0
      %588 = vmatpush1.msra.mxu0 0.0
      %589 = vmatprep.subr.mxu0 0.0
      %590 = vmatpush1.msra.mxu0 0.0
      %591 = vmatprep.subr.mxu0 0.0
      %592 = vmatpush1.msra.mxu0 0.0
      %593 = vmatprep.subr.mxu0 0.0
      %594 = vmatpush1.msra.mxu0 0.0
      %595 = vmatprep.subr.mxu0 0.0
      %596 = vmatpush1.msra.mxu0 0.0
      %597 = vmatprep.subr.mxu0 0.0
      %598 = vmatpush1.msra.mxu0 0.0
      %599 = vmatprep.subr.mxu0 0.0
      %600 = vmatpush1.msra.mxu0 0.0
      %601 = vmatprep.subr.mxu0 0.0
      %602 = vmatpush1.msra.mxu0 0.0
      %603 = vmatprep.subr.mxu0 0.0
      %604 = vmatpush1.msra.mxu0 0.0
      %605 = vmatprep.subr.mxu0 0.0
      %606 = vmatpush1.msra.mxu0 0.0
      %607 = vmatprep.subr.mxu0 0.0
      %608 = vmatpush1.msra.mxu0 0.0
      %609 = vmatprep.subr.mxu0 0.0
      %610 = vmatpush1.msra.mxu0 0.0
      %611 = vmatprep.subr.mxu0 0.0
      %612 = vmatpush1.msra.mxu0 0.0
      %613 = vmatprep.subr.mxu0 0.0
      %614 = vmatpush1.msra.mxu0 0.0
      %615 = vmatprep.subr.mxu0 0.0
      %616 = vmatpush1.msra.mxu0 0.0
      %617 = vmatprep.subr.mxu0 0.0
      %618 = vmatpush1.msra.mxu0 0.0
      %619 = vmatprep.subr.mxu0 0.0
      %620 = vmatpush1.msra.mxu0 0.0
      %621 = vmatprep.subr.mxu0 0.0
      %622 = vmatpush1.msra.mxu0 0.0
      %623 = vmatprep.subr.mxu0 0.0
      %624 = vmatpush1.msra.mxu0 0.0
      %625 = vmatprep.subr.mxu0 0.0
      %626 = vmatpush1.msra.mxu0 0.0
      %627 = vmatprep.subr.mxu0 0.0
      %628 = vmatpush1.msra.mxu0 0.0
      %629 = vmatprep.subr.mxu0 0.0
      %630 = vmatpush1.msra.mxu0 0.0
      %631 = vmatprep.subr.mxu0 0.0
      %632 = vmatpush1.msra.mxu0 0.0
      %633 = vmatprep.subr.mxu0 0.0
      %634 = vmatpush1.msra.mxu0 0.0
      %635 = vmatprep.mubr.f32.mxu0 0.0
      %636 = vmatmul.mubr.f32.gmra.mrb[0].mxu0 %v476
      %v637 = vpop.f32.mrb[0].mxu0
      %v638 = vadd.f32 %v472, %v637
      %v639 = vpop.f32.mrb[0].mxu0
      %640 = vmatprep.mubr.f32.mxu0 0.0
      %641 = vmatmul.mubr.f32.gmra.mrb[0].mxu0 %v479
      %v642 = vpop.f32.mrb[0].mxu0
      %v643 = vadd.f32 %v472, %v642
      %v644 = vpop.f32.mrb[0].mxu0
      %645 = vmatprep.mubr.f32.mxu0 0.0
      %646 = vmatmul.mubr.f32.gmra.mrb[0].mxu0 %v482
      %v647 = vpop.f32.mrb[0].mxu0
      %v648 = vadd.f32 %v472, %v647
      %v649 = vpop.f32.mrb[0].mxu0
      %650 = vmatprep.mubr.f32.mxu0 0.0
      %651 = vmatmul.mubr.f32.gmra.mrb[0].mxu0 %v485
      %v652 = vpop.f32.mrb[0].mxu0
      %v653 = vadd.f32 %v472, %v652
      %v654 = vpop.f32.mrb[0].mxu0
      %655 = vmatprep.mubr.f32.mxu0 0.0
      %656 = vmatmul.mubr.f32.gmra.mrb[0].mxu0 %v488
      %v657 = vpop.f32.mrb[0].mxu0
      %v658 = vadd.f32 %v472, %v657
      %v659 = vpop.f32.mrb[0].mxu0
      %660 = vmatprep.mubr.f32.mxu0 0.0
      %661 = vmatmul.mubr.f32.gmra.mrb[0].mxu0 %v491
      %v662 = vpop.f32.mrb[0].mxu0
      %v663 = vadd.f32 %v472, %v662
      %v664 = vpop.f32.mrb[0].mxu0
      %665 = vmatprep.mubr.f32.mxu0 0.0
      %666 = vmatmul.mubr.f32.gmra.mrb[0].mxu0 %v494
      %v667 = vpop.f32.mrb[0].mxu0
      %v668 = vadd.f32 %v472, %v667
      %v669 = vpop.f32.mrb[0].mxu0
      %670 = vmatprep.mubr.f32.mxu0 0.0
      %671 = vmatmul.mubr.f32.gmra.mrb[0].mxu0 %v497
      %v672 = vpop.f32.mrb[0].mxu0
      %v673 = vadd.f32 %v472, %v672
      %v674 = vpop.f32.mrb[0].mxu0
      %675 = vmatprep.mubr.f32.mxu0 0.0
      %676 = vmatmul.mubr.f32.gmra.mrb[0].mxu0 %v500
      %v677 = vpop.f32.mrb[0].mxu0
      %v678 = vadd.f32 %v472, %v677
      %v679 = vpop.f32.mrb[0].mxu0
      %680 = vmatprep.mubr.f32.mxu0 0.0
      %681 = vmatmul.mubr.f32.gmra.mrb[0].mxu0 %v503
      %v682 = vpop.f32.mrb[0].mxu0
      %v683 = vadd.f32 %v472, %v682
      %v684 = vpop.f32.mrb[0].mxu0
      %685 = vmatprep.mubr.f32.mxu0 0.0
      %686 = vmatmul.mubr.f32.gmra.mrb[0].mxu0 %v506
      %v687 = vpop.f32.mrb[0].mxu0
      %v688 = vadd.f32 %v472, %v687
      %v689 = vpop.f32.mrb[0].mxu0
      %690 = vmatprep.mubr.f32.mxu0 0.0
      %691 = vmatmul.mubr.f32.gmra.mrb[0].mxu0 %v509
      %v692 = vpop.f32.mrb[0].mxu0
      %v693 = vadd.f32 %v472, %v692
      %v694 = vpop.f32.mrb[0].mxu0
      %695 = vmatprep.mubr.f32.mxu0 0.0
      %696 = vmatmul.mubr.f32.gmra.mrb[0].mxu0 %v512
      %v697 = vpop.f32.mrb[0].mxu0
      %v698 = vadd.f32 %v472, %v697
      %v699 = vpop.f32.mrb[0].mxu0
      %700 = vmatprep.mubr.f32.mxu0 0.0
      %701 = vmatmul.mubr.f32.gmra.mrb[0].mxu0 %v515
      %v702 = vpop.f32.mrb[0].mxu0
      %v703 = vadd.f32 %v472, %v702
      %v704 = vpop.f32.mrb[0].mxu0
      %705 = vmatprep.mubr.f32.mxu0 0.0
      %706 = vmatmul.mubr.f32.gmra.mrb[0].mxu0 %v518
      %v707 = vpop.f32.mrb[0].mxu0
      %v708 = vadd.f32 %v472, %v707
      %v709 = vpop.f32.mrb[0].mxu0
      %710 = vmatprep.mubr.f32.mxu0 0.0
      %711 = vmatmul.mubr.f32.gmra.mrb[0].mxu0 %v521
      %v712 = vpop.f32.mrb[0].mxu0
      %v713 = vadd.f32 %v472, %v712
      %v714 = vpop.f32.mrb[0].mxu0
      %715 = vmatprep.mubr.f32.mxu0 0.0
      %716 = vmatmul.mubr.f32.gmra.mrb[0].mxu0 %v524
      %v717 = vpop.f32.mrb[0].mxu0
      %v718 = vadd.f32 %v472, %v717
      %v719 = vpop.f32.mrb[0].mxu0
      %720 = vmatprep.mubr.f32.mxu0 0.0
      %721 = vmatmul.mubr.f32.gmra.mrb[0].mxu0 %v527
      %v722 = vpop.f32.mrb[0].mxu0
      %v723 = vadd.f32 %v472, %v722
      %v724 = vpop.f32.mrb[0].mxu0
      %725 = vmatprep.mubr.f32.mxu0 0.0
      %726 = vmatmul.mubr.f32.gmra.mrb[0].mxu0 %v530
      %v727 = vpop.f32.mrb[0].mxu0
      %v728 = vadd.f32 %v472, %v727
      %v729 = vpop.f32.mrb[0].mxu0
      %730 = vmatprep.mubr.f32.mxu0 0.0
      %731 = vmatmul.mubr.f32.gmra.mrb[0].mxu0 %v533
      %v732 = vpop.f32.mrb[0].mxu0
      %v733 = vadd.f32 %v472, %v732
      %v734 = vpop.f32.mrb[0].mxu0
      %735 = vmatprep.mubr.f32.mxu0 0.0
      %736 = vmatmul.mubr.f32.gmra.mrb[0].mxu0 %v536
      %v737 = vpop.f32.mrb[0].mxu0
      %v738 = vadd.f32 %v472, %v737
      %v739 = vpop.f32.mrb[0].mxu0
      %740 = vmatprep.mubr.f32.mxu0 0.0
      %741 = vmatmul.mubr.f32.gmra.mrb[0].mxu0 %v539
      %v742 = vpop.f32.mrb[0].mxu0
      %v743 = vadd.f32 %v472, %v742
      %v744 = vpop.f32.mrb[0].mxu0
      %745 = vmatprep.mubr.f32.mxu0 0.0
      %746 = vmatmul.mubr.f32.gmra.mrb[0].mxu0 %v542
      %v747 = vpop.f32.mrb[0].mxu0
      %v748 = vadd.f32 %v472, %v747
      %v749 = vpop.f32.mrb[0].mxu0
      %750 = vmatprep.mubr.f32.mxu0 0.0
      %751 = vmatmul.mubr.f32.gmra.mrb[0].mxu0 %v545
      %v752 = vpop.f32.mrb[0].mxu0
      %v753 = vadd.f32 %v472, %v752
      %v754 = vpop.f32.mrb[0].mxu0
      %755 = vmatprep.mubr.f32.mxu0 0.0
      %756 = vmatmul.mubr.f32.gmra.mrb[0].mxu0 %v548
      %v757 = vpop.f32.mrb[0].mxu0
      %v758 = vadd.f32 %v472, %v757
      %v759 = vpop.f32.mrb[0].mxu0
      %760 = vmatprep.mubr.f32.mxu0 0.0
      %761 = vmatmul.mubr.f32.gmra.mrb[0].mxu0 %v551
      %v762 = vpop.f32.mrb[0].mxu0
      %v763 = vadd.f32 %v472, %v762
      %v764 = vpop.f32.mrb[0].mxu0
      %765 = vmatprep.mubr.f32.mxu0 0.0
      %766 = vmatmul.mubr.f32.gmra.mrb[0].mxu0 %v554
      %v767 = vpop.f32.mrb[0].mxu0
      %v768 = vadd.f32 %v472, %v767
      %v769 = vpop.f32.mrb[0].mxu0
      %770 = vmatprep.mubr.f32.mxu0 0.0
      %771 = vmatmul.mubr.f32.gmra.mrb[0].mxu0 %v557
      %v772 = vpop.f32.mrb[0].mxu0
      %v773 = vadd.f32 %v472, %v772
      %v774 = vpop.f32.mrb[0].mxu0
      %775 = vmatprep.mubr.f32.mxu0 0.0
      %776 = vmatmul.mubr.f32.gmra.mrb[0].mxu0 %v560
      %v777 = vpop.f32.mrb[0].mxu0
      %v778 = vadd.f32 %v472, %v777
      %v779 = vpop.f32.mrb[0].mxu0
      %780 = vmatprep.mubr.f32.mxu0 0.0
      %781 = vmatmul.mubr.f32.gmra.mrb[0].mxu0 %v563
      %v782 = vpop.f32.mrb[0].mxu0
      %v783 = vadd.f32 %v472, %v782
      %v784 = vpop.f32.mrb[0].mxu0
      %785 = vmatprep.mubr.f32.mxu0 0.0
      %786 = vmatmul.mubr.f32.gmra.mrb[0].mxu0 %v566
      %v787 = vpop.f32.mrb[0].mxu0
      %v788 = vadd.f32 %v472, %v787
      %v789 = vpop.f32.mrb[0].mxu0
      %790 = vmatprep.mubr.f32.mxu0 0.0
      %791 = vmatmul.mubr.f32.gmra.mrb[0].mxu0 %v569
      %v792 = vpop.f32.mrb[0].mxu0
      %v793 = vadd.f32 %v472, %v792
      %v794 = vpop.f32.mrb[0].mxu0
      %795 = vdwg.mxu0
      %v796 = vmax.f32 %v638, 0.0
      %v797 = vmax.f32 %v643, 0.0
      %v798 = vmax.f32 %v648, 0.0
      %v799 = vmax.f32 %v653, 0.0
      %v800 = vmax.f32 %v658, 0.0
      %v801 = vmax.f32 %v663, 0.0
      %v802 = vmax.f32 %v668, 0.0
      %v803 = vmax.f32 %v673, 0.0
      %v804 = vmax.f32 %v678, 0.0
      %v805 = vmax.f32 %v683, 0.0
      %v806 = vmax.f32 %v688, 0.0
      %v807 = vmax.f32 %v693, 0.0
      %v808 = vmax.f32 %v698, 0.0
      %v809 = vmax.f32 %v703, 0.0
      %v810 = vmax.f32 %v708, 0.0
      %v811 = vmax.f32 %v713, 0.0
      %v812 = vmax.f32 %v718, 0.0
      %v813 = vmax.f32 %v723, 0.0
      %v814 = vmax.f32 %v728, 0.0
      %v815 = vmax.f32 %v733, 0.0
      %v816 = vmax.f32 %v738, 0.0
      %v817 = vmax.f32 %v743, 0.0
      %v818 = vmax.f32 %v748, 0.0
      %v819 = vmax.f32 %v753, 0.0
      %v820 = vmax.f32 %v758, 0.0
      %v821 = vmax.f32 %v763, 0.0
      %v822 = vmax.f32 %v768, 0.0
      %v823 = vmax.f32 %v773, 0.0
      %v824 = vmax.f32 %v778, 0.0
      %v825 = vmax.f32 %v783, 0.0
      %v826 = vmax.f32 %v788, 0.0
      %v827 = vmax.f32 %v793, 0.0
      %v828 = vld [vmem:[%s3] sm:$0xff]
      %v829 = vld [vmem:[%s3 + $0x8] sm:$0xff]
      %v830 = vld [vmem:[%s3 + $0x10] sm:$0xff]
      %v831 = vld [vmem:[%s3 + $0x18] sm:$0xff]
      %v832 = vld [vmem:[%s3 + $0x20] sm:$0xff]
      %v833 = vld [vmem:[%s3 + $0x28] sm:$0xff]
      %v834 = vld [vmem:[%s3 + $0x30] sm:$0xff]
      %v835 = vld [vmem:[%s3 + $0x38] sm:$0xff]
      %v836 = vld [vmem:[%s3 + $0x40] sm:$0xff]
      %v837 = vld [vmem:[%s3 + $0x48] sm:$0xff]
      %v838 = vld [vmem:[%s3 + $0x50] sm:$0xff]
      %v839 = vld [vmem:[%s3 + $0x58] sm:$0xff]
      %v840 = vld [vmem:[%s3 + $0x60] sm:$0xff]
      %v841 = vld [vmem:[%s3 + $0x68] sm:$0xff]
      %v842 = vld [vmem:[%s3 + $0x70] sm:$0xff]
      %v843 = vld [vmem:[%s3 + $0x78] sm:$0xff]
      %v844 = vld [vmem:[%s4] sm:$0x1]
      %v846 = vlaneseq
      %v847 = vshrl.u32 %v846, 7
      %v848 = vsub.s32 0, %v847
      %v849 = vrot.slane %v844, %v848
      %851 = vmatprep.subr.mxu0 0.0
      %852 = vmatpush1.msra.mxu0 %v828
      %853 = vmatprep.subr.mxu0 0.0
      %854 = vmatpush1.msra.mxu0 %v829
      %855 = vmatprep.subr.mxu0 0.0
      %856 = vmatpush1.msra.mxu0 %v830
      %857 = vmatprep.subr.mxu0 0.0
      %858 = vmatpush1.msra.mxu0 %v831
      %859 = vmatprep.subr.mxu0 0.0
      %860 = vmatpush1.msra.mxu0 %v832
      %861 = vmatprep.subr.mxu0 0.0
      %862 = vmatpush1.msra.mxu0 %v833
      %863 = vmatprep.subr.mxu0 0.0
      %864 = vmatpush1.msra.mxu0 %v834
      %865 = vmatprep.subr.mxu0 0.0
      %866 = vmatpush1.msra.mxu0 %v835
      %867 = vmatprep.subr.mxu0 0.0
      %868 = vmatpush1.msra.mxu0 %v836
      %869 = vmatprep.subr.mxu0 0.0
      %870 = vmatpush1.msra.mxu0 %v837
      %871 = vmatprep.subr.mxu0 0.0
      %872 = vmatpush1.msra.mxu0 %v838
      %873 = vmatprep.subr.mxu0 0.0
      %874 = vmatpush1.msra.mxu0 %v839
      %875 = vmatprep.subr.mxu0 0.0
      %876 = vmatpush1.msra.mxu0 %v840
      %877 = vmatprep.subr.mxu0 0.0
      %878 = vmatpush1.msra.mxu0 %v841
      %879 = vmatprep.subr.mxu0 0.0
      %880 = vmatpush1.msra.mxu0 %v842
      %881 = vmatprep.subr.mxu0 0.0
      %882 = vmatpush1.msra.mxu0 %v843
      %883 = vmatprep.subr.mxu0 0.0
      %884 = vmatpush1.msra.mxu0 0.0
      %885 = vmatprep.subr.mxu0 0.0
      %886 = vmatpush1.msra.mxu0 0.0
      %887 = vmatprep.subr.mxu0 0.0
      %888 = vmatpush1.msra.mxu0 0.0
      %889 = vmatprep.subr.mxu0 0.0
      %890 = vmatpush1.msra.mxu0 0.0
      %891 = vmatprep.subr.mxu0 0.0
      %892 = vmatpush1.msra.mxu0 0.0
      %893 = vmatprep.subr.mxu0 0.0
      %894 = vmatpush1.msra.mxu0 0.0
      %895 = vmatprep.subr.mxu0 0.0
      %896 = vmatpush1.msra.mxu0 0.0
      %897 = vmatprep.subr.mxu0 0.0
      %898 = vmatpush1.msra.mxu0 0.0
      %899 = vmatprep.subr.mxu0 0.0
      %900 = vmatpush1.msra.mxu0 0.0
      %901 = vmatprep.subr.mxu0 0.0
      %902 = vmatpush1.msra.mxu0 0.0
      %903 = vmatprep.subr.mxu0 0.0
      %904 = vmatpush1.msra.mxu0 0.0
      %905 = vmatprep.subr.mxu0 0.0
      %906 = vmatpush1.msra.mxu0 0.0
      %907 = vmatprep.subr.mxu0 0.0
      %908 = vmatpush1.msra.mxu0 0.0
      %909 = vmatprep.subr.mxu0 0.0
      %910 = vmatpush1.msra.mxu0 0.0
      %911 = vmatprep.subr.mxu0 0.0
      %912 = vmatpush1.msra.mxu0 0.0
      %913 = vmatprep.subr.mxu0 0.0
      %914 = vmatpush1.msra.mxu0 0.0
      %915 = vmatprep.mubr.f32.mxu0 0.0
      %916 = vmatmul.mubr.f32.gmra.mrb[0].mxu0 %v796
      %v917 = vpop.f32.mrb[0].mxu0
      %v918 = vadd.f32 %v849, %v917
      %v919 = vpop.f32.mrb[0].mxu0
      %920 = vmatprep.mubr.f32.mxu0 0.0
      %921 = vmatmul.mubr.f32.gmra.mrb[0].mxu0 %v797
      %v922 = vpop.f32.mrb[0].mxu0
      %v923 = vadd.f32 %v849, %v922
      %v924 = vpop.f32.mrb[0].mxu0
      %925 = vmatprep.mubr.f32.mxu0 0.0
      %926 = vmatmul.mubr.f32.gmra.mrb[0].mxu0 %v798
      %v927 = vpop.f32.mrb[0].mxu0
      %v928 = vadd.f32 %v849, %v927
      %v929 = vpop.f32.mrb[0].mxu0
      %930 = vmatprep.mubr.f32.mxu0 0.0
      %931 = vmatmul.mubr.f32.gmra.mrb[0].mxu0 %v799
      %v932 = vpop.f32.mrb[0].mxu0
      %v933 = vadd.f32 %v849, %v932
      %v934 = vpop.f32.mrb[0].mxu0
      %935 = vmatprep.mubr.f32.mxu0 0.0
      %936 = vmatmul.mubr.f32.gmra.mrb[0].mxu0 %v800
      %v937 = vpop.f32.mrb[0].mxu0
      %v938 = vadd.f32 %v849, %v937
      %v939 = vpop.f32.mrb[0].mxu0
      %940 = vmatprep.mubr.f32.mxu0 0.0
      %941 = vmatmul.mubr.f32.gmra.mrb[0].mxu0 %v801
      %v942 = vpop.f32.mrb[0].mxu0
      %v943 = vadd.f32 %v849, %v942
      %v944 = vpop.f32.mrb[0].mxu0
      %945 = vmatprep.mubr.f32.mxu0 0.0
      %946 = vmatmul.mubr.f32.gmra.mrb[0].mxu0 %v802
      %v947 = vpop.f32.mrb[0].mxu0
      %v948 = vadd.f32 %v849, %v947
      %v949 = vpop.f32.mrb[0].mxu0
      %950 = vmatprep.mubr.f32.mxu0 0.0
      %951 = vmatmul.mubr.f32.gmra.mrb[0].mxu0 %v803
      %v952 = vpop.f32.mrb[0].mxu0
      %v953 = vadd.f32 %v849, %v952
      %v954 = vpop.f32.mrb[0].mxu0
      %955 = vmatprep.mubr.f32.mxu0 0.0
      %956 = vmatmul.mubr.f32.gmra.mrb[0].mxu0 %v804
      %v957 = vpop.f32.mrb[0].mxu0
      %v958 = vadd.f32 %v849, %v957
      %v959 = vpop.f32.mrb[0].mxu0
      %960 = vmatprep.mubr.f32.mxu0 0.0
      %961 = vmatmul.mubr.f32.gmra.mrb[0].mxu0 %v805
      %v962 = vpop.f32.mrb[0].mxu0
      %v963 = vadd.f32 %v849, %v962
      %v964 = vpop.f32.mrb[0].mxu0
      %965 = vmatprep.mubr.f32.mxu0 0.0
      %966 = vmatmul.mubr.f32.gmra.mrb[0].mxu0 %v806
      %v967 = vpop.f32.mrb[0].mxu0
      %v968 = vadd.f32 %v849, %v967
      %v969 = vpop.f32.mrb[0].mxu0
      %970 = vmatprep.mubr.f32.mxu0 0.0
      %971 = vmatmul.mubr.f32.gmra.mrb[0].mxu0 %v807
      %v972 = vpop.f32.mrb[0].mxu0
      %v973 = vadd.f32 %v849, %v972
      %v974 = vpop.f32.mrb[0].mxu0
      %975 = vmatprep.mubr.f32.mxu0 0.0
      %976 = vmatmul.mubr.f32.gmra.mrb[0].mxu0 %v808
      %v977 = vpop.f32.mrb[0].mxu0
      %v978 = vadd.f32 %v849, %v977
      %v979 = vpop.f32.mrb[0].mxu0
      %980 = vmatprep.mubr.f32.mxu0 0.0
      %981 = vmatmul.mubr.f32.gmra.mrb[0].mxu0 %v809
      %v982 = vpop.f32.mrb[0].mxu0
      %v983 = vadd.f32 %v849, %v982
      %v984 = vpop.f32.mrb[0].mxu0
      %985 = vmatprep.mubr.f32.mxu0 0.0
      %986 = vmatmul.mubr.f32.gmra.mrb[0].mxu0 %v810
      %v987 = vpop.f32.mrb[0].mxu0
      %v988 = vadd.f32 %v849, %v987
      %v989 = vpop.f32.mrb[0].mxu0
      %990 = vmatprep.mubr.f32.mxu0 0.0
      %991 = vmatmul.mubr.f32.gmra.mrb[0].mxu0 %v811
      %v992 = vpop.f32.mrb[0].mxu0
      %v993 = vadd.f32 %v849, %v992
      %v994 = vpop.f32.mrb[0].mxu0
      %995 = vmatprep.mubr.f32.mxu0 0.0
      %996 = vmatmul.mubr.f32.gmra.mrb[0].mxu0 %v812
      %v997 = vpop.f32.mrb[0].mxu0
      %v998 = vadd.f32 %v849, %v997
      %v999 = vpop.f32.mrb[0].mxu0
      %1000 = vmatprep.mubr.f32.mxu0 0.0
      %1001 = vmatmul.mubr.f32.gmra.mrb[0].mxu0 %v813
      %v1002 = vpop.f32.mrb[0].mxu0
      %v1003 = vadd.f32 %v849, %v1002
      %v1004 = vpop.f32.mrb[0].mxu0
      %1005 = vmatprep.mubr.f32.mxu0 0.0
      %1006 = vmatmul.mubr.f32.gmra.mrb[0].mxu0 %v814
      %v1007 = vpop.f32.mrb[0].mxu0
      %v1008 = vadd.f32 %v849, %v1007
      %v1009 = vpop.f32.mrb[0].mxu0
      %1010 = vmatprep.mubr.f32.mxu0 0.0
      %1011 = vmatmul.mubr.f32.gmra.mrb[0].mxu0 %v815
      %v1012 = vpop.f32.mrb[0].mxu0
      %v1013 = vadd.f32 %v849, %v1012
      %v1014 = vpop.f32.mrb[0].mxu0
      %1015 = vmatprep.mubr.f32.mxu0 0.0
      %1016 = vmatmul.mubr.f32.gmra.mrb[0].mxu0 %v816
      %v1017 = vpop.f32.mrb[0].mxu0
      %v1018 = vadd.f32 %v849, %v1017
      %v1019 = vpop.f32.mrb[0].mxu0
      %1020 = vmatprep.mubr.f32.mxu0 0.0
      %1021 = vmatmul.mubr.f32.gmra.mrb[0].mxu0 %v817
      %v1022 = vpop.f32.mrb[0].mxu0
      %v1023 = vadd.f32 %v849, %v1022
      %v1024 = vpop.f32.mrb[0].mxu0
      %1025 = vmatprep.mubr.f32.mxu0 0.0
      %1026 = vmatmul.mubr.f32.gmra.mrb[0].mxu0 %v818
      %v1027 = vpop.f32.mrb[0].mxu0
      %v1028 = vadd.f32 %v849, %v1027
      %v1029 = vpop.f32.mrb[0].mxu0
      %1030 = vmatprep.mubr.f32.mxu0 0.0
      %1031 = vmatmul.mubr.f32.gmra.mrb[0].mxu0 %v819
      %v1032 = vpop.f32.mrb[0].mxu0
      %v1033 = vadd.f32 %v849, %v1032
      %v1034 = vpop.f32.mrb[0].mxu0
      %1035 = vmatprep.mubr.f32.mxu0 0.0
      %1036 = vmatmul.mubr.f32.gmra.mrb[0].mxu0 %v820
      %v1037 = vpop.f32.mrb[0].mxu0
      %v1038 = vadd.f32 %v849, %v1037
      %v1039 = vpop.f32.mrb[0].mxu0
      %1040 = vmatprep.mubr.f32.mxu0 0.0
      %1041 = vmatmul.mubr.f32.gmra.mrb[0].mxu0 %v821
      %v1042 = vpop.f32.mrb[0].mxu0
      %v1043 = vadd.f32 %v849, %v1042
      %v1044 = vpop.f32.mrb[0].mxu0
      %1045 = vmatprep.mubr.f32.mxu0 0.0
      %1046 = vmatmul.mubr.f32.gmra.mrb[0].mxu0 %v822
      %v1047 = vpop.f32.mrb[0].mxu0
      %v1048 = vadd.f32 %v849, %v1047
      %v1049 = vpop.f32.mrb[0].mxu0
      %1050 = vmatprep.mubr.f32.mxu0 0.0
      %1051 = vmatmul.mubr.f32.gmra.mrb[0].mxu0 %v823
      %v1052 = vpop.f32.mrb[0].mxu0
      %v1053 = vadd.f32 %v849, %v1052
      %v1054 = vpop.f32.mrb[0].mxu0
      %1055 = vmatprep.mubr.f32.mxu0 0.0
      %1056 = vmatmul.mubr.f32.gmra.mrb[0].mxu0 %v824
      %v1057 = vpop.f32.mrb[0].mxu0
      %v1058 = vadd.f32 %v849, %v1057
      %v1059 = vpop.f32.mrb[0].mxu0
      %1060 = vmatprep.mubr.f32.mxu0 0.0
      %1061 = vmatmul.mubr.f32.gmra.mrb[0].mxu0 %v825
      %v1062 = vpop.f32.mrb[0].mxu0
      %v1063 = vadd.f32 %v849, %v1062
      %v1064 = vpop.f32.mrb[0].mxu0
      %1065 = vmatprep.mubr.f32.mxu0 0.0
      %1066 = vmatmul.mubr.f32.gmra.mrb[0].mxu0 %v826
      %v1067 = vpop.f32.mrb[0].mxu0
      %v1068 = vadd.f32 %v849, %v1067
      %v1069 = vpop.f32.mrb[0].mxu0
      %1070 = vmatprep.mubr.f32.mxu0 0.0
      %1071 = vmatmul.mubr.f32.gmra.mrb[0].mxu0 %v827
      %v1072 = vpop.f32.mrb[0].mxu0
      %v1073 = vadd.f32 %v849, %v1072
      %v1074 = vpop.f32.mrb[0].mxu0
      %1075 = vdwg.mxu0
      %v1076 = vmax.f32 %v918, 0.0
      %v1077 = vmax.f32 %v923, 0.0
      %v1078 = vmax.f32 %v928, 0.0
      %v1079 = vmax.f32 %v933, 0.0
      %v1080 = vmax.f32 %v938, 0.0
      %v1081 = vmax.f32 %v943, 0.0
      %v1082 = vmax.f32 %v948, 0.0
      %v1083 = vmax.f32 %v953, 0.0
      %v1084 = vmax.f32 %v958, 0.0
      %v1085 = vmax.f32 %v963, 0.0
      %v1086 = vmax.f32 %v968, 0.0
      %v1087 = vmax.f32 %v973, 0.0
      %v1088 = vmax.f32 %v978, 0.0
      %v1089 = vmax.f32 %v983, 0.0
      %v1090 = vmax.f32 %v988, 0.0
      %v1091 = vmax.f32 %v993, 0.0
      %v1092 = vmax.f32 %v998, 0.0
      %v1093 = vmax.f32 %v1003, 0.0
      %v1094 = vmax.f32 %v1008, 0.0
      %v1095 = vmax.f32 %v1013, 0.0
      %v1096 = vmax.f32 %v1018, 0.0
      %v1097 = vmax.f32 %v1023, 0.0
      %v1098 = vmax.f32 %v1028, 0.0
      %v1099 = vmax.f32 %v1033, 0.0
      %v1100 = vmax.f32 %v1038, 0.0
      %v1101 = vmax.f32 %v1043, 0.0
      %v1102 = vmax.f32 %v1048, 0.0
      %v1103 = vmax.f32 %v1053, 0.0
      %v1104 = vmax.f32 %v1058, 0.0
      %v1105 = vmax.f32 %v1063, 0.0
      %v1106 = vmax.f32 %v1068, 0.0
      %v1107 = vmax.f32 %v1073, 0.0
      %v1108 = vld [vmem:[%s5] sm:$0xff]
      %v1109 = vld [vmem:[%s5 + $0x8] sm:$0xff]
      %v1110 = vld [vmem:[%s5 + $0x10] sm:$0xff]
      %v1111 = vld [vmem:[%s5 + $0x18] sm:$0xff]
      %v1112 = vld [vmem:[%s5 + $0x20] sm:$0xff]
      %v1113 = vld [vmem:[%s5 + $0x28] sm:$0xff]
      %v1114 = vld [vmem:[%s5 + $0x30] sm:$0xff]
      %v1115 = vld [vmem:[%s5 + $0x38] sm:$0xff]
      %v1116 = vld [vmem:[%s5 + $0x40] sm:$0xff]
      %v1117 = vld [vmem:[%s5 + $0x48] sm:$0xff]
      %v1118 = vld [vmem:[%s5 + $0x50] sm:$0xff]
      %v1119 = vld [vmem:[%s5 + $0x58] sm:$0xff]
      %v1120 = vld [vmem:[%s5 + $0x60] sm:$0xff]
      %v1121 = vld [vmem:[%s5 + $0x68] sm:$0xff]
      %v1122 = vld [vmem:[%s5 + $0x70] sm:$0xff]
      %v1123 = vld [vmem:[%s5 + $0x78] sm:$0xff]
      %v1124 = vld [vmem:[%s5 + $0x80] sm:$0xff]
      %v1125 = vld [vmem:[%s5 + $0x88] sm:$0xff]
      %v1126 = vld [vmem:[%s5 + $0x90] sm:$0xff]
      %v1127 = vld [vmem:[%s5 + $0x98] sm:$0xff]
      %v1128 = vld [vmem:[%s5 + $0xa0] sm:$0xff]
      %v1129 = vld [vmem:[%s5 + $0xa8] sm:$0xff]
      %v1130 = vld [vmem:[%s5 + $0xb0] sm:$0xff]
      %v1131 = vld [vmem:[%s5 + $0xb8] sm:$0xff]
      %v1132 = vld [vmem:[%s5 + $0xc0] sm:$0xff]
      %v1133 = vld [vmem:[%s5 + $0xc8] sm:$0xff]
      %v1134 = vld [vmem:[%s5 + $0xd0] sm:$0xff]
      %v1135 = vld [vmem:[%s5 + $0xd8] sm:$0xff]
      %v1136 = vld [vmem:[%s5 + $0xe0] sm:$0xff]
      %v1137 = vld [vmem:[%s5 + $0xe8] sm:$0xff]
      %v1138 = vld [vmem:[%s5 + $0xf0] sm:$0xff]
      %v1139 = vld [vmem:[%s5 + $0xf8] sm:$0xff]
      %v1140 = vld [vmem:[%s5 + $0x100] sm:$0xff]
      %v1141 = vld [vmem:[%s5 + $0x108] sm:$0xff]
      %v1142 = vld [vmem:[%s5 + $0x110] sm:$0xff]
      %v1143 = vld [vmem:[%s5 + $0x118] sm:$0xff]
      %v1144 = vld [vmem:[%s5 + $0x120] sm:$0xff]
      %v1145 = vld [vmem:[%s5 + $0x128] sm:$0xff]
      %v1146 = vld [vmem:[%s5 + $0x130] sm:$0xff]
      %v1147 = vld [vmem:[%s5 + $0x138] sm:$0xff]
      %v1148 = vld [vmem:[%s5 + $0x140] sm:$0xff]
      %v1149 = vld [vmem:[%s5 + $0x148] sm:$0xff]
      %v1150 = vld [vmem:[%s5 + $0x150] sm:$0xff]
      %v1151 = vld [vmem:[%s5 + $0x158] sm:$0xff]
      %v1152 = vld [vmem:[%s5 + $0x160] sm:$0xff]
      %v1153 = vld [vmem:[%s5 + $0x168] sm:$0xff]
      %v1154 = vld [vmem:[%s5 + $0x170] sm:$0xff]
      %v1155 = vld [vmem:[%s5 + $0x178] sm:$0xff]
      %v1156 = vld [vmem:[%s6] sm:$0x7]
      %v1158 = vlaneseq
      %v1159 = vshrl.u32 %v1158, 7
      %v1160 = vsub.s32 0, %v1159
      %v1161 = vrot.slane %v1156, %v1160
      %v1162 = vlaneseq
      %v1163 = vshrl.u32 %v1162, 7
      %v1164 = vsub.s32 1, %v1163
      %v1165 = vrot.slane %v1156, %v1164
      %v1166 = vlaneseq
      %v1167 = vshrl.u32 %v1166, 7
      %v1168 = vsub.s32 2, %v1167
      %v1169 = vrot.slane %v1156, %v1168
      %1173 = vmatprep.subr.mxu0 %v1109
      %1174 = vmatpush1.msra.mxu0 %v1108
      %1175 = vmatprep.subr.mxu0 %v1112
      %1176 = vmatpush1.msra.mxu0 %v1111
      %1177 = vmatprep.subr.mxu0 %v1115
      %1178 = vmatpush1.msra.mxu0 %v1114
      %1179 = vmatprep.subr.mxu0 %v1118
      %1180 = vmatpush1.msra.mxu0 %v1117
      %1181 = vmatprep.subr.mxu0 %v1121
      %1182 = vmatpush1.msra.mxu0 %v1120
      %1183 = vmatprep.subr.mxu0 %v1124
      %1184 = vmatpush1.msra.mxu0 %v1123
      %1185 = vmatprep.subr.mxu0 %v1127
      %1186 = vmatpush1.msra.mxu0 %v1126
      %1187 = vmatprep.subr.mxu0 %v1130
      %1188 = vmatpush1.msra.mxu0 %v1129
      %1189 = vmatprep.subr.mxu0 %v1133
      %1190 = vmatpush1.msra.mxu0 %v1132
      %1191 = vmatprep.subr.mxu0 %v1136
      %1192 = vmatpush1.msra.mxu0 %v1135
      %1193 = vmatprep.subr.mxu0 %v1139
      %1194 = vmatpush1.msra.mxu0 %v1138
      %1195 = vmatprep.subr.mxu0 %v1142
      %1196 = vmatpush1.msra.mxu0 %v1141
      %1197 = vmatprep.subr.mxu0 %v1145
      %1198 = vmatpush1.msra.mxu0 %v1144
      %1199 = vmatprep.subr.mxu0 %v1148
      %1200 = vmatpush1.msra.mxu0 %v1147
      %1201 = vmatprep.subr.mxu0 %v1151
      %1202 = vmatpush1.msra.mxu0 %v1150
      %1203 = vmatprep.subr.mxu0 %v1154
      %1204 = vmatpush1.msra.mxu0 %v1153
      %1205 = vmatprep.subr.mxu0 0.0
      %1206 = vmatpush1.msra.mxu0 0.0
      %1207 = vmatprep.subr.mxu0 0.0
      %1208 = vmatpush1.msra.mxu0 0.0
      %1209 = vmatprep.subr.mxu0 0.0
      %1210 = vmatpush1.msra.mxu0 0.0
      %1211 = vmatprep.subr.mxu0 0.0
      %1212 = vmatpush1.msra.mxu0 0.0
      %1213 = vmatprep.subr.mxu0 0.0
      %1214 = vmatpush1.msra.mxu0 0.0
      %1215 = vmatprep.subr.mxu0 0.0
      %1216 = vmatpush1.msra.mxu0 0.0
      %1217 = vmatprep.subr.mxu0 0.0
      %1218 = vmatpush1.msra.mxu0 0.0
      %1219 = vmatprep.subr.mxu0 0.0
      %1220 = vmatpush1.msra.mxu0 0.0
      %1221 = vmatprep.subr.mxu0 0.0
      %1222 = vmatpush1.msra.mxu0 0.0
      %1223 = vmatprep.subr.mxu0 0.0
      %1224 = vmatpush1.msra.mxu0 0.0
      %1225 = vmatprep.subr.mxu0 0.0
      %1226 = vmatpush1.msra.mxu0 0.0
      %1227 = vmatprep.subr.mxu0 0.0
      %1228 = vmatpush1.msra.mxu0 0.0
      %1229 = vmatprep.subr.mxu0 0.0
      %1230 = vmatpush1.msra.mxu0 0.0
      %1231 = vmatprep.subr.mxu0 0.0
      %1232 = vmatpush1.msra.mxu0 0.0
      %1233 = vmatprep.subr.mxu0 0.0
      %1234 = vmatpush1.msra.mxu0 0.0
      %1235 = vmatprep.subr.mxu0 0.0
      %1236 = vmatpush1.msra.mxu0 0.0
      %1237 = vmatprep.mubr.f32.mxu0 0.0
      %1238 = vmatmul.mubr.f32.gmra.mrb[0].mxu0 %v1076
      %v1239 = vpop.f32.mrb[0].mxu0
      %v1240 = vadd.f32 %v1161, %v1239
      %v1241 = vpop.f32.mrb[0].mxu0
      %v1242 = vadd.f32 %v1165, %v1241
      %1243 = vmatprep.mubr.f32.mxu0 0.0
      %1244 = vmatmul.mubr.f32.gmra.mrb[0].mxu0 %v1077
      %v1245 = vpop.f32.mrb[0].mxu0
      %v1246 = vadd.f32 %v1161, %v1245
      %v1247 = vpop.f32.mrb[0].mxu0
      %v1248 = vadd.f32 %v1165, %v1247
      %1249 = vmatprep.mubr.f32.mxu0 0.0
      %1250 = vmatmul.mubr.f32.gmra.mrb[0].mxu0 %v1078
      %v1251 = vpop.f32.mrb[0].mxu0
      %v1252 = vadd.f32 %v1161, %v1251
      %v1253 = vpop.f32.mrb[0].mxu0
      %v1254 = vadd.f32 %v1165, %v1253
      %1255 = vmatprep.mubr.f32.mxu0 0.0
      %1256 = vmatmul.mubr.f32.gmra.mrb[0].mxu0 %v1079
      %v1257 = vpop.f32.mrb[0].mxu0
      %v1258 = vadd.f32 %v1161, %v1257
      %v1259 = vpop.f32.mrb[0].mxu0
      %v1260 = vadd.f32 %v1165, %v1259
      %1261 = vmatprep.mubr.f32.mxu0 0.0
      %1262 = vmatmul.mubr.f32.gmra.mrb[0].mxu0 %v1080
      %v1263 = vpop.f32.mrb[0].mxu0
      %v1264 = vadd.f32 %v1161, %v1263
      %v1265 = vpop.f32.mrb[0].mxu0
      %v1266 = vadd.f32 %v1165, %v1265
      %1267 = vmatprep.mubr.f32.mxu0 0.0
      %1268 = vmatmul.mubr.f32.gmra.mrb[0].mxu0 %v1081
      %v1269 = vpop.f32.mrb[0].mxu0
      %v1270 = vadd.f32 %v1161, %v1269
      %v1271 = vpop.f32.mrb[0].mxu0
      %v1272 = vadd.f32 %v1165, %v1271
      %1273 = vmatprep.mubr.f32.mxu0 0.0
      %1274 = vmatmul.mubr.f32.gmra.mrb[0].mxu0 %v1082
      %v1275 = vpop.f32.mrb[0].mxu0
      %v1276 = vadd.f32 %v1161, %v1275
      %v1277 = vpop.f32.mrb[0].mxu0
      %v1278 = vadd.f32 %v1165, %v1277
      %1279 = vmatprep.mubr.f32.mxu0 0.0
      %1280 = vmatmul.mubr.f32.gmra.mrb[0].mxu0 %v1083
      %v1281 = vpop.f32.mrb[0].mxu0
      %v1282 = vadd.f32 %v1161, %v1281
      %v1283 = vpop.f32.mrb[0].mxu0
      %v1284 = vadd.f32 %v1165, %v1283
      %1285 = vmatprep.mubr.f32.mxu0 0.0
      %1286 = vmatmul.mubr.f32.gmra.mrb[0].mxu0 %v1084
      %v1287 = vpop.f32.mrb[0].mxu0
      %v1288 = vadd.f32 %v1161, %v1287
      %v1289 = vpop.f32.mrb[0].mxu0
      %v1290 = vadd.f32 %v1165, %v1289
      %1291 = vmatprep.mubr.f32.mxu0 0.0
      %1292 = vmatmul.mubr.f32.gmra.mrb[0].mxu0 %v1085
      %v1293 = vpop.f32.mrb[0].mxu0
      %v1294 = vadd.f32 %v1161, %v1293
      %v1295 = vpop.f32.mrb[0].mxu0
      %v1296 = vadd.f32 %v1165, %v1295
      %1297 = vmatprep.mubr.f32.mxu0 0.0
      %1298 = vmatmul.mubr.f32.gmra.mrb[0].mxu0 %v1086
      %v1299 = vpop.f32.mrb[0].mxu0
      %v1300 = vadd.f32 %v1161, %v1299
      %v1301 = vpop.f32.mrb[0].mxu0
      %v1302 = vadd.f32 %v1165, %v1301
      %1303 = vmatprep.mubr.f32.mxu0 0.0
      %1304 = vmatmul.mubr.f32.gmra.mrb[0].mxu0 %v1087
      %v1305 = vpop.f32.mrb[0].mxu0
      %v1306 = vadd.f32 %v1161, %v1305
      %v1307 = vpop.f32.mrb[0].mxu0
      %v1308 = vadd.f32 %v1165, %v1307
      %1309 = vmatprep.mubr.f32.mxu0 0.0
      %1310 = vmatmul.mubr.f32.gmra.mrb[0].mxu0 %v1088
      %v1311 = vpop.f32.mrb[0].mxu0
      %v1312 = vadd.f32 %v1161, %v1311
      %v1313 = vpop.f32.mrb[0].mxu0
      %v1314 = vadd.f32 %v1165, %v1313
      %1315 = vmatprep.mubr.f32.mxu0 0.0
      %1316 = vmatmul.mubr.f32.gmra.mrb[0].mxu0 %v1089
      %v1317 = vpop.f32.mrb[0].mxu0
      %v1318 = vadd.f32 %v1161, %v1317
      %v1319 = vpop.f32.mrb[0].mxu0
      %v1320 = vadd.f32 %v1165, %v1319
      %1321 = vmatprep.mubr.f32.mxu0 0.0
      %1322 = vmatmul.mubr.f32.gmra.mrb[0].mxu0 %v1090
      %v1323 = vpop.f32.mrb[0].mxu0
      %v1324 = vadd.f32 %v1161, %v1323
      %v1325 = vpop.f32.mrb[0].mxu0
      %v1326 = vadd.f32 %v1165, %v1325
      %1327 = vmatprep.mubr.f32.mxu0 0.0
      %1328 = vmatmul.mubr.f32.gmra.mrb[0].mxu0 %v1091
      %v1329 = vpop.f32.mrb[0].mxu0
      %v1330 = vadd.f32 %v1161, %v1329
      %v1331 = vpop.f32.mrb[0].mxu0
      %v1332 = vadd.f32 %v1165, %v1331
      %1333 = vmatprep.mubr.f32.mxu0 0.0
      %1334 = vmatmul.mubr.f32.gmra.mrb[0].mxu0 %v1092
      %v1335 = vpop.f32.mrb[0].mxu0
      %v1336 = vadd.f32 %v1161, %v1335
      %v1337 = vpop.f32.mrb[0].mxu0
      %v1338 = vadd.f32 %v1165, %v1337
      %1339 = vmatprep.mubr.f32.mxu0 0.0
      %1340 = vmatmul.mubr.f32.gmra.mrb[0].mxu0 %v1093
      %v1341 = vpop.f32.mrb[0].mxu0
      %v1342 = vadd.f32 %v1161, %v1341
      %v1343 = vpop.f32.mrb[0].mxu0
      %v1344 = vadd.f32 %v1165, %v1343
      %1345 = vmatprep.mubr.f32.mxu0 0.0
      %1346 = vmatmul.mubr.f32.gmra.mrb[0].mxu0 %v1094
      %v1347 = vpop.f32.mrb[0].mxu0
      %v1348 = vadd.f32 %v1161, %v1347
      %v1349 = vpop.f32.mrb[0].mxu0
      %v1350 = vadd.f32 %v1165, %v1349
      %1351 = vmatprep.mubr.f32.mxu0 0.0
      %1352 = vmatmul.mubr.f32.gmra.mrb[0].mxu0 %v1095
      %v1353 = vpop.f32.mrb[0].mxu0
      %v1354 = vadd.f32 %v1161, %v1353
      %v1355 = vpop.f32.mrb[0].mxu0
      %v1356 = vadd.f32 %v1165, %v1355
      %1357 = vmatprep.mubr.f32.mxu0 0.0
      %1358 = vmatmul.mubr.f32.gmra.mrb[0].mxu0 %v1096
      %v1359 = vpop.f32.mrb[0].mxu0
      %v1360 = vadd.f32 %v1161, %v1359
      %v1361 = vpop.f32.mrb[0].mxu0
      %v1362 = vadd.f32 %v1165, %v1361
      %1363 = vmatprep.mubr.f32.mxu0 0.0
      %1364 = vmatmul.mubr.f32.gmra.mrb[0].mxu0 %v1097
      %v1365 = vpop.f32.mrb[0].mxu0
      %v1366 = vadd.f32 %v1161, %v1365
      %v1367 = vpop.f32.mrb[0].mxu0
      %v1368 = vadd.f32 %v1165, %v1367
      %1369 = vmatprep.mubr.f32.mxu0 0.0
      %1370 = vmatmul.mubr.f32.gmra.mrb[0].mxu0 %v1098
      %v1371 = vpop.f32.mrb[0].mxu0
      %v1372 = vadd.f32 %v1161, %v1371
      %v1373 = vpop.f32.mrb[0].mxu0
      %v1374 = vadd.f32 %v1165, %v1373
      %1375 = vmatprep.mubr.f32.mxu0 0.0
      %1376 = vmatmul.mubr.f32.gmra.mrb[0].mxu0 %v1099
      %v1377 = vpop.f32.mrb[0].mxu0
      %v1378 = vadd.f32 %v1161, %v1377
      %v1379 = vpop.f32.mrb[0].mxu0
      %v1380 = vadd.f32 %v1165, %v1379
      %1381 = vmatprep.mubr.f32.mxu0 0.0
      %1382 = vmatmul.mubr.f32.gmra.mrb[0].mxu0 %v1100
      %v1383 = vpop.f32.mrb[0].mxu0
      %v1384 = vadd.f32 %v1161, %v1383
      %v1385 = vpop.f32.mrb[0].mxu0
      %v1386 = vadd.f32 %v1165, %v1385
      %1387 = vmatprep.mubr.f32.mxu0 0.0
      %1388 = vmatmul.mubr.f32.gmra.mrb[0].mxu0 %v1101
      %v1389 = vpop.f32.mrb[0].mxu0
      %v1390 = vadd.f32 %v1161, %v1389
      %v1391 = vpop.f32.mrb[0].mxu0
      %v1392 = vadd.f32 %v1165, %v1391
      %1393 = vmatprep.mubr.f32.mxu0 0.0
      %1394 = vmatmul.mubr.f32.gmra.mrb[0].mxu0 %v1102
      %v1395 = vpop.f32.mrb[0].mxu0
      %v1396 = vadd.f32 %v1161, %v1395
      %v1397 = vpop.f32.mrb[0].mxu0
      %v1398 = vadd.f32 %v1165, %v1397
      %1399 = vmatprep.mubr.f32.mxu0 0.0
      %1400 = vmatmul.mubr.f32.gmra.mrb[0].mxu0 %v1103
      %v1401 = vpop.f32.mrb[0].mxu0
      %v1402 = vadd.f32 %v1161, %v1401
      %v1403 = vpop.f32.mrb[0].mxu0
      %v1404 = vadd.f32 %v1165, %v1403
      %1405 = vmatprep.mubr.f32.mxu0 0.0
      %1406 = vmatmul.mubr.f32.gmra.mrb[0].mxu0 %v1104
      %v1407 = vpop.f32.mrb[0].mxu0
      %v1408 = vadd.f32 %v1161, %v1407
      %v1409 = vpop.f32.mrb[0].mxu0
      %v1410 = vadd.f32 %v1165, %v1409
      %1411 = vmatprep.mubr.f32.mxu0 0.0
      %1412 = vmatmul.mubr.f32.gmra.mrb[0].mxu0 %v1105
      %v1413 = vpop.f32.mrb[0].mxu0
      %v1414 = vadd.f32 %v1161, %v1413
      %v1415 = vpop.f32.mrb[0].mxu0
      %v1416 = vadd.f32 %v1165, %v1415
      %1417 = vmatprep.mubr.f32.mxu0 0.0
      %1418 = vmatmul.mubr.f32.gmra.mrb[0].mxu0 %v1106
      %v1419 = vpop.f32.mrb[0].mxu0
      %v1420 = vadd.f32 %v1161, %v1419
      %v1421 = vpop.f32.mrb[0].mxu0
      %v1422 = vadd.f32 %v1165, %v1421
      %1423 = vmatprep.mubr.f32.mxu0 0.0
      %1424 = vmatmul.mubr.f32.gmra.mrb[0].mxu0 %v1107
      %v1425 = vpop.f32.mrb[0].mxu0
      %v1426 = vadd.f32 %v1161, %v1425
      %v1427 = vpop.f32.mrb[0].mxu0
      %v1428 = vadd.f32 %v1165, %v1427
      %1429 = vdwg.mxu0
      %1430 = vmatprep.subr.mxu0 0.0
      %1431 = vmatpush1.msra.mxu0 %v1110
      %1432 = vmatprep.subr.mxu0 0.0
      %1433 = vmatpush1.msra.mxu0 %v1113
      %1434 = vmatprep.subr.mxu0 0.0
      %1435 = vmatpush1.msra.mxu0 %v1116
      %1436 = vmatprep.subr.mxu0 0.0
      %1437 = vmatpush1.msra.mxu0 %v1119
      %1438 = vmatprep.subr.mxu0 0.0
      %1439 = vmatpush1.msra.mxu0 %v1122
      %1440 = vmatprep.subr.mxu0 0.0
      %1441 = vmatpush1.msra.mxu0 %v1125
      %1442 = vmatprep.subr.mxu0 0.0
      %1443 = vmatpush1.msra.mxu0 %v1128
      %1444 = vmatprep.subr.mxu0 0.0
      %1445 = vmatpush1.msra.mxu0 %v1131
      %1446 = vmatprep.subr.mxu0 0.0
      %1447 = vmatpush1.msra.mxu0 %v1134
      %1448 = vmatprep.subr.mxu0 0.0
      %1449 = vmatpush1.msra.mxu0 %v1137
      %1450 = vmatprep.subr.mxu0 0.0
      %1451 = vmatpush1.msra.mxu0 %v1140
      %1452 = vmatprep.subr.mxu0 0.0
      %1453 = vmatpush1.msra.mxu0 %v1143
      %1454 = vmatprep.subr.mxu0 0.0
      %1455 = vmatpush1.msra.mxu0 %v1146
      %1456 = vmatprep.subr.mxu0 0.0
      %1457 = vmatpush1.msra.mxu0 %v1149
      %1458 = vmatprep.subr.mxu0 0.0
      %1459 = vmatpush1.msra.mxu0 %v1152
      %1460 = vmatprep.subr.mxu0 0.0
      %1461 = vmatpush1.msra.mxu0 %v1155
      %1462 = vmatprep.subr.mxu0 0.0
      %1463 = vmatpush1.msra.mxu0 0.0
      %1464 = vmatprep.subr.mxu0 0.0
      %1465 = vmatpush1.msra.mxu0 0.0
      %1466 = vmatprep.subr.mxu0 0.0
      %1467 = vmatpush1.msra.mxu0 0.0
      %1468 = vmatprep.subr.mxu0 0.0
      %1469 = vmatpush1.msra.mxu0 0.0
      %1470 = vmatprep.subr.mxu0 0.0
      %1471 = vmatpush1.msra.mxu0 0.0
      %1472 = vmatprep.subr.mxu0 0.0
      %1473 = vmatpush1.msra.mxu0 0.0
      %1474 = vmatprep.subr.mxu0 0.0
      %1475 = vmatpush1.msra.mxu0 0.0
      %1476 = vmatprep.subr.mxu0 0.0
      %1477 = vmatpush1.msra.mxu0 0.0
      %1478 = vmatprep.subr.mxu0 0.0
      %1479 = vmatpush1.msra.mxu0 0.0
      %1480 = vmatprep.subr.mxu0 0.0
      %1481 = vmatpush1.msra.mxu0 0.0
      %1482 = vmatprep.subr.mxu0 0.0
      %1483 = vmatpush1.msra.mxu0 0.0
      %1484 = vmatprep.subr.mxu0 0.0
      %1485 = vmatpush1.msra.mxu0 0.0
      %1486 = vmatprep.subr.mxu0 0.0
      %1487 = vmatpush1.msra.mxu0 0.0
      %1488 = vmatprep.subr.mxu0 0.0
      %1489 = vmatpush1.msra.mxu0 0.0
      %1490 = vmatprep.subr.mxu0 0.0
      %1491 = vmatpush1.msra.mxu0 0.0
      %1492 = vmatprep.subr.mxu0 0.0
      %1493 = vmatpush1.msra.mxu0 0.0
      %1494 = vmatprep.mubr.f32.mxu0 0.0
      %1495 = vmatmul.mubr.f32.gmra.mrb[0].mxu0 %v1076
      %v1496 = vpop.f32.mrb[0].mxu0
      %v1497 = vadd.f32 %v1169, %v1496
      %v1498 = vpop.f32.mrb[0].mxu0
      %1499 = vmatprep.mubr.f32.mxu0 0.0
      %1500 = vmatmul.mubr.f32.gmra.mrb[0].mxu0 %v1077
      %v1501 = vpop.f32.mrb[0].mxu0
      %v1502 = vadd.f32 %v1169, %v1501
      %v1503 = vpop.f32.mrb[0].mxu0
      %1504 = vmatprep.mubr.f32.mxu0 0.0
      %1505 = vmatmul.mubr.f32.gmra.mrb[0].mxu0 %v1078
      %v1506 = vpop.f32.mrb[0].mxu0
      %v1507 = vadd.f32 %v1169, %v1506
      %v1508 = vpop.f32.mrb[0].mxu0
      %1509 = vmatprep.mubr.f32.mxu0 0.0
      %1510 = vmatmul.mubr.f32.gmra.mrb[0].mxu0 %v1079
      %v1511 = vpop.f32.mrb[0].mxu0
      %v1512 = vadd.f32 %v1169, %v1511
      %v1513 = vpop.f32.mrb[0].mxu0
      %1514 = vmatprep.mubr.f32.mxu0 0.0
      %1515 = vmatmul.mubr.f32.gmra.mrb[0].mxu0 %v1080
      %v1516 = vpop.f32.mrb[0].mxu0
      %v1517 = vadd.f32 %v1169, %v1516
      %v1518 = vpop.f32.mrb[0].mxu0
      %1519 = vmatprep.mubr.f32.mxu0 0.0
      %1520 = vmatmul.mubr.f32.gmra.mrb[0].mxu0 %v1081
      %v1521 = vpop.f32.mrb[0].mxu0
      %v1522 = vadd.f32 %v1169, %v1521
      %v1523 = vpop.f32.mrb[0].mxu0
      %1524 = vmatprep.mubr.f32.mxu0 0.0
      %1525 = vmatmul.mubr.f32.gmra.mrb[0].mxu0 %v1082
      %v1526 = vpop.f32.mrb[0].mxu0
      %v1527 = vadd.f32 %v1169, %v1526
      %v1528 = vpop.f32.mrb[0].mxu0
      %1529 = vmatprep.mubr.f32.mxu0 0.0
      %1530 = vmatmul.mubr.f32.gmra.mrb[0].mxu0 %v1083
      %v1531 = vpop.f32.mrb[0].mxu0
      %v1532 = vadd.f32 %v1169, %v1531
      %v1533 = vpop.f32.mrb[0].mxu0
      %1534 = vmatprep.mubr.f32.mxu0 0.0
      %1535 = vmatmul.mubr.f32.gmra.mrb[0].mxu0 %v1084
      %v1536 = vpop.f32.mrb[0].mxu0
      %v1537 = vadd.f32 %v1169, %v1536
      %v1538 = vpop.f32.mrb[0].mxu0
      %1539 = vmatprep.mubr.f32.mxu0 0.0
      %1540 = vmatmul.mubr.f32.gmra.mrb[0].mxu0 %v1085
      %v1541 = vpop.f32.mrb[0].mxu0
      %v1542 = vadd.f32 %v1169, %v1541
      %v1543 = vpop.f32.mrb[0].mxu0
      %1544 = vmatprep.mubr.f32.mxu0 0.0
      %1545 = vmatmul.mubr.f32.gmra.mrb[0].mxu0 %v1086
      %v1546 = vpop.f32.mrb[0].mxu0
      %v1547 = vadd.f32 %v1169, %v1546
      %v1548 = vpop.f32.mrb[0].mxu0
      %1549 = vmatprep.mubr.f32.mxu0 0.0
      %1550 = vmatmul.mubr.f32.gmra.mrb[0].mxu0 %v1087
      %v1551 = vpop.f32.mrb[0].mxu0
      %v1552 = vadd.f32 %v1169, %v1551
      %v1553 = vpop.f32.mrb[0].mxu0
      %1554 = vmatprep.mubr.f32.mxu0 0.0
      %1555 = vmatmul.mubr.f32.gmra.mrb[0].mxu0 %v1088
      %v1556 = vpop.f32.mrb[0].mxu0
      %v1557 = vadd.f32 %v1169, %v1556
      %v1558 = vpop.f32.mrb[0].mxu0
      %1559 = vmatprep.mubr.f32.mxu0 0.0
      %1560 = vmatmul.mubr.f32.gmra.mrb[0].mxu0 %v1089
      %v1561 = vpop.f32.mrb[0].mxu0
      %v1562 = vadd.f32 %v1169, %v1561
      %v1563 = vpop.f32.mrb[0].mxu0
      %1564 = vmatprep.mubr.f32.mxu0 0.0
      %1565 = vmatmul.mubr.f32.gmra.mrb[0].mxu0 %v1090
      %v1566 = vpop.f32.mrb[0].mxu0
      %v1567 = vadd.f32 %v1169, %v1566
      %v1568 = vpop.f32.mrb[0].mxu0
      %1569 = vmatprep.mubr.f32.mxu0 0.0
      %1570 = vmatmul.mubr.f32.gmra.mrb[0].mxu0 %v1091
      %v1571 = vpop.f32.mrb[0].mxu0
      %v1572 = vadd.f32 %v1169, %v1571
      %v1573 = vpop.f32.mrb[0].mxu0
      %1574 = vmatprep.mubr.f32.mxu0 0.0
      %1575 = vmatmul.mubr.f32.gmra.mrb[0].mxu0 %v1092
      %v1576 = vpop.f32.mrb[0].mxu0
      %v1577 = vadd.f32 %v1169, %v1576
      %v1578 = vpop.f32.mrb[0].mxu0
      %1579 = vmatprep.mubr.f32.mxu0 0.0
      %1580 = vmatmul.mubr.f32.gmra.mrb[0].mxu0 %v1093
      %v1581 = vpop.f32.mrb[0].mxu0
      %v1582 = vadd.f32 %v1169, %v1581
      %v1583 = vpop.f32.mrb[0].mxu0
      %1584 = vmatprep.mubr.f32.mxu0 0.0
      %1585 = vmatmul.mubr.f32.gmra.mrb[0].mxu0 %v1094
      %v1586 = vpop.f32.mrb[0].mxu0
      %v1587 = vadd.f32 %v1169, %v1586
      %v1588 = vpop.f32.mrb[0].mxu0
      %1589 = vmatprep.mubr.f32.mxu0 0.0
      %1590 = vmatmul.mubr.f32.gmra.mrb[0].mxu0 %v1095
      %v1591 = vpop.f32.mrb[0].mxu0
      %v1592 = vadd.f32 %v1169, %v1591
      %v1593 = vpop.f32.mrb[0].mxu0
      %1594 = vmatprep.mubr.f32.mxu0 0.0
      %1595 = vmatmul.mubr.f32.gmra.mrb[0].mxu0 %v1096
      %v1596 = vpop.f32.mrb[0].mxu0
      %v1597 = vadd.f32 %v1169, %v1596
      %v1598 = vpop.f32.mrb[0].mxu0
      %1599 = vmatprep.mubr.f32.mxu0 0.0
      %1600 = vmatmul.mubr.f32.gmra.mrb[0].mxu0 %v1097
      %v1601 = vpop.f32.mrb[0].mxu0
      %v1602 = vadd.f32 %v1169, %v1601
      %v1603 = vpop.f32.mrb[0].mxu0
      %1604 = vmatprep.mubr.f32.mxu0 0.0
      %1605 = vmatmul.mubr.f32.gmra.mrb[0].mxu0 %v1098
      %v1606 = vpop.f32.mrb[0].mxu0
      %v1607 = vadd.f32 %v1169, %v1606
      %v1608 = vpop.f32.mrb[0].mxu0
      %1609 = vmatprep.mubr.f32.mxu0 0.0
      %1610 = vmatmul.mubr.f32.gmra.mrb[0].mxu0 %v1099
      %v1611 = vpop.f32.mrb[0].mxu0
      %v1612 = vadd.f32 %v1169, %v1611
      %v1613 = vpop.f32.mrb[0].mxu0
      %1614 = vmatprep.mubr.f32.mxu0 0.0
      %1615 = vmatmul.mubr.f32.gmra.mrb[0].mxu0 %v1100
      %v1616 = vpop.f32.mrb[0].mxu0
      %v1617 = vadd.f32 %v1169, %v1616
      %v1618 = vpop.f32.mrb[0].mxu0
      %1619 = vmatprep.mubr.f32.mxu0 0.0
      %1620 = vmatmul.mubr.f32.gmra.mrb[0].mxu0 %v1101
      %v1621 = vpop.f32.mrb[0].mxu0
      %v1622 = vadd.f32 %v1169, %v1621
      %v1623 = vpop.f32.mrb[0].mxu0
      %1624 = vmatprep.mubr.f32.mxu0 0.0
      %1625 = vmatmul.mubr.f32.gmra.mrb[0].mxu0 %v1102
      %v1626 = vpop.f32.mrb[0].mxu0
      %v1627 = vadd.f32 %v1169, %v1626
      %v1628 = vpop.f32.mrb[0].mxu0
      %1629 = vmatprep.mubr.f32.mxu0 0.0
      %1630 = vmatmul.mubr.f32.gmra.mrb[0].mxu0 %v1103
      %v1631 = vpop.f32.mrb[0].mxu0
      %v1632 = vadd.f32 %v1169, %v1631
      %v1633 = vpop.f32.mrb[0].mxu0
      %1634 = vmatprep.mubr.f32.mxu0 0.0
      %1635 = vmatmul.mubr.f32.gmra.mrb[0].mxu0 %v1104
      %v1636 = vpop.f32.mrb[0].mxu0
      %v1637 = vadd.f32 %v1169, %v1636
      %v1638 = vpop.f32.mrb[0].mxu0
      %1639 = vmatprep.mubr.f32.mxu0 0.0
      %1640 = vmatmul.mubr.f32.gmra.mrb[0].mxu0 %v1105
      %v1641 = vpop.f32.mrb[0].mxu0
      %v1642 = vadd.f32 %v1169, %v1641
      %v1643 = vpop.f32.mrb[0].mxu0
      %1644 = vmatprep.mubr.f32.mxu0 0.0
      %1645 = vmatmul.mubr.f32.gmra.mrb[0].mxu0 %v1106
      %v1646 = vpop.f32.mrb[0].mxu0
      %v1647 = vadd.f32 %v1169, %v1646
      %v1648 = vpop.f32.mrb[0].mxu0
      %1649 = vmatprep.mubr.f32.mxu0 0.0
      %1650 = vmatmul.mubr.f32.gmra.mrb[0].mxu0 %v1107
      %v1651 = vpop.f32.mrb[0].mxu0
      %v1652 = vadd.f32 %v1169, %v1651
      %v1653 = vpop.f32.mrb[0].mxu0
      %1654 = vdwg.mxu0
      %v1655 = vmax.f32 %v1240, 0.0
      %v1656 = vmax.f32 %v1242, 0.0
      %v1657 = vmax.f32 %v1497, 0.0
      %v1658 = vmax.f32 %v1246, 0.0
      %v1659 = vmax.f32 %v1248, 0.0
      %v1660 = vmax.f32 %v1502, 0.0
      %v1661 = vmax.f32 %v1252, 0.0
      %v1662 = vmax.f32 %v1254, 0.0
      %v1663 = vmax.f32 %v1507, 0.0
      %v1664 = vmax.f32 %v1258, 0.0
      %v1665 = vmax.f32 %v1260, 0.0
      %v1666 = vmax.f32 %v1512, 0.0
      %v1667 = vmax.f32 %v1264, 0.0
      %v1668 = vmax.f32 %v1266, 0.0
      %v1669 = vmax.f32 %v1517, 0.0
      %v1670 = vmax.f32 %v1270, 0.0
      %v1671 = vmax.f32 %v1272, 0.0
      %v1672 = vmax.f32 %v1522, 0.0
      %v1673 = vmax.f32 %v1276, 0.0
      %v1674 = vmax.f32 %v1278, 0.0
      %v1675 = vmax.f32 %v1527, 0.0
      %v1676 = vmax.f32 %v1282, 0.0
      %v1677 = vmax.f32 %v1284, 0.0
      %v1678 = vmax.f32 %v1532, 0.0
      %v1679 = vmax.f32 %v1288, 0.0
      %v1680 = vmax.f32 %v1290, 0.0
      %v1681 = vmax.f32 %v1537, 0.0
      %v1682 = vmax.f32 %v1294, 0.0
      %v1683 = vmax.f32 %v1296, 0.0
      %v1684 = vmax.f32 %v1542, 0.0
      %v1685 = vmax.f32 %v1300, 0.0
      %v1686 = vmax.f32 %v1302, 0.0
      %v1687 = vmax.f32 %v1547, 0.0
      %v1688 = vmax.f32 %v1306, 0.0
      %v1689 = vmax.f32 %v1308, 0.0
      %v1690 = vmax.f32 %v1552, 0.0
      %v1691 = vmax.f32 %v1312, 0.0
      %v1692 = vmax.f32 %v1314, 0.0
      %v1693 = vmax.f32 %v1557, 0.0
      %v1694 = vmax.f32 %v1318, 0.0
      %v1695 = vmax.f32 %v1320, 0.0
      %v1696 = vmax.f32 %v1562, 0.0
      %v1697 = vmax.f32 %v1324, 0.0
      %v1698 = vmax.f32 %v1326, 0.0
      %v1699 = vmax.f32 %v1567, 0.0
      %v1700 = vmax.f32 %v1330, 0.0
      %v1701 = vmax.f32 %v1332, 0.0
      %v1702 = vmax.f32 %v1572, 0.0
      %v1703 = vmax.f32 %v1336, 0.0
      %v1704 = vmax.f32 %v1338, 0.0
      %v1705 = vmax.f32 %v1577, 0.0
      %v1706 = vmax.f32 %v1342, 0.0
      %v1707 = vmax.f32 %v1344, 0.0
      %v1708 = vmax.f32 %v1582, 0.0
      %v1709 = vmax.f32 %v1348, 0.0
      %v1710 = vmax.f32 %v1350, 0.0
      %v1711 = vmax.f32 %v1587, 0.0
      %v1712 = vmax.f32 %v1354, 0.0
      %v1713 = vmax.f32 %v1356, 0.0
      %v1714 = vmax.f32 %v1592, 0.0
      %v1715 = vmax.f32 %v1360, 0.0
      %v1716 = vmax.f32 %v1362, 0.0
      %v1717 = vmax.f32 %v1597, 0.0
      %v1718 = vmax.f32 %v1366, 0.0
      %v1719 = vmax.f32 %v1368, 0.0
      %v1720 = vmax.f32 %v1602, 0.0
      %v1721 = vmax.f32 %v1372, 0.0
      %v1722 = vmax.f32 %v1374, 0.0
      %v1723 = vmax.f32 %v1607, 0.0
      %v1724 = vmax.f32 %v1378, 0.0
      %v1725 = vmax.f32 %v1380, 0.0
      %v1726 = vmax.f32 %v1612, 0.0
      %v1727 = vmax.f32 %v1384, 0.0
      %v1728 = vmax.f32 %v1386, 0.0
      %v1729 = vmax.f32 %v1617, 0.0
      %v1730 = vmax.f32 %v1390, 0.0
      %v1731 = vmax.f32 %v1392, 0.0
      %v1732 = vmax.f32 %v1622, 0.0
      %v1733 = vmax.f32 %v1396, 0.0
      %v1734 = vmax.f32 %v1398, 0.0
      %v1735 = vmax.f32 %v1627, 0.0
      %v1736 = vmax.f32 %v1402, 0.0
      %v1737 = vmax.f32 %v1404, 0.0
      %v1738 = vmax.f32 %v1632, 0.0
      %v1739 = vmax.f32 %v1408, 0.0
      %v1740 = vmax.f32 %v1410, 0.0
      %v1741 = vmax.f32 %v1637, 0.0
      %v1742 = vmax.f32 %v1414, 0.0
      %v1743 = vmax.f32 %v1416, 0.0
      %v1744 = vmax.f32 %v1642, 0.0
      %v1745 = vmax.f32 %v1420, 0.0
      %v1746 = vmax.f32 %v1422, 0.0
      %v1747 = vmax.f32 %v1647, 0.0
      %v1748 = vmax.f32 %v1426, 0.0
      %v1749 = vmax.f32 %v1428, 0.0
      %v1750 = vmax.f32 %v1652, 0.0
      %v1751 = vld [vmem:[%s7] sm:$0xff]
      %v1752 = vld [vmem:[%s7 + $0x8] sm:$0xff]
      %v1753 = vld [vmem:[%s7 + $0x10] sm:$0xff]
      %v1754 = vld [vmem:[%s7 + $0x18] sm:$0xff]
      %v1755 = vld [vmem:[%s7 + $0x20] sm:$0xff]
      %v1756 = vld [vmem:[%s7 + $0x28] sm:$0xff]
      %v1757 = vld [vmem:[%s7 + $0x30] sm:$0xff]
      %v1758 = vld [vmem:[%s7 + $0x38] sm:$0xff]
      %v1759 = vld [vmem:[%s7 + $0x40] sm:$0xff]
      %v1760 = vld [vmem:[%s7 + $0x48] sm:$0xff]
      %v1761 = vld [vmem:[%s7 + $0x50] sm:$0xff]
      %v1762 = vld [vmem:[%s7 + $0x58] sm:$0xff]
      %v1763 = vld [vmem:[%s7 + $0x60] sm:$0xff]
      %v1764 = vld [vmem:[%s7 + $0x68] sm:$0xff]
      %v1765 = vld [vmem:[%s7 + $0x70] sm:$0xff]
      %v1766 = vld [vmem:[%s7 + $0x78] sm:$0xff]
      %v1767 = vld [vmem:[%s7 + $0x80] sm:$0xff]
      %v1768 = vld [vmem:[%s7 + $0x88] sm:$0xff]
      %v1769 = vld [vmem:[%s7 + $0x90] sm:$0xff]
      %v1770 = vld [vmem:[%s7 + $0x98] sm:$0xff]
      %v1771 = vld [vmem:[%s7 + $0xa0] sm:$0xff]
      %v1772 = vld [vmem:[%s7 + $0xa8] sm:$0xff]
      %v1773 = vld [vmem:[%s7 + $0xb0] sm:$0xff]
      %v1774 = vld [vmem:[%s7 + $0xb8] sm:$0xff]
      %v1775 = vld [vmem:[%s7 + $0xc0] sm:$0xff]
      %v1776 = vld [vmem:[%s7 + $0xc8] sm:$0xff]
      %v1777 = vld [vmem:[%s7 + $0xd0] sm:$0xff]
      %v1778 = vld [vmem:[%s7 + $0xd8] sm:$0xff]
      %v1779 = vld [vmem:[%s7 + $0xe0] sm:$0xff]
      %v1780 = vld [vmem:[%s7 + $0xe8] sm:$0xff]
      %v1781 = vld [vmem:[%s7 + $0xf0] sm:$0xff]
      %v1782 = vld [vmem:[%s7 + $0xf8] sm:$0xff]
      %v1783 = vld [vmem:[%s7 + $0x100] sm:$0xff]
      %v1784 = vld [vmem:[%s7 + $0x108] sm:$0xff]
      %v1785 = vld [vmem:[%s7 + $0x110] sm:$0xff]
      %v1786 = vld [vmem:[%s7 + $0x118] sm:$0xff]
      %v1787 = vld [vmem:[%s7 + $0x120] sm:$0xff]
      %v1788 = vld [vmem:[%s7 + $0x128] sm:$0xff]
      %v1789 = vld [vmem:[%s7 + $0x130] sm:$0xff]
      %v1790 = vld [vmem:[%s7 + $0x138] sm:$0xff]
      %v1791 = vld [vmem:[%s7 + $0x140] sm:$0xff]
      %v1792 = vld [vmem:[%s7 + $0x148] sm:$0xff]
      %v1793 = vld [vmem:[%s7 + $0x150] sm:$0xff]
      %v1794 = vld [vmem:[%s7 + $0x158] sm:$0xff]
      %v1795 = vld [vmem:[%s7 + $0x160] sm:$0xff]
      %v1796 = vld [vmem:[%s7 + $0x168] sm:$0xff]
      %v1797 = vld [vmem:[%s7 + $0x170] sm:$0xff]
      %v1798 = vld [vmem:[%s7 + $0x178] sm:$0xff]
      %v1799 = vld [vmem:[%s8] sm:$0x1]
      %v1801 = vlaneseq
      %v1802 = vshrl.u32 %v1801, 7
      %v1803 = vsub.s32 0, %v1802
      %v1804 = vrot.slane %v1799, %v1803
      %1806 = vmatprep.subr.mxu0 0.0
      %1807 = vmatpush1.msra.mxu0 %v1751
      %1808 = vmatprep.subr.mxu0 0.0
      %1809 = vmatpush1.msra.mxu0 %v1752
      %1810 = vmatprep.subr.mxu0 0.0
      %1811 = vmatpush1.msra.mxu0 %v1753
      %1812 = vmatprep.subr.mxu0 0.0
      %1813 = vmatpush1.msra.mxu0 %v1754
      %1814 = vmatprep.subr.mxu0 0.0
      %1815 = vmatpush1.msra.mxu0 %v1755
      %1816 = vmatprep.subr.mxu0 0.0
      %1817 = vmatpush1.msra.mxu0 %v1756
      %1818 = vmatprep.subr.mxu0 0.0
      %1819 = vmatpush1.msra.mxu0 %v1757
      %1820 = vmatprep.subr.mxu0 0.0
      %1821 = vmatpush1.msra.mxu0 %v1758
      %1822 = vmatprep.subr.mxu0 0.0
      %1823 = vmatpush1.msra.mxu0 %v1759
      %1824 = vmatprep.subr.mxu0 0.0
      %1825 = vmatpush1.msra.mxu0 %v1760
      %1826 = vmatprep.subr.mxu0 0.0
      %1827 = vmatpush1.msra.mxu0 %v1761
      %1828 = vmatprep.subr.mxu0 0.0
      %1829 = vmatpush1.msra.mxu0 %v1762
      %1830 = vmatprep.subr.mxu0 0.0
      %1831 = vmatpush1.msra.mxu0 %v1763
      %1832 = vmatprep.subr.mxu0 0.0
      %1833 = vmatpush1.msra.mxu0 %v1764
      %1834 = vmatprep.subr.mxu0 0.0
      %1835 = vmatpush1.msra.mxu0 %v1765
      %1836 = vmatprep.subr.mxu0 0.0
      %1837 = vmatpush1.msra.mxu0 %v1766
      %1838 = vmatprep.subr.mxu0 0.0
      %1839 = vmatpush1.msra.mxu0 %v1767
      %1840 = vmatprep.subr.mxu0 0.0
      %1841 = vmatpush1.msra.mxu0 %v1768
      %1842 = vmatprep.subr.mxu0 0.0
      %1843 = vmatpush1.msra.mxu0 %v1769
      %1844 = vmatprep.subr.mxu0 0.0
      %1845 = vmatpush1.msra.mxu0 %v1770
      %1846 = vmatprep.subr.mxu0 0.0
      %1847 = vmatpush1.msra.mxu0 %v1771
      %1848 = vmatprep.subr.mxu0 0.0
      %1849 = vmatpush1.msra.mxu0 %v1772
      %1850 = vmatprep.subr.mxu0 0.0
      %1851 = vmatpush1.msra.mxu0 %v1773
      %1852 = vmatprep.subr.mxu0 0.0
      %1853 = vmatpush1.msra.mxu0 %v1774
      %1854 = vmatprep.subr.mxu0 0.0
      %1855 = vmatpush1.msra.mxu0 %v1775
      %1856 = vmatprep.subr.mxu0 0.0
      %1857 = vmatpush1.msra.mxu0 %v1776
      %1858 = vmatprep.subr.mxu0 0.0
      %1859 = vmatpush1.msra.mxu0 %v1777
      %1860 = vmatprep.subr.mxu0 0.0
      %1861 = vmatpush1.msra.mxu0 %v1778
      %1862 = vmatprep.subr.mxu0 0.0
      %1863 = vmatpush1.msra.mxu0 %v1779
      %1864 = vmatprep.subr.mxu0 0.0
      %1865 = vmatpush1.msra.mxu0 %v1780
      %1866 = vmatprep.subr.mxu0 0.0
      %1867 = vmatpush1.msra.mxu0 %v1781
      %1868 = vmatprep.subr.mxu0 0.0
      %1869 = vmatpush1.msra.mxu0 %v1782
      %1870 = vmatprep.mubr.f32.mxu0 %v1656
      %1871 = vmatmul.mubr.f32.gmra.mrb[0].mxu0 %v1655
      %v1872 = vpop.f32.mrb[0].mxu0
      %v1873 = vadd.f32 %v1804, %v1872
      %v1874 = vpop.f32.mrb[0].mxu0
      %1875 = vmatprep.mubr.f32.mxu0 %v1659
      %1876 = vmatmul.mubr.f32.gmra.mrb[0].mxu0 %v1658
      %v1877 = vpop.f32.mrb[0].mxu0
      %v1878 = vadd.f32 %v1804, %v1877
      %v1879 = vpop.f32.mrb[0].mxu0
      %1880 = vmatprep.mubr.f32.mxu0 %v1662
      %1881 = vmatmul.mubr.f32.gmra.mrb[0].mxu0 %v1661
      %v1882 = vpop.f32.mrb[0].mxu0
      %v1883 = vadd.f32 %v1804, %v1882
      %v1884 = vpop.f32.mrb[0].mxu0
      %1885 = vmatprep.mubr.f32.mxu0 %v1665
      %1886 = vmatmul.mubr.f32.gmra.mrb[0].mxu0 %v1664
      %v1887 = vpop.f32.mrb[0].mxu0
      %v1888 = vadd.f32 %v1804, %v1887
      %v1889 = vpop.f32.mrb[0].mxu0
      %1890 = vmatprep.mubr.f32.mxu0 %v1668
      %1891 = vmatmul.mubr.f32.gmra.mrb[0].mxu0 %v1667
      %v1892 = vpop.f32.mrb[0].mxu0
      %v1893 = vadd.f32 %v1804, %v1892
      %v1894 = vpop.f32.mrb[0].mxu0
      %1895 = vmatprep.mubr.f32.mxu0 %v1671
      %1896 = vmatmul.mubr.f32.gmra.mrb[0].mxu0 %v1670
      %v1897 = vpop.f32.mrb[0].mxu0
      %v1898 = vadd.f32 %v1804, %v1897
      %v1899 = vpop.f32.mrb[0].mxu0
      %1900 = vmatprep.mubr.f32.mxu0 %v1674
      %1901 = vmatmul.mubr.f32.gmra.mrb[0].mxu0 %v1673
      %v1902 = vpop.f32.mrb[0].mxu0
      %v1903 = vadd.f32 %v1804, %v1902
      %v1904 = vpop.f32.mrb[0].mxu0
      %1905 = vmatprep.mubr.f32.mxu0 %v1677
      %1906 = vmatmul.mubr.f32.gmra.mrb[0].mxu0 %v1676
      %v1907 = vpop.f32.mrb[0].mxu0
      %v1908 = vadd.f32 %v1804, %v1907
      %v1909 = vpop.f32.mrb[0].mxu0
      %1910 = vmatprep.mubr.f32.mxu0 %v1680
      %1911 = vmatmul.mubr.f32.gmra.mrb[0].mxu0 %v1679
      %v1912 = vpop.f32.mrb[0].mxu0
      %v1913 = vadd.f32 %v1804, %v1912
      %v1914 = vpop.f32.mrb[0].mxu0
      %1915 = vmatprep.mubr.f32.mxu0 %v1683
      %1916 = vmatmul.mubr.f32.gmra.mrb[0].mxu0 %v1682
      %v1917 = vpop.f32.mrb[0].mxu0
      %v1918 = vadd.f32 %v1804, %v1917
      %v1919 = vpop.f32.mrb[0].mxu0
      %1920 = vmatprep.mubr.f32.mxu0 %v1686
      %1921 = vmatmul.mubr.f32.gmra.mrb[0].mxu0 %v1685
      %v1922 = vpop.f32.mrb[0].mxu0
      %v1923 = vadd.f32 %v1804, %v1922
      %v1924 = vpop.f32.mrb[0].mxu0
      %1925 = vmatprep.mubr.f32.mxu0 %v1689
      %1926 = vmatmul.mubr.f32.gmra.mrb[0].mxu0 %v1688
      %v1927 = vpop.f32.mrb[0].mxu0
      %v1928 = vadd.f32 %v1804, %v1927
      %v1929 = vpop.f32.mrb[0].mxu0
      %1930 = vmatprep.mubr.f32.mxu0 %v1692
      %1931 = vmatmul.mubr.f32.gmra.mrb[0].mxu0 %v1691
      %v1932 = vpop.f32.mrb[0].mxu0
      %v1933 = vadd.f32 %v1804, %v1932
      %v1934 = vpop.f32.mrb[0].mxu0
      %1935 = vmatprep.mubr.f32.mxu0 %v1695
      %1936 = vmatmul.mubr.f32.gmra.mrb[0].mxu0 %v1694
      %v1937 = vpop.f32.mrb[0].mxu0
      %v1938 = vadd.f32 %v1804, %v1937
      %v1939 = vpop.f32.mrb[0].mxu0
      %1940 = vmatprep.mubr.f32.mxu0 %v1698
      %1941 = vmatmul.mubr.f32.gmra.mrb[0].mxu0 %v1697
      %v1942 = vpop.f32.mrb[0].mxu0
      %v1943 = vadd.f32 %v1804, %v1942
      %v1944 = vpop.f32.mrb[0].mxu0
      %1945 = vmatprep.mubr.f32.mxu0 %v1701
      %1946 = vmatmul.mubr.f32.gmra.mrb[0].mxu0 %v1700
      %v1947 = vpop.f32.mrb[0].mxu0
      %v1948 = vadd.f32 %v1804, %v1947
      %v1949 = vpop.f32.mrb[0].mxu0
      %1950 = vmatprep.mubr.f32.mxu0 %v1704
      %1951 = vmatmul.mubr.f32.gmra.mrb[0].mxu0 %v1703
      %v1952 = vpop.f32.mrb[0].mxu0
      %v1953 = vadd.f32 %v1804, %v1952
      %v1954 = vpop.f32.mrb[0].mxu0
      %1955 = vmatprep.mubr.f32.mxu0 %v1707
      %1956 = vmatmul.mubr.f32.gmra.mrb[0].mxu0 %v1706
      %v1957 = vpop.f32.mrb[0].mxu0
      %v1958 = vadd.f32 %v1804, %v1957
      %v1959 = vpop.f32.mrb[0].mxu0
      %1960 = vmatprep.mubr.f32.mxu0 %v1710
      %1961 = vmatmul.mubr.f32.gmra.mrb[0].mxu0 %v1709
      %v1962 = vpop.f32.mrb[0].mxu0
      %v1963 = vadd.f32 %v1804, %v1962
      %v1964 = vpop.f32.mrb[0].mxu0
      %1965 = vmatprep.mubr.f32.mxu0 %v1713
      %1966 = vmatmul.mubr.f32.gmra.mrb[0].mxu0 %v1712
      %v1967 = vpop.f32.mrb[0].mxu0
      %v1968 = vadd.f32 %v1804, %v1967
      %v1969 = vpop.f32.mrb[0].mxu0
      %1970 = vmatprep.mubr.f32.mxu0 %v1716
      %1971 = vmatmul.mubr.f32.gmra.mrb[0].mxu0 %v1715
      %v1972 = vpop.f32.mrb[0].mxu0
      %v1973 = vadd.f32 %v1804, %v1972
      %v1974 = vpop.f32.mrb[0].mxu0
      %1975 = vmatprep.mubr.f32.mxu0 %v1719
      %1976 = vmatmul.mubr.f32.gmra.mrb[0].mxu0 %v1718
      %v1977 = vpop.f32.mrb[0].mxu0
      %v1978 = vadd.f32 %v1804, %v1977
      %v1979 = vpop.f32.mrb[0].mxu0
      %1980 = vmatprep.mubr.f32.mxu0 %v1722
      %1981 = vmatmul.mubr.f32.gmra.mrb[0].mxu0 %v1721
      %v1982 = vpop.f32.mrb[0].mxu0
      %v1983 = vadd.f32 %v1804, %v1982
      %v1984 = vpop.f32.mrb[0].mxu0
      %1985 = vmatprep.mubr.f32.mxu0 %v1725
      %1986 = vmatmul.mubr.f32.gmra.mrb[0].mxu0 %v1724
      %v1987 = vpop.f32.mrb[0].mxu0
      %v1988 = vadd.f32 %v1804, %v1987
      %v1989 = vpop.f32.mrb[0].mxu0
      %1990 = vmatprep.mubr.f32.mxu0 %v1728
      %1991 = vmatmul.mubr.f32.gmra.mrb[0].mxu0 %v1727
      %v1992 = vpop.f32.mrb[0].mxu0
      %v1993 = vadd.f32 %v1804, %v1992
      %v1994 = vpop.f32.mrb[0].mxu0
      %1995 = vmatprep.mubr.f32.mxu0 %v1731
      %1996 = vmatmul.mubr.f32.gmra.mrb[0].mxu0 %v1730
      %v1997 = vpop.f32.mrb[0].mxu0
      %v1998 = vadd.f32 %v1804, %v1997
      %v1999 = vpop.f32.mrb[0].mxu0
      %2000 = vmatprep.mubr.f32.mxu0 %v1734
      %2001 = vmatmul.mubr.f32.gmra.mrb[0].mxu0 %v1733
      %v2002 = vpop.f32.mrb[0].mxu0
      %v2003 = vadd.f32 %v1804, %v2002
      %v2004 = vpop.f32.mrb[0].mxu0
      %2005 = vmatprep.mubr.f32.mxu0 %v1737
      %2006 = vmatmul.mubr.f32.gmra.mrb[0].mxu0 %v1736
      %v2007 = vpop.f32.mrb[0].mxu0
      %v2008 = vadd.f32 %v1804, %v2007
      %v2009 = vpop.f32.mrb[0].mxu0
      %2010 = vmatprep.mubr.f32.mxu0 %v1740
      %2011 = vmatmul.mubr.f32.gmra.mrb[0].mxu0 %v1739
      %v2012 = vpop.f32.mrb[0].mxu0
      %v2013 = vadd.f32 %v1804, %v2012
      %v2014 = vpop.f32.mrb[0].mxu0
      %2015 = vmatprep.mubr.f32.mxu0 %v1743
      %2016 = vmatmul.mubr.f32.gmra.mrb[0].mxu0 %v1742
      %v2017 = vpop.f32.mrb[0].mxu0
      %v2018 = vadd.f32 %v1804, %v2017
      %v2019 = vpop.f32.mrb[0].mxu0
      %2020 = vmatprep.mubr.f32.mxu0 %v1746
      %2021 = vmatmul.mubr.f32.gmra.mrb[0].mxu0 %v1745
      %v2022 = vpop.f32.mrb[0].mxu0
      %v2023 = vadd.f32 %v1804, %v2022
      %v2024 = vpop.f32.mrb[0].mxu0
      %2025 = vmatprep.mubr.f32.mxu0 %v1749
      %2026 = vmatmul.mubr.f32.gmra.mrb[0].mxu0 %v1748
      %v2027 = vpop.f32.mrb[0].mxu0
      %v2028 = vadd.f32 %v1804, %v2027
      %v2029 = vpop.f32.mrb[0].mxu0
      %2030 = vdwg.mxu0
      %2031 = vmatprep.subr.mxu0 0.0
      %2032 = vmatpush1.msra.mxu0 %v1783
      %2033 = vmatprep.subr.mxu0 0.0
      %2034 = vmatpush1.msra.mxu0 %v1784
      %2035 = vmatprep.subr.mxu0 0.0
      %2036 = vmatpush1.msra.mxu0 %v1785
      %2037 = vmatprep.subr.mxu0 0.0
      %2038 = vmatpush1.msra.mxu0 %v1786
      %2039 = vmatprep.subr.mxu0 0.0
      %2040 = vmatpush1.msra.mxu0 %v1787
      %2041 = vmatprep.subr.mxu0 0.0
      %2042 = vmatpush1.msra.mxu0 %v1788
      %2043 = vmatprep.subr.mxu0 0.0
      %2044 = vmatpush1.msra.mxu0 %v1789
      %2045 = vmatprep.subr.mxu0 0.0
      %2046 = vmatpush1.msra.mxu0 %v1790
      %2047 = vmatprep.subr.mxu0 0.0
      %2048 = vmatpush1.msra.mxu0 %v1791
      %2049 = vmatprep.subr.mxu0 0.0
      %2050 = vmatpush1.msra.mxu0 %v1792
      %2051 = vmatprep.subr.mxu0 0.0
      %2052 = vmatpush1.msra.mxu0 %v1793
      %2053 = vmatprep.subr.mxu0 0.0
      %2054 = vmatpush1.msra.mxu0 %v1794
      %2055 = vmatprep.subr.mxu0 0.0
      %2056 = vmatpush1.msra.mxu0 %v1795
      %2057 = vmatprep.subr.mxu0 0.0
      %2058 = vmatpush1.msra.mxu0 %v1796
      %2059 = vmatprep.subr.mxu0 0.0
      %2060 = vmatpush1.msra.mxu0 %v1797
      %2061 = vmatprep.subr.mxu0 0.0
      %2062 = vmatpush1.msra.mxu0 %v1798
      %2063 = vmatprep.subr.mxu0 0.0
      %2064 = vmatpush1.msra.mxu0 0.0
      %2065 = vmatprep.subr.mxu0 0.0
      %2066 = vmatpush1.msra.mxu0 0.0
      %2067 = vmatprep.subr.mxu0 0.0
      %2068 = vmatpush1.msra.mxu0 0.0
      %2069 = vmatprep.subr.mxu0 0.0
      %2070 = vmatpush1.msra.mxu0 0.0
      %2071 = vmatprep.subr.mxu0 0.0
      %2072 = vmatpush1.msra.mxu0 0.0
      %2073 = vmatprep.subr.mxu0 0.0
      %2074 = vmatpush1.msra.mxu0 0.0
      %2075 = vmatprep.subr.mxu0 0.0
      %2076 = vmatpush1.msra.mxu0 0.0
      %2077 = vmatprep.subr.mxu0 0.0
      %2078 = vmatpush1.msra.mxu0 0.0
      %2079 = vmatprep.subr.mxu0 0.0
      %2080 = vmatpush1.msra.mxu0 0.0
      %2081 = vmatprep.subr.mxu0 0.0
      %2082 = vmatpush1.msra.mxu0 0.0
      %2083 = vmatprep.subr.mxu0 0.0
      %2084 = vmatpush1.msra.mxu0 0.0
      %2085 = vmatprep.subr.mxu0 0.0
      %2086 = vmatpush1.msra.mxu0 0.0
      %2087 = vmatprep.subr.mxu0 0.0
      %2088 = vmatpush1.msra.mxu0 0.0
      %2089 = vmatprep.subr.mxu0 0.0
      %2090 = vmatpush1.msra.mxu0 0.0
      %2091 = vmatprep.subr.mxu0 0.0
      %2092 = vmatpush1.msra.mxu0 0.0
      %2093 = vmatprep.subr.mxu0 0.0
      %2094 = vmatpush1.msra.mxu0 0.0
      %2095 = vmatprep.mubr.f32.mxu0 0.0
      %2096 = vmatmul.mubr.f32.gmra.mrb[0].mxu0 %v1657
      %v2097 = vpop.f32.mrb[0].mxu0
      %v2098 = vadd.f32 %v1873, %v2097
      %v2099 = vpop.f32.mrb[0].mxu0
      %2100 = vmatprep.mubr.f32.mxu0 0.0
      %2101 = vmatmul.mubr.f32.gmra.mrb[0].mxu0 %v1660
      %v2102 = vpop.f32.mrb[0].mxu0
      %v2103 = vadd.f32 %v1878, %v2102
      %v2104 = vpop.f32.mrb[0].mxu0
      %2105 = vmatprep.mubr.f32.mxu0 0.0
      %2106 = vmatmul.mubr.f32.gmra.mrb[0].mxu0 %v1663
      %v2107 = vpop.f32.mrb[0].mxu0
      %v2108 = vadd.f32 %v1883, %v2107
      %v2109 = vpop.f32.mrb[0].mxu0
      %2110 = vmatprep.mubr.f32.mxu0 0.0
      %2111 = vmatmul.mubr.f32.gmra.mrb[0].mxu0 %v1666
      %v2112 = vpop.f32.mrb[0].mxu0
      %v2113 = vadd.f32 %v1888, %v2112
      %v2114 = vpop.f32.mrb[0].mxu0
      %2115 = vmatprep.mubr.f32.mxu0 0.0
      %2116 = vmatmul.mubr.f32.gmra.mrb[0].mxu0 %v1669
      %v2117 = vpop.f32.mrb[0].mxu0
      %v2118 = vadd.f32 %v1893, %v2117
      %v2119 = vpop.f32.mrb[0].mxu0
      %2120 = vmatprep.mubr.f32.mxu0 0.0
      %2121 = vmatmul.mubr.f32.gmra.mrb[0].mxu0 %v1672
      %v2122 = vpop.f32.mrb[0].mxu0
      %v2123 = vadd.f32 %v1898, %v2122
      %v2124 = vpop.f32.mrb[0].mxu0
      %2125 = vmatprep.mubr.f32.mxu0 0.0
      %2126 = vmatmul.mubr.f32.gmra.mrb[0].mxu0 %v1675
      %v2127 = vpop.f32.mrb[0].mxu0
      %v2128 = vadd.f32 %v1903, %v2127
      %v2129 = vpop.f32.mrb[0].mxu0
      %2130 = vmatprep.mubr.f32.mxu0 0.0
      %2131 = vmatmul.mubr.f32.gmra.mrb[0].mxu0 %v1678
      %v2132 = vpop.f32.mrb[0].mxu0
      %v2133 = vadd.f32 %v1908, %v2132
      %v2134 = vpop.f32.mrb[0].mxu0
      %2135 = vmatprep.mubr.f32.mxu0 0.0
      %2136 = vmatmul.mubr.f32.gmra.mrb[0].mxu0 %v1681
      %v2137 = vpop.f32.mrb[0].mxu0
      %v2138 = vadd.f32 %v1913, %v2137
      %v2139 = vpop.f32.mrb[0].mxu0
      %2140 = vmatprep.mubr.f32.mxu0 0.0
      %2141 = vmatmul.mubr.f32.gmra.mrb[0].mxu0 %v1684
      %v2142 = vpop.f32.mrb[0].mxu0
      %v2143 = vadd.f32 %v1918, %v2142
      %v2144 = vpop.f32.mrb[0].mxu0
      %2145 = vmatprep.mubr.f32.mxu0 0.0
      %2146 = vmatmul.mubr.f32.gmra.mrb[0].mxu0 %v1687
      %v2147 = vpop.f32.mrb[0].mxu0
      %v2148 = vadd.f32 %v1923, %v2147
      %v2149 = vpop.f32.mrb[0].mxu0
      %2150 = vmatprep.mubr.f32.mxu0 0.0
      %2151 = vmatmul.mubr.f32.gmra.mrb[0].mxu0 %v1690
      %v2152 = vpop.f32.mrb[0].mxu0
      %v2153 = vadd.f32 %v1928, %v2152
      %v2154 = vpop.f32.mrb[0].mxu0
      %2155 = vmatprep.mubr.f32.mxu0 0.0
      %2156 = vmatmul.mubr.f32.gmra.mrb[0].mxu0 %v1693
      %v2157 = vpop.f32.mrb[0].mxu0
      %v2158 = vadd.f32 %v1933, %v2157
      %v2159 = vpop.f32.mrb[0].mxu0
      %2160 = vmatprep.mubr.f32.mxu0 0.0
      %2161 = vmatmul.mubr.f32.gmra.mrb[0].mxu0 %v1696
      %v2162 = vpop.f32.mrb[0].mxu0
      %v2163 = vadd.f32 %v1938, %v2162
      %v2164 = vpop.f32.mrb[0].mxu0
      %2165 = vmatprep.mubr.f32.mxu0 0.0
      %2166 = vmatmul.mubr.f32.gmra.mrb[0].mxu0 %v1699
      %v2167 = vpop.f32.mrb[0].mxu0
      %v2168 = vadd.f32 %v1943, %v2167
      %v2169 = vpop.f32.mrb[0].mxu0
      %2170 = vmatprep.mubr.f32.mxu0 0.0
      %2171 = vmatmul.mubr.f32.gmra.mrb[0].mxu0 %v1702
      %v2172 = vpop.f32.mrb[0].mxu0
      %v2173 = vadd.f32 %v1948, %v2172
      %v2174 = vpop.f32.mrb[0].mxu0
      %2175 = vmatprep.mubr.f32.mxu0 0.0
      %2176 = vmatmul.mubr.f32.gmra.mrb[0].mxu0 %v1705
      %v2177 = vpop.f32.mrb[0].mxu0
      %v2178 = vadd.f32 %v1953, %v2177
      %v2179 = vpop.f32.mrb[0].mxu0
      %2180 = vmatprep.mubr.f32.mxu0 0.0
      %2181 = vmatmul.mubr.f32.gmra.mrb[0].mxu0 %v1708
      %v2182 = vpop.f32.mrb[0].mxu0
      %v2183 = vadd.f32 %v1958, %v2182
      %v2184 = vpop.f32.mrb[0].mxu0
      %2185 = vmatprep.mubr.f32.mxu0 0.0
      %2186 = vmatmul.mubr.f32.gmra.mrb[0].mxu0 %v1711
      %v2187 = vpop.f32.mrb[0].mxu0
      %v2188 = vadd.f32 %v1963, %v2187
      %v2189 = vpop.f32.mrb[0].mxu0
      %2190 = vmatprep.mubr.f32.mxu0 0.0
      %2191 = vmatmul.mubr.f32.gmra.mrb[0].mxu0 %v1714
      %v2192 = vpop.f32.mrb[0].mxu0
      %v2193 = vadd.f32 %v1968, %v2192
      %v2194 = vpop.f32.mrb[0].mxu0
      %2195 = vmatprep.mubr.f32.mxu0 0.0
      %2196 = vmatmul.mubr.f32.gmra.mrb[0].mxu0 %v1717
      %v2197 = vpop.f32.mrb[0].mxu0
      %v2198 = vadd.f32 %v1973, %v2197
      %v2199 = vpop.f32.mrb[0].mxu0
      %2200 = vmatprep.mubr.f32.mxu0 0.0
      %2201 = vmatmul.mubr.f32.gmra.mrb[0].mxu0 %v1720
      %v2202 = vpop.f32.mrb[0].mxu0
      %v2203 = vadd.f32 %v1978, %v2202
      %v2204 = vpop.f32.mrb[0].mxu0
      %2205 = vmatprep.mubr.f32.mxu0 0.0
      %2206 = vmatmul.mubr.f32.gmra.mrb[0].mxu0 %v1723
      %v2207 = vpop.f32.mrb[0].mxu0
      %v2208 = vadd.f32 %v1983, %v2207
      %v2209 = vpop.f32.mrb[0].mxu0
      %2210 = vmatprep.mubr.f32.mxu0 0.0
      %2211 = vmatmul.mubr.f32.gmra.mrb[0].mxu0 %v1726
      %v2212 = vpop.f32.mrb[0].mxu0
      %v2213 = vadd.f32 %v1988, %v2212
      %v2214 = vpop.f32.mrb[0].mxu0
      %2215 = vmatprep.mubr.f32.mxu0 0.0
      %2216 = vmatmul.mubr.f32.gmra.mrb[0].mxu0 %v1729
      %v2217 = vpop.f32.mrb[0].mxu0
      %v2218 = vadd.f32 %v1993, %v2217
      %v2219 = vpop.f32.mrb[0].mxu0
      %2220 = vmatprep.mubr.f32.mxu0 0.0
      %2221 = vmatmul.mubr.f32.gmra.mrb[0].mxu0 %v1732
      %v2222 = vpop.f32.mrb[0].mxu0
      %v2223 = vadd.f32 %v1998, %v2222
      %v2224 = vpop.f32.mrb[0].mxu0
      %2225 = vmatprep.mubr.f32.mxu0 0.0
      %2226 = vmatmul.mubr.f32.gmra.mrb[0].mxu0 %v1735
      %v2227 = vpop.f32.mrb[0].mxu0
      %v2228 = vadd.f32 %v2003, %v2227
      %v2229 = vpop.f32.mrb[0].mxu0
      %2230 = vmatprep.mubr.f32.mxu0 0.0
      %2231 = vmatmul.mubr.f32.gmra.mrb[0].mxu0 %v1738
      %v2232 = vpop.f32.mrb[0].mxu0
      %v2233 = vadd.f32 %v2008, %v2232
      %v2234 = vpop.f32.mrb[0].mxu0
      %2235 = vmatprep.mubr.f32.mxu0 0.0
      %2236 = vmatmul.mubr.f32.gmra.mrb[0].mxu0 %v1741
      %v2237 = vpop.f32.mrb[0].mxu0
      %v2238 = vadd.f32 %v2013, %v2237
      %v2239 = vpop.f32.mrb[0].mxu0
      %2240 = vmatprep.mubr.f32.mxu0 0.0
      %2241 = vmatmul.mubr.f32.gmra.mrb[0].mxu0 %v1744
      %v2242 = vpop.f32.mrb[0].mxu0
      %v2243 = vadd.f32 %v2018, %v2242
      %v2244 = vpop.f32.mrb[0].mxu0
      %2245 = vmatprep.mubr.f32.mxu0 0.0
      %2246 = vmatmul.mubr.f32.gmra.mrb[0].mxu0 %v1747
      %v2247 = vpop.f32.mrb[0].mxu0
      %v2248 = vadd.f32 %v2023, %v2247
      %v2249 = vpop.f32.mrb[0].mxu0
      %2250 = vmatprep.mubr.f32.mxu0 0.0
      %2251 = vmatmul.mubr.f32.gmra.mrb[0].mxu0 %v1750
      %v2252 = vpop.f32.mrb[0].mxu0
      %v2253 = vadd.f32 %v2028, %v2252
      %v2254 = vpop.f32.mrb[0].mxu0
      %2255 = vdwg.mxu0
      %vm2256 = vcmask 31744
      %2257 = vst.msk [vmem:[%s423] sm:$0xff] %vm2256, %v2098
      %2258 = vst.msk [vmem:[%s423 + $0x8] sm:$0xff] %vm2256, %v2103
      %2259 = vst.msk [vmem:[%s423 + $0x10] sm:$0xff] %vm2256, %v2108
      %2260 = vst.msk [vmem:[%s423 + $0x18] sm:$0xff] %vm2256, %v2113
      %2261 = vst.msk [vmem:[%s423 + $0x20] sm:$0xff] %vm2256, %v2118
      %2262 = vst.msk [vmem:[%s423 + $0x28] sm:$0xff] %vm2256, %v2123
      %2263 = vst.msk [vmem:[%s423 + $0x30] sm:$0xff] %vm2256, %v2128
      %2264 = vst.msk [vmem:[%s423 + $0x38] sm:$0xff] %vm2256, %v2133
      %2265 = vst.msk [vmem:[%s423 + $0x40] sm:$0xff] %vm2256, %v2138
      %2266 = vst.msk [vmem:[%s423 + $0x48] sm:$0xff] %vm2256, %v2143
      %2267 = vst.msk [vmem:[%s423 + $0x50] sm:$0xff] %vm2256, %v2148
      %2268 = vst.msk [vmem:[%s423 + $0x58] sm:$0xff] %vm2256, %v2153
      %2269 = vst.msk [vmem:[%s423 + $0x60] sm:$0xff] %vm2256, %v2158
      %2270 = vst.msk [vmem:[%s423 + $0x68] sm:$0xff] %vm2256, %v2163
      %2271 = vst.msk [vmem:[%s423 + $0x70] sm:$0xff] %vm2256, %v2168
      %2272 = vst.msk [vmem:[%s423 + $0x78] sm:$0xff] %vm2256, %v2173
      %2273 = vst.msk [vmem:[%s423 + $0x80] sm:$0xff] %vm2256, %v2178
      %2274 = vst.msk [vmem:[%s423 + $0x88] sm:$0xff] %vm2256, %v2183
      %2275 = vst.msk [vmem:[%s423 + $0x90] sm:$0xff] %vm2256, %v2188
      %2276 = vst.msk [vmem:[%s423 + $0x98] sm:$0xff] %vm2256, %v2193
      %2277 = vst.msk [vmem:[%s423 + $0xa0] sm:$0xff] %vm2256, %v2198
      %2278 = vst.msk [vmem:[%s423 + $0xa8] sm:$0xff] %vm2256, %v2203
      %2279 = vst.msk [vmem:[%s423 + $0xb0] sm:$0xff] %vm2256, %v2208
      %2280 = vst.msk [vmem:[%s423 + $0xb8] sm:$0xff] %vm2256, %v2213
      %2281 = vst.msk [vmem:[%s423 + $0xc0] sm:$0xff] %vm2256, %v2218
      %2282 = vst.msk [vmem:[%s423 + $0xc8] sm:$0xff] %vm2256, %v2223
      %2283 = vst.msk [vmem:[%s423 + $0xd0] sm:$0xff] %vm2256, %v2228
      %2284 = vst.msk [vmem:[%s423 + $0xd8] sm:$0xff] %vm2256, %v2233
      %2285 = vst.msk [vmem:[%s423 + $0xe0] sm:$0xff] %vm2256, %v2238
      %2286 = vst.msk [vmem:[%s423 + $0xe8] sm:$0xff] %vm2256, %v2243
      %2287 = vst.msk [vmem:[%s423 + $0xf0] sm:$0xff] %vm2256, %v2248
      %2288 = vst.msk [vmem:[%s423 + $0xf8] sm:$0xff] %vm2256, %v2253
      %v2289 = vld [vmem:[%s9] sm:$0xff]
      %v2290 = vld [vmem:[%s9 + $0x8] sm:$0xff]
      %v2291 = vld [vmem:[%s9 + $0x10] sm:$0xff]
      %v2292 = vld [vmem:[%s9 + $0x18] sm:$0xff]
      %v2293 = vld [vmem:[%s9 + $0x20] sm:$0xff]
      %v2294 = vld [vmem:[%s9 + $0x28] sm:$0xff]
      %v2295 = vld [vmem:[%s9 + $0x30] sm:$0xff]
      %v2296 = vld [vmem:[%s9 + $0x38] sm:$0xff]
      %v2297 = vld [vmem:[%s9 + $0x40] sm:$0xff]
      %v2298 = vld [vmem:[%s9 + $0x48] sm:$0xff]
      %v2299 = vld [vmem:[%s9 + $0x50] sm:$0xff]
      %v2300 = vld [vmem:[%s9 + $0x58] sm:$0xff]
      %v2301 = vld [vmem:[%s9 + $0x60] sm:$0xff]
      %v2302 = vld [vmem:[%s9 + $0x68] sm:$0xff]
      %v2303 = vld [vmem:[%s9 + $0x70] sm:$0xff]
      %v2304 = vld [vmem:[%s9 + $0x78] sm:$0xff]
      %v2305 = vld [vmem:[%s9 + $0x80] sm:$0xff]
      %v2306 = vld [vmem:[%s9 + $0x88] sm:$0xff]
      %v2307 = vld [vmem:[%s9 + $0x90] sm:$0xff]
      %v2308 = vld [vmem:[%s9 + $0x98] sm:$0xff]
      %v2309 = vld [vmem:[%s9 + $0xa0] sm:$0xff]
      %v2310 = vld [vmem:[%s9 + $0xa8] sm:$0xff]
      %v2311 = vld [vmem:[%s9 + $0xb0] sm:$0xff]
      %v2312 = vld [vmem:[%s9 + $0xb8] sm:$0xff]
      %v2313 = vld [vmem:[%s9 + $0xc0] sm:$0xff]
      %v2314 = vld [vmem:[%s9 + $0xc8] sm:$0xff]
      %v2315 = vld [vmem:[%s9 + $0xd0] sm:$0xff]
      %v2316 = vld [vmem:[%s9 + $0xd8] sm:$0xff]
      %v2317 = vld [vmem:[%s9 + $0xe0] sm:$0xff]
      %v2318 = vld [vmem:[%s9 + $0xe8] sm:$0xff]
      %v2319 = vld [vmem:[%s9 + $0xf0] sm:$0xff]
      %v2320 = vld [vmem:[%s9 + $0xf8] sm:$0xff]
      %v2321 = vld [vmem:[%s9 + $0x100] sm:$0xff]
      %v2322 = vld [vmem:[%s9 + $0x108] sm:$0xff]
      %v2323 = vld [vmem:[%s9 + $0x110] sm:$0xff]
      %v2324 = vld [vmem:[%s9 + $0x118] sm:$0xff]
      %v2325 = vld [vmem:[%s9 + $0x120] sm:$0xff]
      %v2326 = vld [vmem:[%s9 + $0x128] sm:$0xff]
      %v2327 = vld [vmem:[%s9 + $0x130] sm:$0xff]
      %v2328 = vld [vmem:[%s9 + $0x138] sm:$0xff]
      %v2329 = vld [vmem:[%s9 + $0x140] sm:$0xff]
      %v2330 = vld [vmem:[%s9 + $0x148] sm:$0xff]
      %v2331 = vld [vmem:[%s9 + $0x150] sm:$0xff]
      %v2332 = vld [vmem:[%s9 + $0x158] sm:$0xff]
      %v2333 = vld [vmem:[%s9 + $0x160] sm:$0xff]
      %v2334 = vld [vmem:[%s9 + $0x168] sm:$0xff]
      %v2335 = vld [vmem:[%s9 + $0x170] sm:$0xff]
      %v2336 = vld [vmem:[%s9 + $0x178] sm:$0xff]
      %v2337 = vld [vmem:[%s10] sm:$0x1]
      %v2339 = vlaneseq
      %v2340 = vshrl.u32 %v2339, 7
      %v2341 = vsub.s32 0, %v2340
      %v2342 = vrot.slane %v2337, %v2341
      %2344 = vmatprep.subr.mxu0 0.0
      %2345 = vmatpush1.msra.mxu0 %v2289
      %2346 = vmatprep.subr.mxu0 0.0
      %2347 = vmatpush1.msra.mxu0 %v2290
      %2348 = vmatprep.subr.mxu0 0.0
      %2349 = vmatpush1.msra.mxu0 %v2291
      %2350 = vmatprep.subr.mxu0 0.0
      %2351 = vmatpush1.msra.mxu0 %v2292
      %2352 = vmatprep.subr.mxu0 0.0
      %2353 = vmatpush1.msra.mxu0 %v2293
      %2354 = vmatprep.subr.mxu0 0.0
      %2355 = vmatpush1.msra.mxu0 %v2294
      %2356 = vmatprep.subr.mxu0 0.0
      %2357 = vmatpush1.msra.mxu0 %v2295
      %2358 = vmatprep.subr.mxu0 0.0
      %2359 = vmatpush1.msra.mxu0 %v2296
      %2360 = vmatprep.subr.mxu0 0.0
      %2361 = vmatpush1.msra.mxu0 %v2297
      %2362 = vmatprep.subr.mxu0 0.0
      %2363 = vmatpush1.msra.mxu0 %v2298
      %2364 = vmatprep.subr.mxu0 0.0
      %2365 = vmatpush1.msra.mxu0 %v2299
      %2366 = vmatprep.subr.mxu0 0.0
      %2367 = vmatpush1.msra.mxu0 %v2300
      %2368 = vmatprep.subr.mxu0 0.0
      %2369 = vmatpush1.msra.mxu0 %v2301
      %2370 = vmatprep.subr.mxu0 0.0
      %2371 = vmatpush1.msra.mxu0 %v2302
      %2372 = vmatprep.subr.mxu0 0.0
      %2373 = vmatpush1.msra.mxu0 %v2303
      %2374 = vmatprep.subr.mxu0 0.0
      %2375 = vmatpush1.msra.mxu0 %v2304
      %2376 = vmatprep.subr.mxu0 0.0
      %2377 = vmatpush1.msra.mxu0 %v2305
      %2378 = vmatprep.subr.mxu0 0.0
      %2379 = vmatpush1.msra.mxu0 %v2306
      %2380 = vmatprep.subr.mxu0 0.0
      %2381 = vmatpush1.msra.mxu0 %v2307
      %2382 = vmatprep.subr.mxu0 0.0
      %2383 = vmatpush1.msra.mxu0 %v2308
      %2384 = vmatprep.subr.mxu0 0.0
      %2385 = vmatpush1.msra.mxu0 %v2309
      %2386 = vmatprep.subr.mxu0 0.0
      %2387 = vmatpush1.msra.mxu0 %v2310
      %2388 = vmatprep.subr.mxu0 0.0
      %2389 = vmatpush1.msra.mxu0 %v2311
      %2390 = vmatprep.subr.mxu0 0.0
      %2391 = vmatpush1.msra.mxu0 %v2312
      %2392 = vmatprep.subr.mxu0 0.0
      %2393 = vmatpush1.msra.mxu0 %v2313
      %2394 = vmatprep.subr.mxu0 0.0
      %2395 = vmatpush1.msra.mxu0 %v2314
      %2396 = vmatprep.subr.mxu0 0.0
      %2397 = vmatpush1.msra.mxu0 %v2315
      %2398 = vmatprep.subr.mxu0 0.0
      %2399 = vmatpush1.msra.mxu0 %v2316
      %2400 = vmatprep.subr.mxu0 0.0
      %2401 = vmatpush1.msra.mxu0 %v2317
      %2402 = vmatprep.subr.mxu0 0.0
      %2403 = vmatpush1.msra.mxu0 %v2318
      %2404 = vmatprep.subr.mxu0 0.0
      %2405 = vmatpush1.msra.mxu0 %v2319
      %2406 = vmatprep.subr.mxu0 0.0
      %2407 = vmatpush1.msra.mxu0 %v2320
      %2408 = vmatprep.mubr.f32.mxu0 %v1656
      %2409 = vmatmul.mubr.f32.gmra.mrb[0].mxu0 %v1655
      %v2410 = vpop.f32.mrb[0].mxu0
      %v2411 = vadd.f32 %v2342, %v2410
      %v2412 = vpop.f32.mrb[0].mxu0
      %2413 = vmatprep.mubr.f32.mxu0 %v1659
      %2414 = vmatmul.mubr.f32.gmra.mrb[0].mxu0 %v1658
      %v2415 = vpop.f32.mrb[0].mxu0
      %v2416 = vadd.f32 %v2342, %v2415
      %v2417 = vpop.f32.mrb[0].mxu0
      %2418 = vmatprep.mubr.f32.mxu0 %v1662
      %2419 = vmatmul.mubr.f32.gmra.mrb[0].mxu0 %v1661
      %v2420 = vpop.f32.mrb[0].mxu0
      %v2421 = vadd.f32 %v2342, %v2420
      %v2422 = vpop.f32.mrb[0].mxu0
      %2423 = vmatprep.mubr.f32.mxu0 %v1665
      %2424 = vmatmul.mubr.f32.gmra.mrb[0].mxu0 %v1664
      %v2425 = vpop.f32.mrb[0].mxu0
      %v2426 = vadd.f32 %v2342, %v2425
      %v2427 = vpop.f32.mrb[0].mxu0
      %2428 = vmatprep.mubr.f32.mxu0 %v1668
      %2429 = vmatmul.mubr.f32.gmra.mrb[0].mxu0 %v1667
      %v2430 = vpop.f32.mrb[0].mxu0
      %v2431 = vadd.f32 %v2342, %v2430
      %v2432 = vpop.f32.mrb[0].mxu0
      %2433 = vmatprep.mubr.f32.mxu0 %v1671
      %2434 = vmatmul.mubr.f32.gmra.mrb[0].mxu0 %v1670
      %v2435 = vpop.f32.mrb[0].mxu0
      %v2436 = vadd.f32 %v2342, %v2435
      %v2437 = vpop.f32.mrb[0].mxu0
      %2438 = vmatprep.mubr.f32.mxu0 %v1674
      %2439 = vmatmul.mubr.f32.gmra.mrb[0].mxu0 %v1673
      %v2440 = vpop.f32.mrb[0].mxu0
      %v2441 = vadd.f32 %v2342, %v2440
      %v2442 = vpop.f32.mrb[0].mxu0
      %2443 = vmatprep.mubr.f32.mxu0 %v1677
      %2444 = vmatmul.mubr.f32.gmra.mrb[0].mxu0 %v1676
      %v2445 = vpop.f32.mrb[0].mxu0
      %v2446 = vadd.f32 %v2342, %v2445
      %v2447 = vpop.f32.mrb[0].mxu0
      %2448 = vmatprep.mubr.f32.mxu0 %v1680
      %2449 = vmatmul.mubr.f32.gmra.mrb[0].mxu0 %v1679
      %v2450 = vpop.f32.mrb[0].mxu0
      %v2451 = vadd.f32 %v2342, %v2450
      %v2452 = vpop.f32.mrb[0].mxu0
      %2453 = vmatprep.mubr.f32.mxu0 %v1683
      %2454 = vmatmul.mubr.f32.gmra.mrb[0].mxu0 %v1682
      %v2455 = vpop.f32.mrb[0].mxu0
      %v2456 = vadd.f32 %v2342, %v2455
      %v2457 = vpop.f32.mrb[0].mxu0
      %2458 = vmatprep.mubr.f32.mxu0 %v1686
      %2459 = vmatmul.mubr.f32.gmra.mrb[0].mxu0 %v1685
      %v2460 = vpop.f32.mrb[0].mxu0
      %v2461 = vadd.f32 %v2342, %v2460
      %v2462 = vpop.f32.mrb[0].mxu0
      %2463 = vmatprep.mubr.f32.mxu0 %v1689
      %2464 = vmatmul.mubr.f32.gmra.mrb[0].mxu0 %v1688
      %v2465 = vpop.f32.mrb[0].mxu0
      %v2466 = vadd.f32 %v2342, %v2465
      %v2467 = vpop.f32.mrb[0].mxu0
      %2468 = vmatprep.mubr.f32.mxu0 %v1692
      %2469 = vmatmul.mubr.f32.gmra.mrb[0].mxu0 %v1691
      %v2470 = vpop.f32.mrb[0].mxu0
      %v2471 = vadd.f32 %v2342, %v2470
      %v2472 = vpop.f32.mrb[0].mxu0
      %2473 = vmatprep.mubr.f32.mxu0 %v1695
      %2474 = vmatmul.mubr.f32.gmra.mrb[0].mxu0 %v1694
      %v2475 = vpop.f32.mrb[0].mxu0
      %v2476 = vadd.f32 %v2342, %v2475
      %v2477 = vpop.f32.mrb[0].mxu0
      %2478 = vmatprep.mubr.f32.mxu0 %v1698
      %2479 = vmatmul.mubr.f32.gmra.mrb[0].mxu0 %v1697
      %v2480 = vpop.f32.mrb[0].mxu0
      %v2481 = vadd.f32 %v2342, %v2480
      %v2482 = vpop.f32.mrb[0].mxu0
      %2483 = vmatprep.mubr.f32.mxu0 %v1701
      %2484 = vmatmul.mubr.f32.gmra.mrb[0].mxu0 %v1700
      %v2485 = vpop.f32.mrb[0].mxu0
      %v2486 = vadd.f32 %v2342, %v2485
      %v2487 = vpop.f32.mrb[0].mxu0
      %2488 = vmatprep.mubr.f32.mxu0 %v1704
      %2489 = vmatmul.mubr.f32.gmra.mrb[0].mxu0 %v1703
      %v2490 = vpop.f32.mrb[0].mxu0
      %v2491 = vadd.f32 %v2342, %v2490
      %v2492 = vpop.f32.mrb[0].mxu0
      %2493 = vmatprep.mubr.f32.mxu0 %v1707
      %2494 = vmatmul.mubr.f32.gmra.mrb[0].mxu0 %v1706
      %v2495 = vpop.f32.mrb[0].mxu0
      %v2496 = vadd.f32 %v2342, %v2495
      %v2497 = vpop.f32.mrb[0].mxu0
      %2498 = vmatprep.mubr.f32.mxu0 %v1710
      %2499 = vmatmul.mubr.f32.gmra.mrb[0].mxu0 %v1709
      %v2500 = vpop.f32.mrb[0].mxu0
      %v2501 = vadd.f32 %v2342, %v2500
      %v2502 = vpop.f32.mrb[0].mxu0
      %2503 = vmatprep.mubr.f32.mxu0 %v1713
      %2504 = vmatmul.mubr.f32.gmra.mrb[0].mxu0 %v1712
      %v2505 = vpop.f32.mrb[0].mxu0
      %v2506 = vadd.f32 %v2342, %v2505
      %v2507 = vpop.f32.mrb[0].mxu0
      %2508 = vmatprep.mubr.f32.mxu0 %v1716
      %2509 = vmatmul.mubr.f32.gmra.mrb[0].mxu0 %v1715
      %v2510 = vpop.f32.mrb[0].mxu0
      %v2511 = vadd.f32 %v2342, %v2510
      %v2512 = vpop.f32.mrb[0].mxu0
      %2513 = vmatprep.mubr.f32.mxu0 %v1719
      %2514 = vmatmul.mubr.f32.gmra.mrb[0].mxu0 %v1718
      %v2515 = vpop.f32.mrb[0].mxu0
      %v2516 = vadd.f32 %v2342, %v2515
      %v2517 = vpop.f32.mrb[0].mxu0
      %2518 = vmatprep.mubr.f32.mxu0 %v1722
      %2519 = vmatmul.mubr.f32.gmra.mrb[0].mxu0 %v1721
      %v2520 = vpop.f32.mrb[0].mxu0
      %v2521 = vadd.f32 %v2342, %v2520
      %v2522 = vpop.f32.mrb[0].mxu0
      %2523 = vmatprep.mubr.f32.mxu0 %v1725
      %2524 = vmatmul.mubr.f32.gmra.mrb[0].mxu0 %v1724
      %v2525 = vpop.f32.mrb[0].mxu0
      %v2526 = vadd.f32 %v2342, %v2525
      %v2527 = vpop.f32.mrb[0].mxu0
      %2528 = vmatprep.mubr.f32.mxu0 %v1728
      %2529 = vmatmul.mubr.f32.gmra.mrb[0].mxu0 %v1727
      %v2530 = vpop.f32.mrb[0].mxu0
      %v2531 = vadd.f32 %v2342, %v2530
      %v2532 = vpop.f32.mrb[0].mxu0
      %2533 = vmatprep.mubr.f32.mxu0 %v1731
      %2534 = vmatmul.mubr.f32.gmra.mrb[0].mxu0 %v1730
      %v2535 = vpop.f32.mrb[0].mxu0
      %v2536 = vadd.f32 %v2342, %v2535
      %v2537 = vpop.f32.mrb[0].mxu0
      %2538 = vmatprep.mubr.f32.mxu0 %v1734
      %2539 = vmatmul.mubr.f32.gmra.mrb[0].mxu0 %v1733
      %v2540 = vpop.f32.mrb[0].mxu0
      %v2541 = vadd.f32 %v2342, %v2540
      %v2542 = vpop.f32.mrb[0].mxu0
      %2543 = vmatprep.mubr.f32.mxu0 %v1737
      %2544 = vmatmul.mubr.f32.gmra.mrb[0].mxu0 %v1736
      %v2545 = vpop.f32.mrb[0].mxu0
      %v2546 = vadd.f32 %v2342, %v2545
      %v2547 = vpop.f32.mrb[0].mxu0
      %2548 = vmatprep.mubr.f32.mxu0 %v1740
      %2549 = vmatmul.mubr.f32.gmra.mrb[0].mxu0 %v1739
      %v2550 = vpop.f32.mrb[0].mxu0
      %v2551 = vadd.f32 %v2342, %v2550
      %v2552 = vpop.f32.mrb[0].mxu0
      %2553 = vmatprep.mubr.f32.mxu0 %v1743
      %2554 = vmatmul.mubr.f32.gmra.mrb[0].mxu0 %v1742
      %v2555 = vpop.f32.mrb[0].mxu0
      %v2556 = vadd.f32 %v2342, %v2555
      %v2557 = vpop.f32.mrb[0].mxu0
      %2558 = vmatprep.mubr.f32.mxu0 %v1746
      %2559 = vmatmul.mubr.f32.gmra.mrb[0].mxu0 %v1745
      %v2560 = vpop.f32.mrb[0].mxu0
      %v2561 = vadd.f32 %v2342, %v2560
      %v2562 = vpop.f32.mrb[0].mxu0
      %2563 = vmatprep.mubr.f32.mxu0 %v1749
      %2564 = vmatmul.mubr.f32.gmra.mrb[0].mxu0 %v1748
      %v2565 = vpop.f32.mrb[0].mxu0
      %v2566 = vadd.f32 %v2342, %v2565
      %v2567 = vpop.f32.mrb[0].mxu0
      %2568 = vdwg.mxu0
      %2569 = vmatprep.subr.mxu0 0.0
      %2570 = vmatpush1.msra.mxu0 %v2321
      %2571 = vmatprep.subr.mxu0 0.0
      %2572 = vmatpush1.msra.mxu0 %v2322
      %2573 = vmatprep.subr.mxu0 0.0
      %2574 = vmatpush1.msra.mxu0 %v2323
      %2575 = vmatprep.subr.mxu0 0.0
      %2576 = vmatpush1.msra.mxu0 %v2324
      %2577 = vmatprep.subr.mxu0 0.0
      %2578 = vmatpush1.msra.mxu0 %v2325
      %2579 = vmatprep.subr.mxu0 0.0
      %2580 = vmatpush1.msra.mxu0 %v2326
      %2581 = vmatprep.subr.mxu0 0.0
      %2582 = vmatpush1.msra.mxu0 %v2327
      %2583 = vmatprep.subr.mxu0 0.0
      %2584 = vmatpush1.msra.mxu0 %v2328
      %2585 = vmatprep.subr.mxu0 0.0
      %2586 = vmatpush1.msra.mxu0 %v2329
      %2587 = vmatprep.subr.mxu0 0.0
      %2588 = vmatpush1.msra.mxu0 %v2330
      %2589 = vmatprep.subr.mxu0 0.0
      %2590 = vmatpush1.msra.mxu0 %v2331
      %2591 = vmatprep.subr.mxu0 0.0
      %2592 = vmatpush1.msra.mxu0 %v2332
      %2593 = vmatprep.subr.mxu0 0.0
      %2594 = vmatpush1.msra.mxu0 %v2333
      %2595 = vmatprep.subr.mxu0 0.0
      %2596 = vmatpush1.msra.mxu0 %v2334
      %2597 = vmatprep.subr.mxu0 0.0
      %2598 = vmatpush1.msra.mxu0 %v2335
      %2599 = vmatprep.subr.mxu0 0.0
      %2600 = vmatpush1.msra.mxu0 %v2336
      %2601 = vmatprep.subr.mxu0 0.0
      %2602 = vmatpush1.msra.mxu0 0.0
      %2603 = vmatprep.subr.mxu0 0.0
      %2604 = vmatpush1.msra.mxu0 0.0
      %2605 = vmatprep.subr.mxu0 0.0
      %2606 = vmatpush1.msra.mxu0 0.0
      %2607 = vmatprep.subr.mxu0 0.0
      %2608 = vmatpush1.msra.mxu0 0.0
      %2609 = vmatprep.subr.mxu0 0.0
      %2610 = vmatpush1.msra.mxu0 0.0
      %2611 = vmatprep.subr.mxu0 0.0
      %2612 = vmatpush1.msra.mxu0 0.0
      %2613 = vmatprep.subr.mxu0 0.0
      %2614 = vmatpush1.msra.mxu0 0.0
      %2615 = vmatprep.subr.mxu0 0.0
      %2616 = vmatpush1.msra.mxu0 0.0
      %2617 = vmatprep.subr.mxu0 0.0
      %2618 = vmatpush1.msra.mxu0 0.0
      %2619 = vmatprep.subr.mxu0 0.0
      %2620 = vmatpush1.msra.mxu0 0.0
      %2621 = vmatprep.subr.mxu0 0.0
      %2622 = vmatpush1.msra.mxu0 0.0
      %2623 = vmatprep.subr.mxu0 0.0
      %2624 = vmatpush1.msra.mxu0 0.0
      %2625 = vmatprep.subr.mxu0 0.0
      %2626 = vmatpush1.msra.mxu0 0.0
      %2627 = vmatprep.subr.mxu0 0.0
      %2628 = vmatpush1.msra.mxu0 0.0
      %2629 = vmatprep.subr.mxu0 0.0
      %2630 = vmatpush1.msra.mxu0 0.0
      %2631 = vmatprep.subr.mxu0 0.0
      %2632 = vmatpush1.msra.mxu0 0.0
      %2633 = vmatprep.mubr.f32.mxu0 0.0
      %2634 = vmatmul.mubr.f32.gmra.mrb[0].mxu0 %v1657
      %v2635 = vpop.f32.mrb[0].mxu0
      %v2636 = vadd.f32 %v2411, %v2635
      %v2637 = vpop.f32.mrb[0].mxu0
      %2638 = vmatprep.mubr.f32.mxu0 0.0
      %2639 = vmatmul.mubr.f32.gmra.mrb[0].mxu0 %v1660
      %v2640 = vpop.f32.mrb[0].mxu0
      %v2641 = vadd.f32 %v2416, %v2640
      %v2642 = vpop.f32.mrb[0].mxu0
      %2643 = vmatprep.mubr.f32.mxu0 0.0
      %2644 = vmatmul.mubr.f32.gmra.mrb[0].mxu0 %v1663
      %v2645 = vpop.f32.mrb[0].mxu0
      %v2646 = vadd.f32 %v2421, %v2645
      %v2647 = vpop.f32.mrb[0].mxu0
      %2648 = vmatprep.mubr.f32.mxu0 0.0
      %2649 = vmatmul.mubr.f32.gmra.mrb[0].mxu0 %v1666
      %v2650 = vpop.f32.mrb[0].mxu0
      %v2651 = vadd.f32 %v2426, %v2650
      %v2652 = vpop.f32.mrb[0].mxu0
      %2653 = vmatprep.mubr.f32.mxu0 0.0
      %2654 = vmatmul.mubr.f32.gmra.mrb[0].mxu0 %v1669
      %v2655 = vpop.f32.mrb[0].mxu0
      %v2656 = vadd.f32 %v2431, %v2655
      %v2657 = vpop.f32.mrb[0].mxu0
      %2658 = vmatprep.mubr.f32.mxu0 0.0
      %2659 = vmatmul.mubr.f32.gmra.mrb[0].mxu0 %v1672
      %v2660 = vpop.f32.mrb[0].mxu0
      %v2661 = vadd.f32 %v2436, %v2660
      %v2662 = vpop.f32.mrb[0].mxu0
      %2663 = vmatprep.mubr.f32.mxu0 0.0
      %2664 = vmatmul.mubr.f32.gmra.mrb[0].mxu0 %v1675
      %v2665 = vpop.f32.mrb[0].mxu0
      %v2666 = vadd.f32 %v2441, %v2665
      %v2667 = vpop.f32.mrb[0].mxu0
      %2668 = vmatprep.mubr.f32.mxu0 0.0
      %2669 = vmatmul.mubr.f32.gmra.mrb[0].mxu0 %v1678
      %v2670 = vpop.f32.mrb[0].mxu0
      %v2671 = vadd.f32 %v2446, %v2670
      %v2672 = vpop.f32.mrb[0].mxu0
      %2673 = vmatprep.mubr.f32.mxu0 0.0
      %2674 = vmatmul.mubr.f32.gmra.mrb[0].mxu0 %v1681
      %v2675 = vpop.f32.mrb[0].mxu0
      %v2676 = vadd.f32 %v2451, %v2675
      %v2677 = vpop.f32.mrb[0].mxu0
      %2678 = vmatprep.mubr.f32.mxu0 0.0
      %2679 = vmatmul.mubr.f32.gmra.mrb[0].mxu0 %v1684
      %v2680 = vpop.f32.mrb[0].mxu0
      %v2681 = vadd.f32 %v2456, %v2680
      %v2682 = vpop.f32.mrb[0].mxu0
      %2683 = vmatprep.mubr.f32.mxu0 0.0
      %2684 = vmatmul.mubr.f32.gmra.mrb[0].mxu0 %v1687
      %v2685 = vpop.f32.mrb[0].mxu0
      %v2686 = vadd.f32 %v2461, %v2685
      %v2687 = vpop.f32.mrb[0].mxu0
      %2688 = vmatprep.mubr.f32.mxu0 0.0
      %2689 = vmatmul.mubr.f32.gmra.mrb[0].mxu0 %v1690
      %v2690 = vpop.f32.mrb[0].mxu0
      %v2691 = vadd.f32 %v2466, %v2690
      %v2692 = vpop.f32.mrb[0].mxu0
      %2693 = vmatprep.mubr.f32.mxu0 0.0
      %2694 = vmatmul.mubr.f32.gmra.mrb[0].mxu0 %v1693
      %v2695 = vpop.f32.mrb[0].mxu0
      %v2696 = vadd.f32 %v2471, %v2695
      %v2697 = vpop.f32.mrb[0].mxu0
      %2698 = vmatprep.mubr.f32.mxu0 0.0
      %2699 = vmatmul.mubr.f32.gmra.mrb[0].mxu0 %v1696
      %v2700 = vpop.f32.mrb[0].mxu0
      %v2701 = vadd.f32 %v2476, %v2700
      %v2702 = vpop.f32.mrb[0].mxu0
      %2703 = vmatprep.mubr.f32.mxu0 0.0
      %2704 = vmatmul.mubr.f32.gmra.mrb[0].mxu0 %v1699
      %v2705 = vpop.f32.mrb[0].mxu0
      %v2706 = vadd.f32 %v2481, %v2705
      %v2707 = vpop.f32.mrb[0].mxu0
      %2708 = vmatprep.mubr.f32.mxu0 0.0
      %2709 = vmatmul.mubr.f32.gmra.mrb[0].mxu0 %v1702
      %v2710 = vpop.f32.mrb[0].mxu0
      %v2711 = vadd.f32 %v2486, %v2710
      %v2712 = vpop.f32.mrb[0].mxu0
      %2713 = vmatprep.mubr.f32.mxu0 0.0
      %2714 = vmatmul.mubr.f32.gmra.mrb[0].mxu0 %v1705
      %v2715 = vpop.f32.mrb[0].mxu0
      %v2716 = vadd.f32 %v2491, %v2715
      %v2717 = vpop.f32.mrb[0].mxu0
      %2718 = vmatprep.mubr.f32.mxu0 0.0
      %2719 = vmatmul.mubr.f32.gmra.mrb[0].mxu0 %v1708
      %v2720 = vpop.f32.mrb[0].mxu0
      %v2721 = vadd.f32 %v2496, %v2720
      %v2722 = vpop.f32.mrb[0].mxu0
      %2723 = vmatprep.mubr.f32.mxu0 0.0
      %2724 = vmatmul.mubr.f32.gmra.mrb[0].mxu0 %v1711
      %v2725 = vpop.f32.mrb[0].mxu0
      %v2726 = vadd.f32 %v2501, %v2725
      %v2727 = vpop.f32.mrb[0].mxu0
      %2728 = vmatprep.mubr.f32.mxu0 0.0
      %2729 = vmatmul.mubr.f32.gmra.mrb[0].mxu0 %v1714
      %v2730 = vpop.f32.mrb[0].mxu0
      %v2731 = vadd.f32 %v2506, %v2730
      %v2732 = vpop.f32.mrb[0].mxu0
      %2733 = vmatprep.mubr.f32.mxu0 0.0
      %2734 = vmatmul.mubr.f32.gmra.mrb[0].mxu0 %v1717
      %v2735 = vpop.f32.mrb[0].mxu0
      %v2736 = vadd.f32 %v2511, %v2735
      %v2737 = vpop.f32.mrb[0].mxu0
      %2738 = vmatprep.mubr.f32.mxu0 0.0
      %2739 = vmatmul.mubr.f32.gmra.mrb[0].mxu0 %v1720
      %v2740 = vpop.f32.mrb[0].mxu0
      %v2741 = vadd.f32 %v2516, %v2740
      %v2742 = vpop.f32.mrb[0].mxu0
      %2743 = vmatprep.mubr.f32.mxu0 0.0
      %2744 = vmatmul.mubr.f32.gmra.mrb[0].mxu0 %v1723
      %v2745 = vpop.f32.mrb[0].mxu0
      %v2746 = vadd.f32 %v2521, %v2745
      %v2747 = vpop.f32.mrb[0].mxu0
      %2748 = vmatprep.mubr.f32.mxu0 0.0
      %2749 = vmatmul.mubr.f32.gmra.mrb[0].mxu0 %v1726
      %v2750 = vpop.f32.mrb[0].mxu0
      %v2751 = vadd.f32 %v2526, %v2750
      %v2752 = vpop.f32.mrb[0].mxu0
      %2753 = vmatprep.mubr.f32.mxu0 0.0
      %2754 = vmatmul.mubr.f32.gmra.mrb[0].mxu0 %v1729
      %v2755 = vpop.f32.mrb[0].mxu0
      %v2756 = vadd.f32 %v2531, %v2755
      %v2757 = vpop.f32.mrb[0].mxu0
      %2758 = vmatprep.mubr.f32.mxu0 0.0
      %2759 = vmatmul.mubr.f32.gmra.mrb[0].mxu0 %v1732
      %v2760 = vpop.f32.mrb[0].mxu0
      %v2761 = vadd.f32 %v2536, %v2760
      %v2762 = vpop.f32.mrb[0].mxu0
      %2763 = vmatprep.mubr.f32.mxu0 0.0
      %2764 = vmatmul.mubr.f32.gmra.mrb[0].mxu0 %v1735
      %v2765 = vpop.f32.mrb[0].mxu0
      %v2766 = vadd.f32 %v2541, %v2765
      %v2767 = vpop.f32.mrb[0].mxu0
      %2768 = vmatprep.mubr.f32.mxu0 0.0
      %2769 = vmatmul.mubr.f32.gmra.mrb[0].mxu0 %v1738
      %v2770 = vpop.f32.mrb[0].mxu0
      %v2771 = vadd.f32 %v2546, %v2770
      %v2772 = vpop.f32.mrb[0].mxu0
      %2773 = vmatprep.mubr.f32.mxu0 0.0
      %2774 = vmatmul.mubr.f32.gmra.mrb[0].mxu0 %v1741
      %v2775 = vpop.f32.mrb[0].mxu0
      %v2776 = vadd.f32 %v2551, %v2775
      %v2777 = vpop.f32.mrb[0].mxu0
      %2778 = vmatprep.mubr.f32.mxu0 0.0
      %2779 = vmatmul.mubr.f32.gmra.mrb[0].mxu0 %v1744
      %v2780 = vpop.f32.mrb[0].mxu0
      %v2781 = vadd.f32 %v2556, %v2780
      %v2782 = vpop.f32.mrb[0].mxu0
      %2783 = vmatprep.mubr.f32.mxu0 0.0
      %2784 = vmatmul.mubr.f32.gmra.mrb[0].mxu0 %v1747
      %v2785 = vpop.f32.mrb[0].mxu0
      %v2786 = vadd.f32 %v2561, %v2785
      %v2787 = vpop.f32.mrb[0].mxu0
      %2788 = vmatprep.mubr.f32.mxu0 0.0
      %2789 = vmatmul.mubr.f32.gmra.mrb[0].mxu0 %v1750
      %v2790 = vpop.f32.mrb[0].mxu0
      %v2791 = vadd.f32 %v2566, %v2790
      %v2792 = vpop.f32.mrb[0].mxu0
      %2793 = vdwg.mxu0
      %v2794 = vlaneseq
      %v2795 = vand.u32 %v2794, 127
      %vm2796 = vcmp.lt.s32.totalorder %v2795, 0
      %v2797 = vsub.s32 0, %v2795
      %v2798 = vsel %vm2796, %v2797, %v2795
      %v2799 = vmul.u32.u64.compose %v2798, 3435973837
      %v2800 = vextract.low.u32 %v2799
      %v2801 = vextract.high.u32 %v2799
      %v2802 = vshrl.u32 %v2801, 2
      %v2803 = vmul.u32 %v2802, 5
      %v2804 = vsub.s32 %v2798, %v2803
      %v2805 = vsub.s32 0, %v2804
      %v2806 = vsel %vm2796, %v2805, %v2804
      %vm2807 = vcmp.ne.s32.totalorder %v2806, 0
      %vm2808 = vcmp.lt.s32.totalorder %v2806, 0
      %vm2809 = vmand %vm2808, %vm2807
      %v2810 = vadd.s32 %v2806, 5
      %v2811 = vsel %vm2809, %v2810, %v2806
      %vm2812 = vcmp.eq.s32.totalorder %v2811, 0
      %v2813 = vmax.f32 %v2636, 0.0
      %v2814 = vmax.f32 %v2641, 0.0
      %v2815 = vmax.f32 %v2646, 0.0
      %v2816 = vmax.f32 %v2651, 0.0
      %v2817 = vmax.f32 %v2656, 0.0
      %v2818 = vmax.f32 %v2661, 0.0
      %v2819 = vmax.f32 %v2666, 0.0
      %v2820 = vmax.f32 %v2671, 0.0
      %v2821 = vmax.f32 %v2676, 0.0
      %v2822 = vmax.f32 %v2681, 0.0
      %v2823 = vmax.f32 %v2686, 0.0
      %v2824 = vmax.f32 %v2691, 0.0
      %v2825 = vmax.f32 %v2696, 0.0
      %v2826 = vmax.f32 %v2701, 0.0
      %v2827 = vmax.f32 %v2706, 0.0
      %v2828 = vmax.f32 %v2711, 0.0
      %v2829 = vmax.f32 %v2716, 0.0
      %v2830 = vmax.f32 %v2721, 0.0
      %v2831 = vmax.f32 %v2726, 0.0
      %v2832 = vmax.f32 %v2731, 0.0
      %v2833 = vmax.f32 %v2736, 0.0
      %v2834 = vmax.f32 %v2741, 0.0
      %v2835 = vmax.f32 %v2746, 0.0
      %v2836 = vmax.f32 %v2751, 0.0
      %v2837 = vmax.f32 %v2756, 0.0
      %v2838 = vmax.f32 %v2761, 0.0
      %v2839 = vmax.f32 %v2766, 0.0
      %v2840 = vmax.f32 %v2771, 0.0
      %v2841 = vmax.f32 %v2776, 0.0
      %v2842 = vmax.f32 %v2781, 0.0
      %v2843 = vmax.f32 %v2786, 0.0
      %v2844 = vmax.f32 %v2791, 0.0
      %v2845 = vand.u32 2147483647, %v2636
      %v2846 = vand.u32 2147483647, %v2641
      %v2847 = vand.u32 2147483647, %v2646
      %v2848 = vand.u32 2147483647, %v2651
      %v2849 = vand.u32 2147483647, %v2656
      %v2850 = vand.u32 2147483647, %v2661
      %v2851 = vand.u32 2147483647, %v2666
      %v2852 = vand.u32 2147483647, %v2671
      %v2853 = vand.u32 2147483647, %v2676
      %v2854 = vand.u32 2147483647, %v2681
      %v2855 = vand.u32 2147483647, %v2686
      %v2856 = vand.u32 2147483647, %v2691
      %v2857 = vand.u32 2147483647, %v2696
      %v2858 = vand.u32 2147483647, %v2701
      %v2859 = vand.u32 2147483647, %v2706
      %v2860 = vand.u32 2147483647, %v2711
      %v2861 = vand.u32 2147483647, %v2716
      %v2862 = vand.u32 2147483647, %v2721
      %v2863 = vand.u32 2147483647, %v2726
      %v2864 = vand.u32 2147483647, %v2731
      %v2865 = vand.u32 2147483647, %v2736
      %v2866 = vand.u32 2147483647, %v2741
      %v2867 = vand.u32 2147483647, %v2746
      %v2868 = vand.u32 2147483647, %v2751
      %v2869 = vand.u32 2147483647, %v2756
      %v2870 = vand.u32 2147483647, %v2761
      %v2871 = vand.u32 2147483647, %v2766
      %v2872 = vand.u32 2147483647, %v2771
      %v2873 = vand.u32 2147483647, %v2776
      %v2874 = vand.u32 2147483647, %v2781
      %v2875 = vand.u32 2147483647, %v2786
      %v2876 = vand.u32 2147483647, %v2791
      %v2877 = vsub.f32 0.0, %v2845
      %v2878 = vsub.f32 0.0, %v2846
      %v2879 = vsub.f32 0.0, %v2847
      %v2880 = vsub.f32 0.0, %v2848
      %v2881 = vsub.f32 0.0, %v2849
      %v2882 = vsub.f32 0.0, %v2850
      %v2883 = vsub.f32 0.0, %v2851
      %v2884 = vsub.f32 0.0, %v2852
      %v2885 = vsub.f32 0.0, %v2853
      %v2886 = vsub.f32 0.0, %v2854
      %v2887 = vsub.f32 0.0, %v2855
      %v2888 = vsub.f32 0.0, %v2856
      %v2889 = vsub.f32 0.0, %v2857
      %v2890 = vsub.f32 0.0, %v2858
      %v2891 = vsub.f32 0.0, %v2859
      %v2892 = vsub.f32 0.0, %v2860
      %v2893 = vsub.f32 0.0, %v2861
      %v2894 = vsub.f32 0.0, %v2862
      %v2895 = vsub.f32 0.0, %v2863
      %v2896 = vsub.f32 0.0, %v2864
      %v2897 = vsub.f32 0.0, %v2865
      %v2898 = vsub.f32 0.0, %v2866
      %v2899 = vsub.f32 0.0, %v2867
      %v2900 = vsub.f32 0.0, %v2868
      %v2901 = vsub.f32 0.0, %v2869
      %v2902 = vsub.f32 0.0, %v2870
      %v2903 = vsub.f32 0.0, %v2871
      %v2904 = vsub.f32 0.0, %v2872
      %v2905 = vsub.f32 0.0, %v2873
      %v2906 = vsub.f32 0.0, %v2874
      %v2907 = vsub.f32 0.0, %v2875
      %v2908 = vsub.f32 0.0, %v2876
      %v2909 = vmul.f32 %v2877, 1.442695
      %v2910 = vpow.pop %v2909
      %v2911 = vmul.f32 %v2878, 1.442695
      %v2912 = vpow.pop %v2911
      %v2913 = vmul.f32 %v2879, 1.442695
      %v2914 = vpow.pop %v2913
      %v2915 = vmul.f32 %v2880, 1.442695
      %v2916 = vpow.pop %v2915
      %v2917 = vmul.f32 %v2881, 1.442695
      %v2918 = vpow.pop %v2917
      %v2919 = vmul.f32 %v2882, 1.442695
      %v2920 = vpow.pop %v2919
      %v2921 = vmul.f32 %v2883, 1.442695
      %v2922 = vpow.pop %v2921
      %v2923 = vmul.f32 %v2884, 1.442695
      %v2924 = vpow.pop %v2923
      %v2925 = vmul.f32 %v2885, 1.442695
      %v2926 = vpow.pop %v2925
      %v2927 = vmul.f32 %v2886, 1.442695
      %v2928 = vpow.pop %v2927
      %v2929 = vmul.f32 %v2887, 1.442695
      %v2930 = vpow.pop %v2929
      %v2931 = vmul.f32 %v2888, 1.442695
      %v2932 = vpow.pop %v2931
      %v2933 = vmul.f32 %v2889, 1.442695
      %v2934 = vpow.pop %v2933
      %v2935 = vmul.f32 %v2890, 1.442695
      %v2936 = vpow.pop %v2935
      %v2937 = vmul.f32 %v2891, 1.442695
      %v2938 = vpow.pop %v2937
      %v2939 = vmul.f32 %v2892, 1.442695
      %v2940 = vpow.pop %v2939
      %v2941 = vmul.f32 %v2893, 1.442695
      %v2942 = vpow.pop %v2941
      %v2943 = vmul.f32 %v2894, 1.442695
      %v2944 = vpow.pop %v2943
      %v2945 = vmul.f32 %v2895, 1.442695
      %v2946 = vpow.pop %v2945
      %v2947 = vmul.f32 %v2896, 1.442695
      %v2948 = vpow.pop %v2947
      %v2949 = vmul.f32 %v2897, 1.442695
      %v2950 = vpow.pop %v2949
      %v2951 = vmul.f32 %v2898, 1.442695
      %v2952 = vpow.pop %v2951
      %v2953 = vmul.f32 %v2899, 1.442695
      %v2954 = vpow.pop %v2953
      %v2955 = vmul.f32 %v2900, 1.442695
      %v2956 = vpow.pop %v2955
      %v2957 = vmul.f32 %v2901, 1.442695
      %v2958 = vpow.pop %v2957
      %v2959 = vmul.f32 %v2902, 1.442695
      %v2960 = vpow.pop %v2959
      %v2961 = vmul.f32 %v2903, 1.442695
      %v2962 = vpow.pop %v2961
      %v2963 = vmul.f32 %v2904, 1.442695
      %v2964 = vpow.pop %v2963
      %v2965 = vmul.f32 %v2905, 1.442695
      %v2966 = vpow.pop %v2965
      %v2967 = vmul.f32 %v2906, 1.442695
      %v2968 = vpow.pop %v2967
      %v2969 = vmul.f32 %v2907, 1.442695
      %v2970 = vpow.pop %v2969
      %v2971 = vmul.f32 %v2908, 1.442695
      %v2972 = vpow.pop %v2971
      %v2973 = vadd.f32 %v2910, 1.0
      %v2974 = vlog2.pop %v2973
      %v2975 = vmul.f32 %v2974, 0.6931472
      %v2976 = vmul.f32 -0.5, %v2910
      %v2977 = vadd.f32 %v2976, 1.0
      %v2978 = vmul.f32 %v2977, %v2910
      %v2979 = vand.u32 2147483647, %v2910
      %vm2980 = vcmp.lt.f32.partialorder %v2979, 0.0004427343
      %v2981 = vsel %vm2980, %v2978, %v2975
      %v2982 = vadd.f32 %v2912, 1.0
      %v2983 = vlog2.pop %v2982
      %v2984 = vmul.f32 %v2983, 0.6931472
      %v2985 = vmul.f32 -0.5, %v2912
      %v2986 = vadd.f32 %v2985, 1.0
      %v2987 = vmul.f32 %v2986, %v2912
      %v2988 = vand.u32 2147483647, %v2912
      %vm2989 = vcmp.lt.f32.partialorder %v2988, 0.0004427343
      %v2990 = vsel %vm2989, %v2987, %v2984
      %v2991 = vadd.f32 %v2914, 1.0
      %v2992 = vlog2.pop %v2991
      %v2993 = vmul.f32 %v2992, 0.6931472
      %v2994 = vmul.f32 -0.5, %v2914
      %v2995 = vadd.f32 %v2994, 1.0
      %v2996 = vmul.f32 %v2995, %v2914
      %v2997 = vand.u32 2147483647, %v2914
      %vm2998 = vcmp.lt.f32.partialorder %v2997, 0.0004427343
      %v2999 = vsel %vm2998, %v2996, %v2993
      %v3000 = vadd.f32 %v2916, 1.0
      %v3001 = vlog2.pop %v3000
      %v3002 = vmul.f32 %v3001, 0.6931472
      %v3003 = vmul.f32 -0.5, %v2916
      %v3004 = vadd.f32 %v3003, 1.0
      %v3005 = vmul.f32 %v3004, %v2916
      %v3006 = vand.u32 2147483647, %v2916
      %vm3007 = vcmp.lt.f32.partialorder %v3006, 0.0004427343
      %v3008 = vsel %vm3007, %v3005, %v3002
      %v3009 = vadd.f32 %v2918, 1.0
      %v3010 = vlog2.pop %v3009
      %v3011 = vmul.f32 %v3010, 0.6931472
      %v3012 = vmul.f32 -0.5, %v2918
      %v3013 = vadd.f32 %v3012, 1.0
      %v3014 = vmul.f32 %v3013, %v2918
      %v3015 = vand.u32 2147483647, %v2918
      %vm3016 = vcmp.lt.f32.partialorder %v3015, 0.0004427343
      %v3017 = vsel %vm3016, %v3014, %v3011
      %v3018 = vadd.f32 %v2920, 1.0
      %v3019 = vlog2.pop %v3018
      %v3020 = vmul.f32 %v3019, 0.6931472
      %v3021 = vmul.f32 -0.5, %v2920
      %v3022 = vadd.f32 %v3021, 1.0
      %v3023 = vmul.f32 %v3022, %v2920
      %v3024 = vand.u32 2147483647, %v2920
      %vm3025 = vcmp.lt.f32.partialorder %v3024, 0.0004427343
      %v3026 = vsel %vm3025, %v3023, %v3020
      %v3027 = vadd.f32 %v2922, 1.0
      %v3028 = vlog2.pop %v3027
      %v3029 = vmul.f32 %v3028, 0.6931472
      %v3030 = vmul.f32 -0.5, %v2922
      %v3031 = vadd.f32 %v3030, 1.0
      %v3032 = vmul.f32 %v3031, %v2922
      %v3033 = vand.u32 2147483647, %v2922
      %vm3034 = vcmp.lt.f32.partialorder %v3033, 0.0004427343
      %v3035 = vsel %vm3034, %v3032, %v3029
      %v3036 = vadd.f32 %v2924, 1.0
      %v3037 = vlog2.pop %v3036
      %v3038 = vmul.f32 %v3037, 0.6931472
      %v3039 = vmul.f32 -0.5, %v2924
      %v3040 = vadd.f32 %v3039, 1.0
      %v3041 = vmul.f32 %v3040, %v2924
      %v3042 = vand.u32 2147483647, %v2924
      %vm3043 = vcmp.lt.f32.partialorder %v3042, 0.0004427343
      %v3044 = vsel %vm3043, %v3041, %v3038
      %v3045 = vadd.f32 %v2926, 1.0
      %v3046 = vlog2.pop %v3045
      %v3047 = vmul.f32 %v3046, 0.6931472
      %v3048 = vmul.f32 -0.5, %v2926
      %v3049 = vadd.f32 %v3048, 1.0
      %v3050 = vmul.f32 %v3049, %v2926
      %v3051 = vand.u32 2147483647, %v2926
      %vm3052 = vcmp.lt.f32.partialorder %v3051, 0.0004427343
      %v3053 = vsel %vm3052, %v3050, %v3047
      %v3054 = vadd.f32 %v2928, 1.0
      %v3055 = vlog2.pop %v3054
      %v3056 = vmul.f32 %v3055, 0.6931472
      %v3057 = vmul.f32 -0.5, %v2928
      %v3058 = vadd.f32 %v3057, 1.0
      %v3059 = vmul.f32 %v3058, %v2928
      %v3060 = vand.u32 2147483647, %v2928
      %vm3061 = vcmp.lt.f32.partialorder %v3060, 0.0004427343
      %v3062 = vsel %vm3061, %v3059, %v3056
      %v3063 = vadd.f32 %v2930, 1.0
      %v3064 = vlog2.pop %v3063
      %v3065 = vmul.f32 %v3064, 0.6931472
      %v3066 = vmul.f32 -0.5, %v2930
      %v3067 = vadd.f32 %v3066, 1.0
      %v3068 = vmul.f32 %v3067, %v2930
      %v3069 = vand.u32 2147483647, %v2930
      %vm3070 = vcmp.lt.f32.partialorder %v3069, 0.0004427343
      %v3071 = vsel %vm3070, %v3068, %v3065
      %v3072 = vadd.f32 %v2932, 1.0
      %v3073 = vlog2.pop %v3072
      %v3074 = vmul.f32 %v3073, 0.6931472
      %v3075 = vmul.f32 -0.5, %v2932
      %v3076 = vadd.f32 %v3075, 1.0
      %v3077 = vmul.f32 %v3076, %v2932
      %v3078 = vand.u32 2147483647, %v2932
      %vm3079 = vcmp.lt.f32.partialorder %v3078, 0.0004427343
      %v3080 = vsel %vm3079, %v3077, %v3074
      %v3081 = vadd.f32 %v2934, 1.0
      %v3082 = vlog2.pop %v3081
      %v3083 = vmul.f32 %v3082, 0.6931472
      %v3084 = vmul.f32 -0.5, %v2934
      %v3085 = vadd.f32 %v3084, 1.0
      %v3086 = vmul.f32 %v3085, %v2934
      %v3087 = vand.u32 2147483647, %v2934
      %vm3088 = vcmp.lt.f32.partialorder %v3087, 0.0004427343
      %v3089 = vsel %vm3088, %v3086, %v3083
      %v3090 = vadd.f32 %v2936, 1.0
      %v3091 = vlog2.pop %v3090
      %v3092 = vmul.f32 %v3091, 0.6931472
      %v3093 = vmul.f32 -0.5, %v2936
      %v3094 = vadd.f32 %v3093, 1.0
      %v3095 = vmul.f32 %v3094, %v2936
      %v3096 = vand.u32 2147483647, %v2936
      %vm3097 = vcmp.lt.f32.partialorder %v3096, 0.0004427343
      %v3098 = vsel %vm3097, %v3095, %v3092
      %v3099 = vadd.f32 %v2938, 1.0
      %v3100 = vlog2.pop %v3099
      %v3101 = vmul.f32 %v3100, 0.6931472
      %v3102 = vmul.f32 -0.5, %v2938
      %v3103 = vadd.f32 %v3102, 1.0
      %v3104 = vmul.f32 %v3103, %v2938
      %v3105 = vand.u32 2147483647, %v2938
      %vm3106 = vcmp.lt.f32.partialorder %v3105, 0.0004427343
      %v3107 = vsel %vm3106, %v3104, %v3101
      %v3108 = vadd.f32 %v2940, 1.0
      %v3109 = vlog2.pop %v3108
      %v3110 = vmul.f32 %v3109, 0.6931472
      %v3111 = vmul.f32 -0.5, %v2940
      %v3112 = vadd.f32 %v3111, 1.0
      %v3113 = vmul.f32 %v3112, %v2940
      %v3114 = vand.u32 2147483647, %v2940
      %vm3115 = vcmp.lt.f32.partialorder %v3114, 0.0004427343
      %v3116 = vsel %vm3115, %v3113, %v3110
      %v3117 = vadd.f32 %v2942, 1.0
      %v3118 = vlog2.pop %v3117
      %v3119 = vmul.f32 %v3118, 0.6931472
      %v3120 = vmul.f32 -0.5, %v2942
      %v3121 = vadd.f32 %v3120, 1.0
      %v3122 = vmul.f32 %v3121, %v2942
      %v3123 = vand.u32 2147483647, %v2942
      %vm3124 = vcmp.lt.f32.partialorder %v3123, 0.0004427343
      %v3125 = vsel %vm3124, %v3122, %v3119
      %v3126 = vadd.f32 %v2944, 1.0
      %v3127 = vlog2.pop %v3126
      %v3128 = vmul.f32 %v3127, 0.6931472
      %v3129 = vmul.f32 -0.5, %v2944
      %v3130 = vadd.f32 %v3129, 1.0
      %v3131 = vmul.f32 %v3130, %v2944
      %v3132 = vand.u32 2147483647, %v2944
      %vm3133 = vcmp.lt.f32.partialorder %v3132, 0.0004427343
      %v3134 = vsel %vm3133, %v3131, %v3128
      %v3135 = vadd.f32 %v2946, 1.0
      %v3136 = vlog2.pop %v3135
      %v3137 = vmul.f32 %v3136, 0.6931472
      %v3138 = vmul.f32 -0.5, %v2946
      %v3139 = vadd.f32 %v3138, 1.0
      %v3140 = vmul.f32 %v3139, %v2946
      %v3141 = vand.u32 2147483647, %v2946
      %vm3142 = vcmp.lt.f32.partialorder %v3141, 0.0004427343
      %v3143 = vsel %vm3142, %v3140, %v3137
      %v3144 = vadd.f32 %v2948, 1.0
      %v3145 = vlog2.pop %v3144
      %v3146 = vmul.f32 %v3145, 0.6931472
      %v3147 = vmul.f32 -0.5, %v2948
      %v3148 = vadd.f32 %v3147, 1.0
      %v3149 = vmul.f32 %v3148, %v2948
      %v3150 = vand.u32 2147483647, %v2948
      %vm3151 = vcmp.lt.f32.partialorder %v3150, 0.0004427343
      %v3152 = vsel %vm3151, %v3149, %v3146
      %v3153 = vadd.f32 %v2950, 1.0
      %v3154 = vlog2.pop %v3153
      %v3155 = vmul.f32 %v3154, 0.6931472
      %v3156 = vmul.f32 -0.5, %v2950
      %v3157 = vadd.f32 %v3156, 1.0
      %v3158 = vmul.f32 %v3157, %v2950
      %v3159 = vand.u32 2147483647, %v2950
      %vm3160 = vcmp.lt.f32.partialorder %v3159, 0.0004427343
      %v3161 = vsel %vm3160, %v3158, %v3155
      %v3162 = vadd.f32 %v2952, 1.0
      %v3163 = vlog2.pop %v3162
      %v3164 = vmul.f32 %v3163, 0.6931472
      %v3165 = vmul.f32 -0.5, %v2952
      %v3166 = vadd.f32 %v3165, 1.0
      %v3167 = vmul.f32 %v3166, %v2952
      %v3168 = vand.u32 2147483647, %v2952
      %vm3169 = vcmp.lt.f32.partialorder %v3168, 0.0004427343
      %v3170 = vsel %vm3169, %v3167, %v3164
      %v3171 = vadd.f32 %v2954, 1.0
      %v3172 = vlog2.pop %v3171
      %v3173 = vmul.f32 %v3172, 0.6931472
      %v3174 = vmul.f32 -0.5, %v2954
      %v3175 = vadd.f32 %v3174, 1.0
      %v3176 = vmul.f32 %v3175, %v2954
      %v3177 = vand.u32 2147483647, %v2954
      %vm3178 = vcmp.lt.f32.partialorder %v3177, 0.0004427343
      %v3179 = vsel %vm3178, %v3176, %v3173
      %v3180 = vadd.f32 %v2956, 1.0
      %v3181 = vlog2.pop %v3180
      %v3182 = vmul.f32 %v3181, 0.6931472
      %v3183 = vmul.f32 -0.5, %v2956
      %v3184 = vadd.f32 %v3183, 1.0
      %v3185 = vmul.f32 %v3184, %v2956
      %v3186 = vand.u32 2147483647, %v2956
      %vm3187 = vcmp.lt.f32.partialorder %v3186, 0.0004427343
      %v3188 = vsel %vm3187, %v3185, %v3182
      %v3189 = vadd.f32 %v2958, 1.0
      %v3190 = vlog2.pop %v3189
      %v3191 = vmul.f32 %v3190, 0.6931472
      %v3192 = vmul.f32 -0.5, %v2958
      %v3193 = vadd.f32 %v3192, 1.0
      %v3194 = vmul.f32 %v3193, %v2958
      %v3195 = vand.u32 2147483647, %v2958
      %vm3196 = vcmp.lt.f32.partialorder %v3195, 0.0004427343
      %v3197 = vsel %vm3196, %v3194, %v3191
      %v3198 = vadd.f32 %v2960, 1.0
      %v3199 = vlog2.pop %v3198
      %v3200 = vmul.f32 %v3199, 0.6931472
      %v3201 = vmul.f32 -0.5, %v2960
      %v3202 = vadd.f32 %v3201, 1.0
      %v3203 = vmul.f32 %v3202, %v2960
      %v3204 = vand.u32 2147483647, %v2960
      %vm3205 = vcmp.lt.f32.partialorder %v3204, 0.0004427343
      %v3206 = vsel %vm3205, %v3203, %v3200
      %v3207 = vadd.f32 %v2962, 1.0
      %v3208 = vlog2.pop %v3207
      %v3209 = vmul.f32 %v3208, 0.6931472
      %v3210 = vmul.f32 -0.5, %v2962
      %v3211 = vadd.f32 %v3210, 1.0
      %v3212 = vmul.f32 %v3211, %v2962
      %v3213 = vand.u32 2147483647, %v2962
      %vm3214 = vcmp.lt.f32.partialorder %v3213, 0.0004427343
      %v3215 = vsel %vm3214, %v3212, %v3209
      %v3216 = vadd.f32 %v2964, 1.0
      %v3217 = vlog2.pop %v3216
      %v3218 = vmul.f32 %v3217, 0.6931472
      %v3219 = vmul.f32 -0.5, %v2964
      %v3220 = vadd.f32 %v3219, 1.0
      %v3221 = vmul.f32 %v3220, %v2964
      %v3222 = vand.u32 2147483647, %v2964
      %vm3223 = vcmp.lt.f32.partialorder %v3222, 0.0004427343
      %v3224 = vsel %vm3223, %v3221, %v3218
      %v3225 = vadd.f32 %v2966, 1.0
      %v3226 = vlog2.pop %v3225
      %v3227 = vmul.f32 %v3226, 0.6931472
      %v3228 = vmul.f32 -0.5, %v2966
      %v3229 = vadd.f32 %v3228, 1.0
      %v3230 = vmul.f32 %v3229, %v2966
      %v3231 = vand.u32 2147483647, %v2966
      %vm3232 = vcmp.lt.f32.partialorder %v3231, 0.0004427343
      %v3233 = vsel %vm3232, %v3230, %v3227
      %v3234 = vadd.f32 %v2968, 1.0
      %v3235 = vlog2.pop %v3234
      %v3236 = vmul.f32 %v3235, 0.6931472
      %v3237 = vmul.f32 -0.5, %v2968
      %v3238 = vadd.f32 %v3237, 1.0
      %v3239 = vmul.f32 %v3238, %v2968
      %v3240 = vand.u32 2147483647, %v2968
      %vm3241 = vcmp.lt.f32.partialorder %v3240, 0.0004427343
      %v3242 = vsel %vm3241, %v3239, %v3236
      %v3243 = vadd.f32 %v2970, 1.0
      %v3244 = vlog2.pop %v3243
      %v3245 = vmul.f32 %v3244, 0.6931472
      %v3246 = vmul.f32 -0.5, %v2970
      %v3247 = vadd.f32 %v3246, 1.0
      %v3248 = vmul.f32 %v3247, %v2970
      %v3249 = vand.u32 2147483647, %v2970
      %vm3250 = vcmp.lt.f32.partialorder %v3249, 0.0004427343
      %v3251 = vsel %vm3250, %v3248, %v3245
      %v3252 = vadd.f32 %v2972, 1.0
      %v3253 = vlog2.pop %v3252
      %v3254 = vmul.f32 %v3253, 0.6931472
      %v3255 = vmul.f32 -0.5, %v2972
      %v3256 = vadd.f32 %v3255, 1.0
      %v3257 = vmul.f32 %v3256, %v2972
      %v3258 = vand.u32 2147483647, %v2972
      %vm3259 = vcmp.lt.f32.partialorder %v3258, 0.0004427343
      %v3260 = vsel %vm3259, %v3257, %v3254
      %v3261 = vadd.f32 %v2813, %v2981
      %v3262 = vadd.f32 %v2814, %v2990
      %v3263 = vadd.f32 %v2815, %v2999
      %v3264 = vadd.f32 %v2816, %v3008
      %v3265 = vadd.f32 %v2817, %v3017
      %v3266 = vadd.f32 %v2818, %v3026
      %v3267 = vadd.f32 %v2819, %v3035
      %v3268 = vadd.f32 %v2820, %v3044
      %v3269 = vadd.f32 %v2821, %v3053
      %v3270 = vadd.f32 %v2822, %v3062
      %v3271 = vadd.f32 %v2823, %v3071
      %v3272 = vadd.f32 %v2824, %v3080
      %v3273 = vadd.f32 %v2825, %v3089
      %v3274 = vadd.f32 %v2826, %v3098
      %v3275 = vadd.f32 %v2827, %v3107
      %v3276 = vadd.f32 %v2828, %v3116
      %v3277 = vadd.f32 %v2829, %v3125
      %v3278 = vadd.f32 %v2830, %v3134
      %v3279 = vadd.f32 %v2831, %v3143
      %v3280 = vadd.f32 %v2832, %v3152
      %v3281 = vadd.f32 %v2833, %v3161
      %v3282 = vadd.f32 %v2834, %v3170
      %v3283 = vadd.f32 %v2835, %v3179
      %v3284 = vadd.f32 %v2836, %v3188
      %v3285 = vadd.f32 %v2837, %v3197
      %v3286 = vadd.f32 %v2838, %v3206
      %v3287 = vadd.f32 %v2839, %v3215
      %v3288 = vadd.f32 %v2840, %v3224
      %v3289 = vadd.f32 %v2841, %v3233
      %v3290 = vadd.f32 %v2842, %v3242
      %v3291 = vadd.f32 %v2843, %v3251
      %v3292 = vadd.f32 %v2844, %v3260
      %v3293 = vadd.f32 %v3261, 1e-06
      %v3294 = vadd.f32 %v3262, 1e-06
      %v3295 = vadd.f32 %v3263, 1e-06
      %v3296 = vadd.f32 %v3264, 1e-06
      %v3297 = vadd.f32 %v3265, 1e-06
      %v3298 = vadd.f32 %v3266, 1e-06
      %v3299 = vadd.f32 %v3267, 1e-06
      %v3300 = vadd.f32 %v3268, 1e-06
      %v3301 = vadd.f32 %v3269, 1e-06
      %v3302 = vadd.f32 %v3270, 1e-06
      %v3303 = vadd.f32 %v3271, 1e-06
      %v3304 = vadd.f32 %v3272, 1e-06
      %v3305 = vadd.f32 %v3273, 1e-06
      %v3306 = vadd.f32 %v3274, 1e-06
      %v3307 = vadd.f32 %v3275, 1e-06
      %v3308 = vadd.f32 %v3276, 1e-06
      %v3309 = vadd.f32 %v3277, 1e-06
      %v3310 = vadd.f32 %v3278, 1e-06
      %v3311 = vadd.f32 %v3279, 1e-06
      %v3312 = vadd.f32 %v3280, 1e-06
      %v3313 = vadd.f32 %v3281, 1e-06
      %v3314 = vadd.f32 %v3282, 1e-06
      %v3315 = vadd.f32 %v3283, 1e-06
      %v3316 = vadd.f32 %v3284, 1e-06
      %v3317 = vadd.f32 %v3285, 1e-06
      %v3318 = vadd.f32 %v3286, 1e-06
      %v3319 = vadd.f32 %v3287, 1e-06
      %v3320 = vadd.f32 %v3288, 1e-06
      %v3321 = vadd.f32 %v3289, 1e-06
      %v3322 = vadd.f32 %v3290, 1e-06
      %v3323 = vadd.f32 %v3291, 1e-06
      %v3324 = vadd.f32 %v3292, 1e-06
      %v3325 = vsel %vm2812, %v3293, %v2636
      %v3326 = vsel %vm2812, %v3294, %v2641
      %v3327 = vsel %vm2812, %v3295, %v2646
      %v3328 = vsel %vm2812, %v3296, %v2651
      %v3329 = vsel %vm2812, %v3297, %v2656
      %v3330 = vsel %vm2812, %v3298, %v2661
      %v3331 = vsel %vm2812, %v3299, %v2666
      %v3332 = vsel %vm2812, %v3300, %v2671
      %v3333 = vsel %vm2812, %v3301, %v2676
      %v3334 = vsel %vm2812, %v3302, %v2681
      %v3335 = vsel %vm2812, %v3303, %v2686
      %v3336 = vsel %vm2812, %v3304, %v2691
      %v3337 = vsel %vm2812, %v3305, %v2696
      %v3338 = vsel %vm2812, %v3306, %v2701
      %v3339 = vsel %vm2812, %v3307, %v2706
      %v3340 = vsel %vm2812, %v3308, %v2711
      %v3341 = vsel %vm2812, %v3309, %v2716
      %v3342 = vsel %vm2812, %v3310, %v2721
      %v3343 = vsel %vm2812, %v3311, %v2726
      %v3344 = vsel %vm2812, %v3312, %v2731
      %v3345 = vsel %vm2812, %v3313, %v2736
      %v3346 = vsel %vm2812, %v3314, %v2741
      %v3347 = vsel %vm2812, %v3315, %v2746
      %v3348 = vsel %vm2812, %v3316, %v2751
      %v3349 = vsel %vm2812, %v3317, %v2756
      %v3350 = vsel %vm2812, %v3318, %v2761
      %v3351 = vsel %vm2812, %v3319, %v2766
      %v3352 = vsel %vm2812, %v3320, %v2771
      %v3353 = vsel %vm2812, %v3321, %v2776
      %v3354 = vsel %vm2812, %v3322, %v2781
      %v3355 = vsel %vm2812, %v3323, %v2786
      %v3356 = vsel %vm2812, %v3324, %v2791
      %vm3357 = vcmask 130048
      %3358 = vst.msk [vmem:[%s429] sm:$0xff] %vm3357, %v3325
      %3359 = vst.msk [vmem:[%s429 + $0x8] sm:$0xff] %vm3357, %v3326
      %3360 = vst.msk [vmem:[%s429 + $0x10] sm:$0xff] %vm3357, %v3327
      %3361 = vst.msk [vmem:[%s429 + $0x18] sm:$0xff] %vm3357, %v3328
      %3362 = vst.msk [vmem:[%s429 + $0x20] sm:$0xff] %vm3357, %v3329
      %3363 = vst.msk [vmem:[%s429 + $0x28] sm:$0xff] %vm3357, %v3330
      %3364 = vst.msk [vmem:[%s429 + $0x30] sm:$0xff] %vm3357, %v3331
      %3365 = vst.msk [vmem:[%s429 + $0x38] sm:$0xff] %vm3357, %v3332
      %3366 = vst.msk [vmem:[%s429 + $0x40] sm:$0xff] %vm3357, %v3333
      %3367 = vst.msk [vmem:[%s429 + $0x48] sm:$0xff] %vm3357, %v3334
      %3368 = vst.msk [vmem:[%s429 + $0x50] sm:$0xff] %vm3357, %v3335
      %3369 = vst.msk [vmem:[%s429 + $0x58] sm:$0xff] %vm3357, %v3336
      %3370 = vst.msk [vmem:[%s429 + $0x60] sm:$0xff] %vm3357, %v3337
      %3371 = vst.msk [vmem:[%s429 + $0x68] sm:$0xff] %vm3357, %v3338
      %3372 = vst.msk [vmem:[%s429 + $0x70] sm:$0xff] %vm3357, %v3339
      %3373 = vst.msk [vmem:[%s429 + $0x78] sm:$0xff] %vm3357, %v3340
      %3374 = vst.msk [vmem:[%s429 + $0x80] sm:$0xff] %vm3357, %v3341
      %3375 = vst.msk [vmem:[%s429 + $0x88] sm:$0xff] %vm3357, %v3342
      %3376 = vst.msk [vmem:[%s429 + $0x90] sm:$0xff] %vm3357, %v3343
      %3377 = vst.msk [vmem:[%s429 + $0x98] sm:$0xff] %vm3357, %v3344
      %3378 = vst.msk [vmem:[%s429 + $0xa0] sm:$0xff] %vm3357, %v3345
      %3379 = vst.msk [vmem:[%s429 + $0xa8] sm:$0xff] %vm3357, %v3346
      %3380 = vst.msk [vmem:[%s429 + $0xb0] sm:$0xff] %vm3357, %v3347
      %3381 = vst.msk [vmem:[%s429 + $0xb8] sm:$0xff] %vm3357, %v3348
      %3382 = vst.msk [vmem:[%s429 + $0xc0] sm:$0xff] %vm3357, %v3349
      %3383 = vst.msk [vmem:[%s429 + $0xc8] sm:$0xff] %vm3357, %v3350
      %3384 = vst.msk [vmem:[%s429 + $0xd0] sm:$0xff] %vm3357, %v3351
      %3385 = vst.msk [vmem:[%s429 + $0xd8] sm:$0xff] %vm3357, %v3352
      %3386 = vst.msk [vmem:[%s429 + $0xe0] sm:$0xff] %vm3357, %v3353
      %3387 = vst.msk [vmem:[%s429 + $0xe8] sm:$0xff] %vm3357, %v3354
      %3388 = vst.msk [vmem:[%s429 + $0xf0] sm:$0xff] %vm3357, %v3355
      %3389 = vst.msk [vmem:[%s429 + $0xf8] sm:$0xff] %vm3357, %v3356
      %s3390 = smul.u32 32, %s24
      %p3391 = scmp.lt.s32.totalorder %s3390, 63
      %s3392 = scalar_select %p3391, %s3390, 63
      %s3393 = smul.addr %s3392, 8
      %s3394 = scalar_lea.vmem %s11, %s3393
      %s3395 = smul.u32 32, %s24
      %p3396 = scmp.lt.s32.totalorder %s3395, 63
      %s3397 = scalar_select %p3396, %s3395, 63
      %s3398 = smul.addr %s3397, 8
      %s3399 = scalar_lea.vmem %s12, %s3398
      // Predicated region
      $region65: #{tpu_custom_call.1} parent=63 // pred_check
        %p3400 = pneg %p278
      $region66: #{tpu_custom_call.1} parent=63 // pred_check_branch
        %3402 = sbr.rel (%p3400) target = $region68
      $region67: #{tpu_custom_call.1} parent=63 // pred_region
        %s3403 = smul.u32 32, %s24
      $region68: #{tpu_custom_call.1} parent=63 // pred_fallthru
        _
      // Predicated region
      $region69: #{tpu_custom_call.1} parent=63 // pred_check
        %p3404 = pneg %p304
      $region70: #{tpu_custom_call.1} parent=63 // pred_check_branch
        %3406 = sbr.rel (%p3404) target = $region72
      $region71: #{tpu_custom_call.1} parent=63 // pred_region
        %s3407 = smul.u32 32, %s24
      $region72: #{tpu_custom_call.1} parent=63 // pred_fallthru
        _
    $region64: #{tpu_custom_call.1} parent=5 // pred_fallthru
      _
    %p3408 = scmp.le.s32.totalorder 2, %s19
    // Predicated region
    $region73: #{tpu_custom_call.1} parent=5 // pred_check
      %p3409 = pneg %p3408
    $region74: #{tpu_custom_call.1} parent=5 // pred_check_branch
      %3411 = sbr.rel (%p3409) target = $region76
    $region75: #{tpu_custom_call.1} parent=5 // pred_region
      %s3412 = ssub.s32 %s19, 2
      // Predicated region
      $region77: #{tpu_custom_call.1} parent=75 // pred_check
        %p3413 = pneg %p284
      $region78: #{tpu_custom_call.1} parent=75 // pred_check_branch
        %3415 = sbr.rel (%p3413) target = $region80
      $region79: #{tpu_custom_call.1} parent=75 // pred_region
        %s3416 = smul.u32 32, %s25
        %p3417 = scmp.lt.s32.totalorder %s3416, 63
        %s3418 = scalar_select %p3417, %s3416, 63
        %s3419 = smul.addr %s3418, 8
        %s3420 = scalar_lea.vmem %s11, %s3419
      $region80: #{tpu_custom_call.1} parent=75 // pred_fallthru
        _
      // Predicated region
      $region81: #{tpu_custom_call.1} parent=75 // pred_check
        %p3421 = pneg %p310
      $region82: #{tpu_custom_call.1} parent=75 // pred_check_branch
        %3423 = sbr.rel (%p3421) target = $region84
      $region83: #{tpu_custom_call.1} parent=75 // pred_region
        %s3424 = smul.u32 32, %s25
        %p3425 = scmp.lt.s32.totalorder %s3424, 63
        %s3426 = scalar_select %p3425, %s3424, 63
        %s3427 = smul.addr %s3426, 8
        %s3428 = scalar_lea.vmem %s12, %s3427
      $region84: #{tpu_custom_call.1} parent=75 // pred_fallthru
        _
    $region76: #{tpu_custom_call.1} parent=5 // pred_fallthru
      _
  $region6: #{tpu_custom_call.1} parent=0 // loop_footer
    %s23 = sadd.s32 1, %s19
  $region7: #{tpu_custom_call.1} parent=0 // loop_footer_branch
    %18 = sbr.rel target = $region3
  $region8: #{tpu_custom_call.1} parent=0 // loop_exit
    _

</llo_original>
